<compile_context>
chip_gen: v6e
topology: v6e:2x2x1
jax: 0.10.0
libtpu: 0.0.40
codegen_flags: <defaults>
</compile_context>

<pallas_src>
import jax
import jax.numpy as jnp
import numpy as np
from jax.experimental import pallas as pl
from jax.experimental.pallas import tpu as pltpu


def _make_kernel(n_steps_total, time_chunk, n_chunks, threshold, reset_residual):
    """Fused SNN kernel: one grid step = `time_chunk` timesteps of the network."""
    inv_t = 1.0 / float(n_steps_total)

    def kernel(x_ref, wc_ref, wh_ref, wo_ref, out_ref, v1_ref, v2_ref, v3_ref):
        c = pl.program_id(1)  # time-chunk index ("arbitrary" axis, carries state)

        @pl.when(c == 0)
        def _init():
            v1_ref[...] = jnp.zeros_like(v1_ref)
            v2_ref[...] = jnp.zeros_like(v2_ref)
            v3_ref[...] = jnp.zeros_like(v3_ref)
            out_ref[...] = jnp.zeros_like(out_ref)

        # Hoist the (tiny) weight loads out of the unrolled time loop.
        wc = wc_ref[...]          # (C,   Kp) f32  -- conv weight
        wh = wh_ref[...]          # (H,   C ) bf16 -- hidden Linear weight
        wo = wo_ref[...]          # (NCp, H ) bf16 -- output Linear weight

        def if_step(v_ref, inp):
            # IFNode: charge, Heaviside fire, reset (hard reset when v_reset=0.0,
            # soft/residual reset when v_reset=None).  One compare + one select.
            v = v_ref[...] + inp
            fire = v >= threshold
            if reset_residual:
                v_ref[...] = jnp.where(fire, v - threshold, v)
            else:
                v_ref[...] = jnp.where(fire, 0.0, v)
            return fire

        def as_spike(fire, dtype):
            return jnp.where(fire, 1.0, 0.0).astype(dtype)

        def step(i, carry):
            x_t = x_ref[i]                                             # (Kp, bt) f32
            conv = jnp.dot(wc, x_t, preferred_element_type=jnp.float32)     # (C, bt)
            s1 = as_spike(if_step(v1_ref, conv), jnp.bfloat16)         # cnn_IF_layer
            h = jnp.dot(wh, s1, preferred_element_type=jnp.float32)         # (H, bt)
            s2 = as_spike(if_step(v2_ref, h), jnp.bfloat16)            # hidden IF
            o = jnp.dot(wo, s2, preferred_element_type=jnp.float32)         # (NCp,bt)
            s3 = as_spike(if_step(v3_ref, o), jnp.float32)             # output IF
            out_ref[...] += s3                                         # results += x_slice
            return carry

        jax.lax.fori_loop(0, time_chunk, step, None, unroll=True)

        @pl.when(c == n_chunks - 1)
        def _finalize():
            out_ref[...] = out_ref[...] * inv_t                        # results / T

    return kernel


def filter_cnn_forward(x, conv_w, w_hidden, w_out, *, kernel_size, stride,
                       padding, threshold, reset_residual, batch_tile=None):
    """Forward pass of filter_CNN (bias_option=False).

    x:        (B, L)   raw 1-D signal per sample
    conv_w:   (C, K)   Conv1d(1, C, K).weight with the in_channel dim squeezed
    w_hidden: (H, C)   layer.Linear(C, H).weight   (PyTorch layout)
    w_out:    (NC, H)  layer.Linear(H, NC).weight  (PyTorch layout)
    returns   (B, NC)  time-averaged output spikes
    """
    LANE, SUB = 128, 8
    B, L = x.shape
    C, K = conv_w.shape
    H = w_hidden.shape[0]
    NC = w_out.shape[0]
    T = (L + 2 * padding - kernel_size) // stride + 1
    assert T >= 1

    Kp = max(SUB, -(-K // SUB) * SUB)        # contraction dim -> sublane multiple
    NCp = max(SUB, -(-NC // SUB) * SUB)      # class dim       -> sublane multiple

    # --- batch tiling: pad batch to a lane (128) multiple so every IF update
    # and the output store is lane-dense; pick >= 2 tiles when the padded batch
    # allows so the leading "parallel" axis can shard across both v7x TCs.
    B_pad = -(-B // LANE) * LANE
    if batch_tile is None:
        if B_pad >= 2 * LANE:
            batch_tile = min(512, max(LANE, (B_pad // 2) // LANE * LANE))
            while B_pad % batch_tile:
                batch_tile -= LANE
        else:
            batch_tile = B_pad
    else:
        assert batch_tile % LANE == 0
        B_pad = -(-B_pad // batch_tile) * batch_tile
    n_b = B_pad // batch_tile

    # --- time chunking: internalize up to max_tc timesteps per grid step
    # (bounded by an unroll cap and a ~2 MiB/buffer input budget).  The chunk
    # must divide T so init / (1/T) finalize stay on chunk 0 / last chunk.
    max_tc = max(1, min(64, (2 << 20) // (Kp * batch_tile * 4)))
    if T <= max_tc:
        time_chunk = T
    else:
        time_chunk = next(tc for tc in range(max_tc, 0, -1) if T % tc == 0)
    n_chunks = T // time_chunk

    # --- im2col (pure layout work in the wrapper): (T, Kp, B_pad), batch on lanes.
    x_pad = jnp.pad(x.astype(jnp.float32), ((0, 0), (padding, padding)))
    win_idx = jnp.arange(T)[:, None] * stride + jnp.arange(kernel_size)[None, :]
    x_unf = jnp.transpose(x_pad[:, win_idx], (1, 2, 0))             # (T, K, B)
    x_unf = jnp.pad(x_unf, ((0, 0), (0, Kp - K), (0, B_pad - B)))   # (T, Kp, B_pad)

    # --- weights in W @ X orientation.  Spikes are exact 0/1 in bf16; linear
    # weights go to the MXU in bf16 (f32 accumulation).  Conv stays f32 (raw data).
    wc = jnp.pad(conv_w.astype(jnp.float32), ((0, 0), (0, Kp - K)))       # (C, Kp)
    wh = w_hidden.astype(jnp.bfloat16)                                    # (H, C)
    wo = jnp.pad(w_out, ((0, NCp - NC), (0, 0))).astype(jnp.bfloat16)     # (NCp, H)

    kernel = _make_kernel(T, time_chunk, n_chunks, threshold, reset_residual)

    grid_spec = pltpu.PrefetchScalarGridSpec(
        num_scalar_prefetch=0,
        grid=(n_b, n_chunks),
        in_specs=[
            pl.BlockSpec((time_chunk, Kp, batch_tile), lambda b, c: (c, 0, b)),
            pl.BlockSpec((C, Kp), lambda b, c: (0, 0)),     # conv weight
            pl.BlockSpec((H, C), lambda b, c: (0, 0)),      # hidden weight
            pl.BlockSpec((NCp, H), lambda b, c: (0, 0)),    # output weight
        ],
        out_specs=pl.BlockSpec((NCp, batch_tile), lambda b, c: (0, b)),
        scratch_shapes=[
            pltpu.VMEM((C, batch_tile), jnp.float32),       # v of cnn_IF_layer
            pltpu.VMEM((H, batch_tile), jnp.float32),       # v of hidden IF
            pltpu.VMEM((NCp, batch_tile), jnp.float32),     # v of output IF
        ],
    )

    out = pl.pallas_call(
        kernel,
        out_shape=jax.ShapeDtypeStruct((NCp, B_pad), jnp.float32),
        grid_spec=grid_spec,
        compiler_params=pltpu.CompilerParams(
            dimension_semantics=("parallel", "arbitrary"),
            vmem_limit_bytes=32 * 1024 * 1024),
    )(x_unf, wc, wh, wo)

    return out[:NC, :B].T                                    # (B, NC)


def _ref_forward(x, conv_w, w_hidden, w_out, kernel_size, stride, padding,
                 threshold, reset_residual):
    """Pure numpy reference matching the PyTorch filter_CNN semantics."""
    x = np.asarray(x, np.float32)
    conv_w = np.asarray(conv_w, np.float32)      # (C, K)
    w_hidden = np.asarray(w_hidden, np.float32)  # (H, C)
    w_out = np.asarray(w_out, np.float32)        # (NC, H)
    B, L = x.shape
    C, K = conv_w.shape
    H = w_hidden.shape[0]
    NC = w_out.shape[0]

    x_pad = np.pad(x, ((0, 0), (padding, padding)))
    T = (L + 2 * padding - kernel_size) // stride + 1

    def if_step(v, inp):
        v = v + inp
        s = (v >= threshold).astype(np.float32)
        if reset_residual:
            v = v - threshold * s
        else:
            v = v * (1.0 - s)
        return s, v

    v1 = np.zeros((B, C), np.float32)
    v2 = np.zeros((B, H), np.float32)
    v3 = np.zeros((B, NC), np.float32)
    results = np.zeros((B, NC), np.float32)
    for t in range(T):
        window = x_pad[:, t * stride:t * stride + K]         # (B, K)
        s1, v1 = if_step(v1, window @ conv_w.T)              # Conv1d column, no bias
        s2, v2 = if_step(v2, s1 @ w_hidden.T)
        s3, v3 = if_step(v3, s2 @ w_out.T)
        results += s3
    return results / T


if __name__ == "__main__":
    # filter_CNN hyperparameters (bias_option=False, reset_value_residual=False)
    B, L = 8, 16
    out_channels, kernel_size, stride, padding = 16, 3, 1, 1
    hidden_size, num_classes = 32, 10
    threshold_value = 1.0
    reset_value_residual = False   # IFNode(v_reset=0.0): hard reset

    key = jax.random.PRNGKey(0)
    kx, kc, kh, ko = jax.random.split(key, 4)
    x = jax.random.uniform(kx, (B, L), dtype=jnp.float32)
    conv_w = jax.random.normal(kc, (out_channels, kernel_size), dtype=jnp.float32) * 0.8
    w_hidden = jax.random.normal(kh, (hidden_size, out_channels), dtype=jnp.float32) * 0.4
    w_out = jax.random.normal(ko, (num_classes, hidden_size), dtype=jnp.float32) * 0.4

    # Pre-round the linear weights to bf16 so the in-kernel bf16 MXU path and
    # the f32 reference see bit-identical weight values (spikes are exact 0/1).
    w_hidden = w_hidden.astype(jnp.bfloat16).astype(jnp.float32)
    w_out = w_out.astype(jnp.bfloat16).astype(jnp.float32)

    out = filter_cnn_forward(
        x, conv_w, w_hidden, w_out,
        kernel_size=kernel_size, stride=stride, padding=padding,
        threshold=threshold_value, reset_residual=reset_value_residual)
    out = jax.block_until_ready(out)

    ref = _ref_forward(np.asarray(x), np.asarray(conv_w), np.asarray(w_hidden),
                       np.asarray(w_out), kernel_size, stride, padding,
                       threshold_value, reset_value_residual)

    if np.allclose(np.asarray(out), ref, atol=1e-5):
        print("KERNEL_OK")
    else:
        print("MISMATCH", float(np.abs(np.asarray(out) - ref).max()))
</pallas_src>

<mosaic_0001>
module attributes {stable_mosaic.version = 11 : i64} {
  func.func @kernel(%arg0: i32, %arg1: i32, %arg2: memref<16x8x128xf32, #tpu.memory_space<vmem>>, %arg3: memref<16x8xf32, #tpu.memory_space<vmem>>, %arg4: memref<32x16xbf16, #tpu.memory_space<vmem>>, %arg5: memref<16x32xbf16, #tpu.memory_space<vmem>>, %arg6: memref<16x128xf32, #tpu.memory_space<vmem>>, %arg7: memref<16x128xf32, #tpu.memory_space<vmem>>, %arg8: memref<32x128xf32, #tpu.memory_space<vmem>>, %arg9: memref<16x128xf32, #tpu.memory_space<vmem>>) attributes {dimension_semantics = [#tpu.dimension_semantics<parallel>, #tpu.dimension_semantics<arbitrary>], iteration_bounds = array<i64: 1, 1>, scalar_prefetch = 0 : i64, scratch_operands = 3 : i64, tpu.core_type = #tpu.core_type<tc>, window_params = [{transform_indices = @transform_0, window_bounds = array<i64: 16, 8, 128>}, {pipeline_mode = #tpu.pipeline_mode<synchronous>, transform_indices = @transform_1, window_bounds = array<i64: 16, 8>}, {pipeline_mode = #tpu.pipeline_mode<synchronous>, transform_indices = @transform_2, window_bounds = array<i64: 32, 16>}, {pipeline_mode = #tpu.pipeline_mode<synchronous>, transform_indices = @transform_3, window_bounds = array<i64: 16, 32>}, {transform_indices = @transform_4, window_bounds = array<i64: 16, 128>}]} {
    %c0_i32 = arith.constant 0 : i32
    %0 = arith.cmpi eq, %arg1, %c0_i32 : i32
    %1 = arith.extui %0 : i1 to i32
    %c0_i32_0 = arith.constant 0 : i32
    %2 = arith.cmpi ne, %1, %c0_i32_0 : i32
    scf.if %2 {
      %cst_536 = arith.constant 0.000000e+00 : f32
      %665 = vector.broadcast %cst_536 : f32 to vector<16x128xf32>
      %c0_537 = arith.constant 0 : index
      %c0_538 = arith.constant 0 : index
      %666 = vector.load %arg7[%c0_537, %c0_538] : memref<16x128xf32, #tpu.memory_space<vmem>>, vector<16x128xf32>
      tpu.vector_store %arg7[%c0_537, %c0_538], %665 {strides = array<i32>} : memref<16x128xf32, #tpu.memory_space<vmem>>, vector<16x128xf32>,
      %cst_539 = arith.constant 0.000000e+00 : f32
      %667 = vector.broadcast %cst_539 : f32 to vector<32x128xf32>
      %c0_540 = arith.constant 0 : index
      %c0_541 = arith.constant 0 : index
      %668 = vector.load %arg8[%c0_540, %c0_541] : memref<32x128xf32, #tpu.memory_space<vmem>>, vector<32x128xf32>
      tpu.vector_store %arg8[%c0_540, %c0_541], %667 {strides = array<i32>} : memref<32x128xf32, #tpu.memory_space<vmem>>, vector<32x128xf32>,
      %cst_542 = arith.constant 0.000000e+00 : f32
      %669 = vector.broadcast %cst_542 : f32 to vector<16x128xf32>
      %c0_543 = arith.constant 0 : index
      %c0_544 = arith.constant 0 : index
      %670 = vector.load %arg9[%c0_543, %c0_544] : memref<16x128xf32, #tpu.memory_space<vmem>>, vector<16x128xf32>
      tpu.vector_store %arg9[%c0_543, %c0_544], %669 {strides = array<i32>} : memref<16x128xf32, #tpu.memory_space<vmem>>, vector<16x128xf32>,
      %cst_545 = arith.constant 0.000000e+00 : f32
      %671 = vector.broadcast %cst_545 : f32 to vector<16x128xf32>
      %c0_546 = arith.constant 0 : index
      %c0_547 = arith.constant 0 : index
      %672 = vector.load %arg6[%c0_546, %c0_547] : memref<16x128xf32, #tpu.memory_space<vmem>>, vector<16x128xf32>
      tpu.vector_store %arg6[%c0_546, %c0_547], %671 {strides = array<i32>} : memref<16x128xf32, #tpu.memory_space<vmem>>, vector<16x128xf32>,
    } else {
    }
    %c0 = arith.constant 0 : index
    %c0_1 = arith.constant 0 : index
    %3 = vector.load %arg3[%c0, %c0_1] : memref<16x8xf32, #tpu.memory_space<vmem>>, vector<16x8xf32>
    %c0_2 = arith.constant 0 : index
    %c0_3 = arith.constant 0 : index
    %4 = vector.load %arg4[%c0_2, %c0_3] : memref<32x16xbf16, #tpu.memory_space<vmem>>, vector<32x16xbf16>
    %c0_4 = arith.constant 0 : index
    %c0_5 = arith.constant 0 : index
    %5 = vector.load %arg5[%c0_4, %c0_5] : memref<16x32xbf16, #tpu.memory_space<vmem>>, vector<16x32xbf16>
    %c0_i32_6 = arith.constant 0 : i32
    %6 = arith.index_cast %c0_i32_6 : i32 to index
    %c0_7 = arith.constant 0 : index
    %c0_8 = arith.constant 0 : index
    %7 = vector.load %arg2[%6, %c0_7, %c0_8] : memref<16x8x128xf32, #tpu.memory_space<vmem>>, vector<1x8x128xf32>
    %8 = vector.shape_cast %7 : vector<1x8x128xf32> to vector<8x128xf32>
    %cst = arith.constant dense<0.000000e+00> : vector<16x128xf32>
    %9 = tpu.matmul %3, %8, %cst {dimension_numbers = #tpu.dot_dimension_numbers<[1], [0], [0], [1], [0, 0, 1, 1], [], []>} : vector<16x8xf32>, vector<8x128xf32>, vector<16x128xf32> -> vector<16x128xf32>
    %c0_9 = arith.constant 0 : index
    %c0_10 = arith.constant 0 : index
    %10 = vector.load %arg7[%c0_9, %c0_10] : memref<16x128xf32, #tpu.memory_space<vmem>>, vector<16x128xf32>
    %11 = arith.addf %10, %9 : vector<16x128xf32>
    %cst_11 = arith.constant 1.000000e+00 : f32
    %12 = vector.broadcast %cst_11 : f32 to vector<16x128xf32>
    %13 = arith.cmpf oge, %11, %12 : vector<16x128xf32>
    %cst_12 = arith.constant 0.000000e+00 : f32
    %14 = vector.broadcast %cst_12 : f32 to vector<16x128xf32>
    %15 = arith.select %13, %14, %11 : vector<16x128xi1>, vector<16x128xf32>
    %c0_13 = arith.constant 0 : index
    %c0_14 = arith.constant 0 : index
    %16 = vector.load %arg7[%c0_13, %c0_14] : memref<16x128xf32, #tpu.memory_space<vmem>>, vector<16x128xf32>
    tpu.vector_store %arg7[%c0_13, %c0_14], %15 {strides = array<i32>} : memref<16x128xf32, #tpu.memory_space<vmem>>, vector<16x128xf32>,
    %cst_15 = arith.constant 1.000000e+00 : f32
    %cst_16 = arith.constant 0.000000e+00 : f32
    %17 = vector.broadcast %cst_15 : f32 to vector<16x128xf32>
    %18 = vector.broadcast %cst_16 : f32 to vector<16x128xf32>
    %19 = arith.select %13, %17, %18 : vector<16x128xi1>, vector<16x128xf32>
    %20 = arith.truncf %19 : vector<16x128xf32> to vector<16x128xbf16>
    %cst_17 = arith.constant dense<0.000000e+00> : vector<32x128xf32>
    %21 = tpu.matmul %4, %20, %cst_17 {dimension_numbers = #tpu.dot_dimension_numbers<[1], [0], [0], [1], [0, 0, 1, 1], [], []>} : vector<32x16xbf16>, vector<16x128xbf16>, vector<32x128xf32> -> vector<32x128xf32>
    %c0_18 = arith.constant 0 : index
    %c0_19 = arith.constant 0 : index
    %22 = vector.load %arg8[%c0_18, %c0_19] : memref<32x128xf32, #tpu.memory_space<vmem>>, vector<32x128xf32>
    %23 = arith.addf %22, %21 : vector<32x128xf32>
    %cst_20 = arith.constant 1.000000e+00 : f32
    %24 = vector.broadcast %cst_20 : f32 to vector<32x128xf32>
    %25 = arith.cmpf oge, %23, %24 : vector<32x128xf32>
    %cst_21 = arith.constant 0.000000e+00 : f32
    %26 = vector.broadcast %cst_21 : f32 to vector<32x128xf32>
    %27 = arith.select %25, %26, %23 : vector<32x128xi1>, vector<32x128xf32>
    %c0_22 = arith.constant 0 : index
    %c0_23 = arith.constant 0 : index
    %28 = vector.load %arg8[%c0_22, %c0_23] : memref<32x128xf32, #tpu.memory_space<vmem>>, vector<32x128xf32>
    tpu.vector_store %arg8[%c0_22, %c0_23], %27 {strides = array<i32>} : memref<32x128xf32, #tpu.memory_space<vmem>>, vector<32x128xf32>,
    %cst_24 = arith.constant 1.000000e+00 : f32
    %cst_25 = arith.constant 0.000000e+00 : f32
    %29 = vector.broadcast %cst_24 : f32 to vector<32x128xf32>
    %30 = vector.broadcast %cst_25 : f32 to vector<32x128xf32>
    %31 = arith.select %25, %29, %30 : vector<32x128xi1>, vector<32x128xf32>
    %32 = arith.truncf %31 : vector<32x128xf32> to vector<32x128xbf16>
    %cst_26 = arith.constant dense<0.000000e+00> : vector<16x128xf32>
    %33 = tpu.matmul %5, %32, %cst_26 {dimension_numbers = #tpu.dot_dimension_numbers<[1], [0], [0], [1], [0, 0, 1, 1], [], []>} : vector<16x32xbf16>, vector<32x128xbf16>, vector<16x128xf32> -> vector<16x128xf32>
    %c0_27 = arith.constant 0 : index
    %c0_28 = arith.constant 0 : index
    %34 = vector.load %arg9[%c0_27, %c0_28] : memref<16x128xf32, #tpu.memory_space<vmem>>, vector<16x128xf32>
    %35 = arith.addf %34, %33 : vector<16x128xf32>
    %cst_29 = arith.constant 1.000000e+00 : f32
    %36 = vector.broadcast %cst_29 : f32 to vector<16x128xf32>
    %37 = arith.cmpf oge, %35, %36 : vector<16x128xf32>
    %cst_30 = arith.constant 0.000000e+00 : f32
    %38 = vector.broadcast %cst_30 : f32 to vector<16x128xf32>
    %39 = arith.select %37, %38, %35 : vector<16x128xi1>, vector<16x128xf32>
    %c0_31 = arith.constant 0 : index
    %c0_32 = arith.constant 0 : index
    %40 = vector.load %arg9[%c0_31, %c0_32] : memref<16x128xf32, #tpu.memory_space<vmem>>, vector<16x128xf32>
    tpu.vector_store %arg9[%c0_31, %c0_32], %39 {strides = array<i32>} : memref<16x128xf32, #tpu.memory_space<vmem>>, vector<16x128xf32>,
    %cst_33 = arith.constant 1.000000e+00 : f32
    %cst_34 = arith.constant 0.000000e+00 : f32
    %41 = vector.broadcast %cst_33 : f32 to vector<16x128xf32>
    %42 = vector.broadcast %cst_34 : f32 to vector<16x128xf32>
    %43 = arith.select %37, %41, %42 : vector<16x128xi1>, vector<16x128xf32>
    %c0_35 = arith.constant 0 : index
    %c0_36 = arith.constant 0 : index
    %44 = vector.load %arg6[%c0_35, %c0_36] : memref<16x128xf32, #tpu.memory_space<vmem>>, vector<16x128xf32>
    %45 = arith.addf %44, %43 : vector<16x128xf32>
    %c0_37 = arith.constant 0 : index
    %c0_38 = arith.constant 0 : index
    %46 = vector.load %arg6[%c0_37, %c0_38] : memref<16x128xf32, #tpu.memory_space<vmem>>, vector<16x128xf32>
    tpu.vector_store %arg6[%c0_37, %c0_38], %45 {strides = array<i32>} : memref<16x128xf32, #tpu.memory_space<vmem>>, vector<16x128xf32>,
    %c1_i32 = arith.constant 1 : i32
    %47 = arith.index_cast %c1_i32 : i32 to index
    %c0_39 = arith.constant 0 : index
    %c0_40 = arith.constant 0 : index
    %48 = vector.load %arg2[%47, %c0_39, %c0_40] : memref<16x8x128xf32, #tpu.memory_space<vmem>>, vector<1x8x128xf32>
    %49 = vector.shape_cast %48 : vector<1x8x128xf32> to vector<8x128xf32>
    %cst_41 = arith.constant dense<0.000000e+00> : vector<16x128xf32>
    %50 = tpu.matmul %3, %49, %cst_41 {dimension_numbers = #tpu.dot_dimension_numbers<[1], [0], [0], [1], [0, 0, 1, 1], [], []>} : vector<16x8xf32>, vector<8x128xf32>, vector<16x128xf32> -> vector<16x128xf32>
    %c0_42 = arith.constant 0 : index
    %c0_43 = arith.constant 0 : index
    %51 = vector.load %arg7[%c0_42, %c0_43] : memref<16x128xf32, #tpu.memory_space<vmem>>, vector<16x128xf32>
    %52 = arith.addf %51, %50 : vector<16x128xf32>
    %cst_44 = arith.constant 1.000000e+00 : f32
    %53 = vector.broadcast %cst_44 : f32 to vector<16x128xf32>
    %54 = arith.cmpf oge, %52, %53 : vector<16x128xf32>
    %cst_45 = arith.constant 0.000000e+00 : f32
    %55 = vector.broadcast %cst_45 : f32 to vector<16x128xf32>
    %56 = arith.select %54, %55, %52 : vector<16x128xi1>, vector<16x128xf32>
    %c0_46 = arith.constant 0 : index
    %c0_47 = arith.constant 0 : index
    %57 = vector.load %arg7[%c0_46, %c0_47] : memref<16x128xf32, #tpu.memory_space<vmem>>, vector<16x128xf32>
    tpu.vector_store %arg7[%c0_46, %c0_47], %56 {strides = array<i32>} : memref<16x128xf32, #tpu.memory_space<vmem>>, vector<16x128xf32>,
    %cst_48 = arith.constant 1.000000e+00 : f32
    %cst_49 = arith.constant 0.000000e+00 : f32
    %58 = vector.broadcast %cst_48 : f32 to vector<16x128xf32>
    %59 = vector.broadcast %cst_49 : f32 to vector<16x128xf32>
    %60 = arith.select %54, %58, %59 : vector<16x128xi1>, vector<16x128xf32>
    %61 = arith.truncf %60 : vector<16x128xf32> to vector<16x128xbf16>
    %cst_50 = arith.constant dense<0.000000e+00> : vector<32x128xf32>
    %62 = tpu.matmul %4, %61, %cst_50 {dimension_numbers = #tpu.dot_dimension_numbers<[1], [0], [0], [1], [0, 0, 1, 1], [], []>} : vector<32x16xbf16>, vector<16x128xbf16>, vector<32x128xf32> -> vector<32x128xf32>
    %c0_51 = arith.constant 0 : index
    %c0_52 = arith.constant 0 : index
    %63 = vector.load %arg8[%c0_51, %c0_52] : memref<32x128xf32, #tpu.memory_space<vmem>>, vector<32x128xf32>
    %64 = arith.addf %63, %62 : vector<32x128xf32>
    %cst_53 = arith.constant 1.000000e+00 : f32
    %65 = vector.broadcast %cst_53 : f32 to vector<32x128xf32>
    %66 = arith.cmpf oge, %64, %65 : vector<32x128xf32>
    %cst_54 = arith.constant 0.000000e+00 : f32
    %67 = vector.broadcast %cst_54 : f32 to vector<32x128xf32>
    %68 = arith.select %66, %67, %64 : vector<32x128xi1>, vector<32x128xf32>
    %c0_55 = arith.constant 0 : index
    %c0_56 = arith.constant 0 : index
    %69 = vector.load %arg8[%c0_55, %c0_56] : memref<32x128xf32, #tpu.memory_space<vmem>>, vector<32x128xf32>
    tpu.vector_store %arg8[%c0_55, %c0_56], %68 {strides = array<i32>} : memref<32x128xf32, #tpu.memory_space<vmem>>, vector<32x128xf32>,
    %cst_57 = arith.constant 1.000000e+00 : f32
    %cst_58 = arith.constant 0.000000e+00 : f32
    %70 = vector.broadcast %cst_57 : f32 to vector<32x128xf32>
    %71 = vector.broadcast %cst_58 : f32 to vector<32x128xf32>
    %72 = arith.select %66, %70, %71 : vector<32x128xi1>, vector<32x128xf32>
    %73 = arith.truncf %72 : vector<32x128xf32> to vector<32x128xbf16>
    %cst_59 = arith.constant dense<0.000000e+00> : vector<16x128xf32>
    %74 = tpu.matmul %5, %73, %cst_59 {dimension_numbers = #tpu.dot_dimension_numbers<[1], [0], [0], [1], [0, 0, 1, 1], [], []>} : vector<16x32xbf16>, vector<32x128xbf16>, vector<16x128xf32> -> vector<16x128xf32>
    %c0_60 = arith.constant 0 : index
    %c0_61 = arith.constant 0 : index
    %75 = vector.load %arg9[%c0_60, %c0_61] : memref<16x128xf32, #tpu.memory_space<vmem>>, vector<16x128xf32>
    %76 = arith.addf %75, %74 : vector<16x128xf32>
    %cst_62 = arith.constant 1.000000e+00 : f32
    %77 = vector.broadcast %cst_62 : f32 to vector<16x128xf32>
    %78 = arith.cmpf oge, %76, %77 : vector<16x128xf32>
    %cst_63 = arith.constant 0.000000e+00 : f32
    %79 = vector.broadcast %cst_63 : f32 to vector<16x128xf32>
    %80 = arith.select %78, %79, %76 : vector<16x128xi1>, vector<16x128xf32>
    %c0_64 = arith.constant 0 : index
    %c0_65 = arith.constant 0 : index
    %81 = vector.load %arg9[%c0_64, %c0_65] : memref<16x128xf32, #tpu.memory_space<vmem>>, vector<16x128xf32>
    tpu.vector_store %arg9[%c0_64, %c0_65], %80 {strides = array<i32>} : memref<16x128xf32, #tpu.memory_space<vmem>>, vector<16x128xf32>,
    %cst_66 = arith.constant 1.000000e+00 : f32
    %cst_67 = arith.constant 0.000000e+00 : f32
    %82 = vector.broadcast %cst_66 : f32 to vector<16x128xf32>
    %83 = vector.broadcast %cst_67 : f32 to vector<16x128xf32>
    %84 = arith.select %78, %82, %83 : vector<16x128xi1>, vector<16x128xf32>
    %c0_68 = arith.constant 0 : index
    %c0_69 = arith.constant 0 : index
    %85 = vector.load %arg6[%c0_68, %c0_69] : memref<16x128xf32, #tpu.memory_space<vmem>>, vector<16x128xf32>
    %86 = arith.addf %85, %84 : vector<16x128xf32>
    %c0_70 = arith.constant 0 : index
    %c0_71 = arith.constant 0 : index
    %87 = vector.load %arg6[%c0_70, %c0_71] : memref<16x128xf32, #tpu.memory_space<vmem>>, vector<16x128xf32>
    tpu.vector_store %arg6[%c0_70, %c0_71], %86 {strides = array<i32>} : memref<16x128xf32, #tpu.memory_space<vmem>>, vector<16x128xf32>,
    %c2_i32 = arith.constant 2 : i32
    %88 = arith.index_cast %c2_i32 : i32 to index
    %c0_72 = arith.constant 0 : index
    %c0_73 = arith.constant 0 : index
    %89 = vector.load %arg2[%88, %c0_72, %c0_73] : memref<16x8x128xf32, #tpu.memory_space<vmem>>, vector<1x8x128xf32>
    %90 = vector.shape_cast %89 : vector<1x8x128xf32> to vector<8x128xf32>
    %cst_74 = arith.constant dense<0.000000e+00> : vector<16x128xf32>
    %91 = tpu.matmul %3, %90, %cst_74 {dimension_numbers = #tpu.dot_dimension_numbers<[1], [0], [0], [1], [0, 0, 1, 1], [], []>} : vector<16x8xf32>, vector<8x128xf32>, vector<16x128xf32> -> vector<16x128xf32>
    %c0_75 = arith.constant 0 : index
    %c0_76 = arith.constant 0 : index
    %92 = vector.load %arg7[%c0_75, %c0_76] : memref<16x128xf32, #tpu.memory_space<vmem>>, vector<16x128xf32>
    %93 = arith.addf %92, %91 : vector<16x128xf32>
    %cst_77 = arith.constant 1.000000e+00 : f32
    %94 = vector.broadcast %cst_77 : f32 to vector<16x128xf32>
    %95 = arith.cmpf oge, %93, %94 : vector<16x128xf32>
    %cst_78 = arith.constant 0.000000e+00 : f32
    %96 = vector.broadcast %cst_78 : f32 to vector<16x128xf32>
    %97 = arith.select %95, %96, %93 : vector<16x128xi1>, vector<16x128xf32>
    %c0_79 = arith.constant 0 : index
    %c0_80 = arith.constant 0 : index
    %98 = vector.load %arg7[%c0_79, %c0_80] : memref<16x128xf32, #tpu.memory_space<vmem>>, vector<16x128xf32>
    tpu.vector_store %arg7[%c0_79, %c0_80], %97 {strides = array<i32>} : memref<16x128xf32, #tpu.memory_space<vmem>>, vector<16x128xf32>,
    %cst_81 = arith.constant 1.000000e+00 : f32
    %cst_82 = arith.constant 0.000000e+00 : f32
    %99 = vector.broadcast %cst_81 : f32 to vector<16x128xf32>
    %100 = vector.broadcast %cst_82 : f32 to vector<16x128xf32>
    %101 = arith.select %95, %99, %100 : vector<16x128xi1>, vector<16x128xf32>
    %102 = arith.truncf %101 : vector<16x128xf32> to vector<16x128xbf16>
    %cst_83 = arith.constant dense<0.000000e+00> : vector<32x128xf32>
    %103 = tpu.matmul %4, %102, %cst_83 {dimension_numbers = #tpu.dot_dimension_numbers<[1], [0], [0], [1], [0, 0, 1, 1], [], []>} : vector<32x16xbf16>, vector<16x128xbf16>, vector<32x128xf32> -> vector<32x128xf32>
    %c0_84 = arith.constant 0 : index
    %c0_85 = arith.constant 0 : index
    %104 = vector.load %arg8[%c0_84, %c0_85] : memref<32x128xf32, #tpu.memory_space<vmem>>, vector<32x128xf32>
    %105 = arith.addf %104, %103 : vector<32x128xf32>
    %cst_86 = arith.constant 1.000000e+00 : f32
    %106 = vector.broadcast %cst_86 : f32 to vector<32x128xf32>
    %107 = arith.cmpf oge, %105, %106 : vector<32x128xf32>
    %cst_87 = arith.constant 0.000000e+00 : f32
    %108 = vector.broadcast %cst_87 : f32 to vector<32x128xf32>
    %109 = arith.select %107, %108, %105 : vector<32x128xi1>, vector<32x128xf32>
    %c0_88 = arith.constant 0 : index
    %c0_89 = arith.constant 0 : index
    %110 = vector.load %arg8[%c0_88, %c0_89] : memref<32x128xf32, #tpu.memory_space<vmem>>, vector<32x128xf32>
    tpu.vector_store %arg8[%c0_88, %c0_89], %109 {strides = array<i32>} : memref<32x128xf32, #tpu.memory_space<vmem>>, vector<32x128xf32>,
    %cst_90 = arith.constant 1.000000e+00 : f32
    %cst_91 = arith.constant 0.000000e+00 : f32
    %111 = vector.broadcast %cst_90 : f32 to vector<32x128xf32>
    %112 = vector.broadcast %cst_91 : f32 to vector<32x128xf32>
    %113 = arith.select %107, %111, %112 : vector<32x128xi1>, vector<32x128xf32>
    %114 = arith.truncf %113 : vector<32x128xf32> to vector<32x128xbf16>
    %cst_92 = arith.constant dense<0.000000e+00> : vector<16x128xf32>
    %115 = tpu.matmul %5, %114, %cst_92 {dimension_numbers = #tpu.dot_dimension_numbers<[1], [0], [0], [1], [0, 0, 1, 1], [], []>} : vector<16x32xbf16>, vector<32x128xbf16>, vector<16x128xf32> -> vector<16x128xf32>
    %c0_93 = arith.constant 0 : index
    %c0_94 = arith.constant 0 : index
    %116 = vector.load %arg9[%c0_93, %c0_94] : memref<16x128xf32, #tpu.memory_space<vmem>>, vector<16x128xf32>
    %117 = arith.addf %116, %115 : vector<16x128xf32>
    %cst_95 = arith.constant 1.000000e+00 : f32
    %118 = vector.broadcast %cst_95 : f32 to vector<16x128xf32>
    %119 = arith.cmpf oge, %117, %118 : vector<16x128xf32>
    %cst_96 = arith.constant 0.000000e+00 : f32
    %120 = vector.broadcast %cst_96 : f32 to vector<16x128xf32>
    %121 = arith.select %119, %120, %117 : vector<16x128xi1>, vector<16x128xf32>
    %c0_97 = arith.constant 0 : index
    %c0_98 = arith.constant 0 : index
    %122 = vector.load %arg9[%c0_97, %c0_98] : memref<16x128xf32, #tpu.memory_space<vmem>>, vector<16x128xf32>
    tpu.vector_store %arg9[%c0_97, %c0_98], %121 {strides = array<i32>} : memref<16x128xf32, #tpu.memory_space<vmem>>, vector<16x128xf32>,
    %cst_99 = arith.constant 1.000000e+00 : f32
    %cst_100 = arith.constant 0.000000e+00 : f32
    %123 = vector.broadcast %cst_99 : f32 to vector<16x128xf32>
    %124 = vector.broadcast %cst_100 : f32 to vector<16x128xf32>
    %125 = arith.select %119, %123, %124 : vector<16x128xi1>, vector<16x128xf32>
    %c0_101 = arith.constant 0 : index
    %c0_102 = arith.constant 0 : index
    %126 = vector.load %arg6[%c0_101, %c0_102] : memref<16x128xf32, #tpu.memory_space<vmem>>, vector<16x128xf32>
    %127 = arith.addf %126, %125 : vector<16x128xf32>
    %c0_103 = arith.constant 0 : index
    %c0_104 = arith.constant 0 : index
    %128 = vector.load %arg6[%c0_103, %c0_104] : memref<16x128xf32, #tpu.memory_space<vmem>>, vector<16x128xf32>
    tpu.vector_store %arg6[%c0_103, %c0_104], %127 {strides = array<i32>} : memref<16x128xf32, #tpu.memory_space<vmem>>, vector<16x128xf32>,
    %c3_i32 = arith.constant 3 : i32
    %129 = arith.index_cast %c3_i32 : i32 to index
    %c0_105 = arith.constant 0 : index
    %c0_106 = arith.constant 0 : index
    %130 = vector.load %arg2[%129, %c0_105, %c0_106] : memref<16x8x128xf32, #tpu.memory_space<vmem>>, vector<1x8x128xf32>
    %131 = vector.shape_cast %130 : vector<1x8x128xf32> to vector<8x128xf32>
    %cst_107 = arith.constant dense<0.000000e+00> : vector<16x128xf32>
    %132 = tpu.matmul %3, %131, %cst_107 {dimension_numbers = #tpu.dot_dimension_numbers<[1], [0], [0], [1], [0, 0, 1, 1], [], []>} : vector<16x8xf32>, vector<8x128xf32>, vector<16x128xf32> -> vector<16x128xf32>
    %c0_108 = arith.constant 0 : index
    %c0_109 = arith.constant 0 : index
    %133 = vector.load %arg7[%c0_108, %c0_109] : memref<16x128xf32, #tpu.memory_space<vmem>>, vector<16x128xf32>
    %134 = arith.addf %133, %132 : vector<16x128xf32>
    %cst_110 = arith.constant 1.000000e+00 : f32
    %135 = vector.broadcast %cst_110 : f32 to vector<16x128xf32>
    %136 = arith.cmpf oge, %134, %135 : vector<16x128xf32>
    %cst_111 = arith.constant 0.000000e+00 : f32
    %137 = vector.broadcast %cst_111 : f32 to vector<16x128xf32>
    %138 = arith.select %136, %137, %134 : vector<16x128xi1>, vector<16x128xf32>
    %c0_112 = arith.constant 0 : index
    %c0_113 = arith.constant 0 : index
    %139 = vector.load %arg7[%c0_112, %c0_113] : memref<16x128xf32, #tpu.memory_space<vmem>>, vector<16x128xf32>
    tpu.vector_store %arg7[%c0_112, %c0_113], %138 {strides = array<i32>} : memref<16x128xf32, #tpu.memory_space<vmem>>, vector<16x128xf32>,
    %cst_114 = arith.constant 1.000000e+00 : f32
    %cst_115 = arith.constant 0.000000e+00 : f32
    %140 = vector.broadcast %cst_114 : f32 to vector<16x128xf32>
    %141 = vector.broadcast %cst_115 : f32 to vector<16x128xf32>
    %142 = arith.select %136, %140, %141 : vector<16x128xi1>, vector<16x128xf32>
    %143 = arith.truncf %142 : vector<16x128xf32> to vector<16x128xbf16>
    %cst_116 = arith.constant dense<0.000000e+00> : vector<32x128xf32>
    %144 = tpu.matmul %4, %143, %cst_116 {dimension_numbers = #tpu.dot_dimension_numbers<[1], [0], [0], [1], [0, 0, 1, 1], [], []>} : vector<32x16xbf16>, vector<16x128xbf16>, vector<32x128xf32> -> vector<32x128xf32>
    %c0_117 = arith.constant 0 : index
    %c0_118 = arith.constant 0 : index
    %145 = vector.load %arg8[%c0_117, %c0_118] : memref<32x128xf32, #tpu.memory_space<vmem>>, vector<32x128xf32>
    %146 = arith.addf %145, %144 : vector<32x128xf32>
    %cst_119 = arith.constant 1.000000e+00 : f32
    %147 = vector.broadcast %cst_119 : f32 to vector<32x128xf32>
    %148 = arith.cmpf oge, %146, %147 : vector<32x128xf32>
    %cst_120 = arith.constant 0.000000e+00 : f32
    %149 = vector.broadcast %cst_120 : f32 to vector<32x128xf32>
    %150 = arith.select %148, %149, %146 : vector<32x128xi1>, vector<32x128xf32>
    %c0_121 = arith.constant 0 : index
    %c0_122 = arith.constant 0 : index
    %151 = vector.load %arg8[%c0_121, %c0_122] : memref<32x128xf32, #tpu.memory_space<vmem>>, vector<32x128xf32>
    tpu.vector_store %arg8[%c0_121, %c0_122], %150 {strides = array<i32>} : memref<32x128xf32, #tpu.memory_space<vmem>>, vector<32x128xf32>,
    %cst_123 = arith.constant 1.000000e+00 : f32
    %cst_124 = arith.constant 0.000000e+00 : f32
    %152 = vector.broadcast %cst_123 : f32 to vector<32x128xf32>
    %153 = vector.broadcast %cst_124 : f32 to vector<32x128xf32>
    %154 = arith.select %148, %152, %153 : vector<32x128xi1>, vector<32x128xf32>
    %155 = arith.truncf %154 : vector<32x128xf32> to vector<32x128xbf16>
    %cst_125 = arith.constant dense<0.000000e+00> : vector<16x128xf32>
    %156 = tpu.matmul %5, %155, %cst_125 {dimension_numbers = #tpu.dot_dimension_numbers<[1], [0], [0], [1], [0, 0, 1, 1], [], []>} : vector<16x32xbf16>, vector<32x128xbf16>, vector<16x128xf32> -> vector<16x128xf32>
    %c0_126 = arith.constant 0 : index
    %c0_127 = arith.constant 0 : index
    %157 = vector.load %arg9[%c0_126, %c0_127] : memref<16x128xf32, #tpu.memory_space<vmem>>, vector<16x128xf32>
    %158 = arith.addf %157, %156 : vector<16x128xf32>
    %cst_128 = arith.constant 1.000000e+00 : f32
    %159 = vector.broadcast %cst_128 : f32 to vector<16x128xf32>
    %160 = arith.cmpf oge, %158, %159 : vector<16x128xf32>
    %cst_129 = arith.constant 0.000000e+00 : f32
    %161 = vector.broadcast %cst_129 : f32 to vector<16x128xf32>
    %162 = arith.select %160, %161, %158 : vector<16x128xi1>, vector<16x128xf32>
    %c0_130 = arith.constant 0 : index
    %c0_131 = arith.constant 0 : index
    %163 = vector.load %arg9[%c0_130, %c0_131] : memref<16x128xf32, #tpu.memory_space<vmem>>, vector<16x128xf32>
    tpu.vector_store %arg9[%c0_130, %c0_131], %162 {strides = array<i32>} : memref<16x128xf32, #tpu.memory_space<vmem>>, vector<16x128xf32>,
    %cst_132 = arith.constant 1.000000e+00 : f32
    %cst_133 = arith.constant 0.000000e+00 : f32
    %164 = vector.broadcast %cst_132 : f32 to vector<16x128xf32>
    %165 = vector.broadcast %cst_133 : f32 to vector<16x128xf32>
    %166 = arith.select %160, %164, %165 : vector<16x128xi1>, vector<16x128xf32>
    %c0_134 = arith.constant 0 : index
    %c0_135 = arith.constant 0 : index
    %167 = vector.load %arg6[%c0_134, %c0_135] : memref<16x128xf32, #tpu.memory_space<vmem>>, vector<16x128xf32>
    %168 = arith.addf %167, %166 : vector<16x128xf32>
    %c0_136 = arith.constant 0 : index
    %c0_137 = arith.constant 0 : index
    %169 = vector.load %arg6[%c0_136, %c0_137] : memref<16x128xf32, #tpu.memory_space<vmem>>, vector<16x128xf32>
    tpu.vector_store %arg6[%c0_136, %c0_137], %168 {strides = array<i32>} : memref<16x128xf32, #tpu.memory_space<vmem>>, vector<16x128xf32>,
    %c4_i32 = arith.constant 4 : i32
    %170 = arith.index_cast %c4_i32 : i32 to index
    %c0_138 = arith.constant 0 : index
    %c0_139 = arith.constant 0 : index
    %171 = vector.load %arg2[%170, %c0_138, %c0_139] : memref<16x8x128xf32, #tpu.memory_space<vmem>>, vector<1x8x128xf32>
    %172 = vector.shape_cast %171 : vector<1x8x128xf32> to vector<8x128xf32>
    %cst_140 = arith.constant dense<0.000000e+00> : vector<16x128xf32>
    %173 = tpu.matmul %3, %172, %cst_140 {dimension_numbers = #tpu.dot_dimension_numbers<[1], [0], [0], [1], [0, 0, 1, 1], [], []>} : vector<16x8xf32>, vector<8x128xf32>, vector<16x128xf32> -> vector<16x128xf32>
    %c0_141 = arith.constant 0 : index
    %c0_142 = arith.constant 0 : index
    %174 = vector.load %arg7[%c0_141, %c0_142] : memref<16x128xf32, #tpu.memory_space<vmem>>, vector<16x128xf32>
    %175 = arith.addf %174, %173 : vector<16x128xf32>
    %cst_143 = arith.constant 1.000000e+00 : f32
    %176 = vector.broadcast %cst_143 : f32 to vector<16x128xf32>
    %177 = arith.cmpf oge, %175, %176 : vector<16x128xf32>
    %cst_144 = arith.constant 0.000000e+00 : f32
    %178 = vector.broadcast %cst_144 : f32 to vector<16x128xf32>
    %179 = arith.select %177, %178, %175 : vector<16x128xi1>, vector<16x128xf32>
    %c0_145 = arith.constant 0 : index
    %c0_146 = arith.constant 0 : index
    %180 = vector.load %arg7[%c0_145, %c0_146] : memref<16x128xf32, #tpu.memory_space<vmem>>, vector<16x128xf32>
    tpu.vector_store %arg7[%c0_145, %c0_146], %179 {strides = array<i32>} : memref<16x128xf32, #tpu.memory_space<vmem>>, vector<16x128xf32>,
    %cst_147 = arith.constant 1.000000e+00 : f32
    %cst_148 = arith.constant 0.000000e+00 : f32
    %181 = vector.broadcast %cst_147 : f32 to vector<16x128xf32>
    %182 = vector.broadcast %cst_148 : f32 to vector<16x128xf32>
    %183 = arith.select %177, %181, %182 : vector<16x128xi1>, vector<16x128xf32>
    %184 = arith.truncf %183 : vector<16x128xf32> to vector<16x128xbf16>
    %cst_149 = arith.constant dense<0.000000e+00> : vector<32x128xf32>
    %185 = tpu.matmul %4, %184, %cst_149 {dimension_numbers = #tpu.dot_dimension_numbers<[1], [0], [0], [1], [0, 0, 1, 1], [], []>} : vector<32x16xbf16>, vector<16x128xbf16>, vector<32x128xf32> -> vector<32x128xf32>
    %c0_150 = arith.constant 0 : index
    %c0_151 = arith.constant 0 : index
    %186 = vector.load %arg8[%c0_150, %c0_151] : memref<32x128xf32, #tpu.memory_space<vmem>>, vector<32x128xf32>
    %187 = arith.addf %186, %185 : vector<32x128xf32>
    %cst_152 = arith.constant 1.000000e+00 : f32
    %188 = vector.broadcast %cst_152 : f32 to vector<32x128xf32>
    %189 = arith.cmpf oge, %187, %188 : vector<32x128xf32>
    %cst_153 = arith.constant 0.000000e+00 : f32
    %190 = vector.broadcast %cst_153 : f32 to vector<32x128xf32>
    %191 = arith.select %189, %190, %187 : vector<32x128xi1>, vector<32x128xf32>
    %c0_154 = arith.constant 0 : index
    %c0_155 = arith.constant 0 : index
    %192 = vector.load %arg8[%c0_154, %c0_155] : memref<32x128xf32, #tpu.memory_space<vmem>>, vector<32x128xf32>
    tpu.vector_store %arg8[%c0_154, %c0_155], %191 {strides = array<i32>} : memref<32x128xf32, #tpu.memory_space<vmem>>, vector<32x128xf32>,
    %cst_156 = arith.constant 1.000000e+00 : f32
    %cst_157 = arith.constant 0.000000e+00 : f32
    %193 = vector.broadcast %cst_156 : f32 to vector<32x128xf32>
    %194 = vector.broadcast %cst_157 : f32 to vector<32x128xf32>
    %195 = arith.select %189, %193, %194 : vector<32x128xi1>, vector<32x128xf32>
    %196 = arith.truncf %195 : vector<32x128xf32> to vector<32x128xbf16>
    %cst_158 = arith.constant dense<0.000000e+00> : vector<16x128xf32>
    %197 = tpu.matmul %5, %196, %cst_158 {dimension_numbers = #tpu.dot_dimension_numbers<[1], [0], [0], [1], [0, 0, 1, 1], [], []>} : vector<16x32xbf16>, vector<32x128xbf16>, vector<16x128xf32> -> vector<16x128xf32>
    %c0_159 = arith.constant 0 : index
    %c0_160 = arith.constant 0 : index
    %198 = vector.load %arg9[%c0_159, %c0_160] : memref<16x128xf32, #tpu.memory_space<vmem>>, vector<16x128xf32>
    %199 = arith.addf %198, %197 : vector<16x128xf32>
    %cst_161 = arith.constant 1.000000e+00 : f32
    %200 = vector.broadcast %cst_161 : f32 to vector<16x128xf32>
    %201 = arith.cmpf oge, %199, %200 : vector<16x128xf32>
    %cst_162 = arith.constant 0.000000e+00 : f32
    %202 = vector.broadcast %cst_162 : f32 to vector<16x128xf32>
    %203 = arith.select %201, %202, %199 : vector<16x128xi1>, vector<16x128xf32>
    %c0_163 = arith.constant 0 : index
    %c0_164 = arith.constant 0 : index
    %204 = vector.load %arg9[%c0_163, %c0_164] : memref<16x128xf32, #tpu.memory_space<vmem>>, vector<16x128xf32>
    tpu.vector_store %arg9[%c0_163, %c0_164], %203 {strides = array<i32>} : memref<16x128xf32, #tpu.memory_space<vmem>>, vector<16x128xf32>,
    %cst_165 = arith.constant 1.000000e+00 : f32
    %cst_166 = arith.constant 0.000000e+00 : f32
    %205 = vector.broadcast %cst_165 : f32 to vector<16x128xf32>
    %206 = vector.broadcast %cst_166 : f32 to vector<16x128xf32>
    %207 = arith.select %201, %205, %206 : vector<16x128xi1>, vector<16x128xf32>
    %c0_167 = arith.constant 0 : index
    %c0_168 = arith.constant 0 : index
    %208 = vector.load %arg6[%c0_167, %c0_168] : memref<16x128xf32, #tpu.memory_space<vmem>>, vector<16x128xf32>
    %209 = arith.addf %208, %207 : vector<16x128xf32>
    %c0_169 = arith.constant 0 : index
    %c0_170 = arith.constant 0 : index
    %210 = vector.load %arg6[%c0_169, %c0_170] : memref<16x128xf32, #tpu.memory_space<vmem>>, vector<16x128xf32>
    tpu.vector_store %arg6[%c0_169, %c0_170], %209 {strides = array<i32>} : memref<16x128xf32, #tpu.memory_space<vmem>>, vector<16x128xf32>,
    %c5_i32 = arith.constant 5 : i32
    %211 = arith.index_cast %c5_i32 : i32 to index
    %c0_171 = arith.constant 0 : index
    %c0_172 = arith.constant 0 : index
    %212 = vector.load %arg2[%211, %c0_171, %c0_172] : memref<16x8x128xf32, #tpu.memory_space<vmem>>, vector<1x8x128xf32>
    %213 = vector.shape_cast %212 : vector<1x8x128xf32> to vector<8x128xf32>
    %cst_173 = arith.constant dense<0.000000e+00> : vector<16x128xf32>
    %214 = tpu.matmul %3, %213, %cst_173 {dimension_numbers = #tpu.dot_dimension_numbers<[1], [0], [0], [1], [0, 0, 1, 1], [], []>} : vector<16x8xf32>, vector<8x128xf32>, vector<16x128xf32> -> vector<16x128xf32>
    %c0_174 = arith.constant 0 : index
    %c0_175 = arith.constant 0 : index
    %215 = vector.load %arg7[%c0_174, %c0_175] : memref<16x128xf32, #tpu.memory_space<vmem>>, vector<16x128xf32>
    %216 = arith.addf %215, %214 : vector<16x128xf32>
    %cst_176 = arith.constant 1.000000e+00 : f32
    %217 = vector.broadcast %cst_176 : f32 to vector<16x128xf32>
    %218 = arith.cmpf oge, %216, %217 : vector<16x128xf32>
    %cst_177 = arith.constant 0.000000e+00 : f32
    %219 = vector.broadcast %cst_177 : f32 to vector<16x128xf32>
    %220 = arith.select %218, %219, %216 : vector<16x128xi1>, vector<16x128xf32>
    %c0_178 = arith.constant 0 : index
    %c0_179 = arith.constant 0 : index
    %221 = vector.load %arg7[%c0_178, %c0_179] : memref<16x128xf32, #tpu.memory_space<vmem>>, vector<16x128xf32>
    tpu.vector_store %arg7[%c0_178, %c0_179], %220 {strides = array<i32>} : memref<16x128xf32, #tpu.memory_space<vmem>>, vector<16x128xf32>,
    %cst_180 = arith.constant 1.000000e+00 : f32
    %cst_181 = arith.constant 0.000000e+00 : f32
    %222 = vector.broadcast %cst_180 : f32 to vector<16x128xf32>
    %223 = vector.broadcast %cst_181 : f32 to vector<16x128xf32>
    %224 = arith.select %218, %222, %223 : vector<16x128xi1>, vector<16x128xf32>
    %225 = arith.truncf %224 : vector<16x128xf32> to vector<16x128xbf16>
    %cst_182 = arith.constant dense<0.000000e+00> : vector<32x128xf32>
    %226 = tpu.matmul %4, %225, %cst_182 {dimension_numbers = #tpu.dot_dimension_numbers<[1], [0], [0], [1], [0, 0, 1, 1], [], []>} : vector<32x16xbf16>, vector<16x128xbf16>, vector<32x128xf32> -> vector<32x128xf32>
    %c0_183 = arith.constant 0 : index
    %c0_184 = arith.constant 0 : index
    %227 = vector.load %arg8[%c0_183, %c0_184] : memref<32x128xf32, #tpu.memory_space<vmem>>, vector<32x128xf32>
    %228 = arith.addf %227, %226 : vector<32x128xf32>
    %cst_185 = arith.constant 1.000000e+00 : f32
    %229 = vector.broadcast %cst_185 : f32 to vector<32x128xf32>
    %230 = arith.cmpf oge, %228, %229 : vector<32x128xf32>
    %cst_186 = arith.constant 0.000000e+00 : f32
    %231 = vector.broadcast %cst_186 : f32 to vector<32x128xf32>
    %232 = arith.select %230, %231, %228 : vector<32x128xi1>, vector<32x128xf32>
    %c0_187 = arith.constant 0 : index
    %c0_188 = arith.constant 0 : index
    %233 = vector.load %arg8[%c0_187, %c0_188] : memref<32x128xf32, #tpu.memory_space<vmem>>, vector<32x128xf32>
    tpu.vector_store %arg8[%c0_187, %c0_188], %232 {strides = array<i32>} : memref<32x128xf32, #tpu.memory_space<vmem>>, vector<32x128xf32>,
    %cst_189 = arith.constant 1.000000e+00 : f32
    %cst_190 = arith.constant 0.000000e+00 : f32
    %234 = vector.broadcast %cst_189 : f32 to vector<32x128xf32>
    %235 = vector.broadcast %cst_190 : f32 to vector<32x128xf32>
    %236 = arith.select %230, %234, %235 : vector<32x128xi1>, vector<32x128xf32>
    %237 = arith.truncf %236 : vector<32x128xf32> to vector<32x128xbf16>
    %cst_191 = arith.constant dense<0.000000e+00> : vector<16x128xf32>
    %238 = tpu.matmul %5, %237, %cst_191 {dimension_numbers = #tpu.dot_dimension_numbers<[1], [0], [0], [1], [0, 0, 1, 1], [], []>} : vector<16x32xbf16>, vector<32x128xbf16>, vector<16x128xf32> -> vector<16x128xf32>
    %c0_192 = arith.constant 0 : index
    %c0_193 = arith.constant 0 : index
    %239 = vector.load %arg9[%c0_192, %c0_193] : memref<16x128xf32, #tpu.memory_space<vmem>>, vector<16x128xf32>
    %240 = arith.addf %239, %238 : vector<16x128xf32>
    %cst_194 = arith.constant 1.000000e+00 : f32
    %241 = vector.broadcast %cst_194 : f32 to vector<16x128xf32>
    %242 = arith.cmpf oge, %240, %241 : vector<16x128xf32>
    %cst_195 = arith.constant 0.000000e+00 : f32
    %243 = vector.broadcast %cst_195 : f32 to vector<16x128xf32>
    %244 = arith.select %242, %243, %240 : vector<16x128xi1>, vector<16x128xf32>
    %c0_196 = arith.constant 0 : index
    %c0_197 = arith.constant 0 : index
    %245 = vector.load %arg9[%c0_196, %c0_197] : memref<16x128xf32, #tpu.memory_space<vmem>>, vector<16x128xf32>
    tpu.vector_store %arg9[%c0_196, %c0_197], %244 {strides = array<i32>} : memref<16x128xf32, #tpu.memory_space<vmem>>, vector<16x128xf32>,
    %cst_198 = arith.constant 1.000000e+00 : f32
    %cst_199 = arith.constant 0.000000e+00 : f32
    %246 = vector.broadcast %cst_198 : f32 to vector<16x128xf32>
    %247 = vector.broadcast %cst_199 : f32 to vector<16x128xf32>
    %248 = arith.select %242, %246, %247 : vector<16x128xi1>, vector<16x128xf32>
    %c0_200 = arith.constant 0 : index
    %c0_201 = arith.constant 0 : index
    %249 = vector.load %arg6[%c0_200, %c0_201] : memref<16x128xf32, #tpu.memory_space<vmem>>, vector<16x128xf32>
    %250 = arith.addf %249, %248 : vector<16x128xf32>
    %c0_202 = arith.constant 0 : index
    %c0_203 = arith.constant 0 : index
    %251 = vector.load %arg6[%c0_202, %c0_203] : memref<16x128xf32, #tpu.memory_space<vmem>>, vector<16x128xf32>
    tpu.vector_store %arg6[%c0_202, %c0_203], %250 {strides = array<i32>} : memref<16x128xf32, #tpu.memory_space<vmem>>, vector<16x128xf32>,
    %c6_i32 = arith.constant 6 : i32
    %252 = arith.index_cast %c6_i32 : i32 to index
    %c0_204 = arith.constant 0 : index
    %c0_205 = arith.constant 0 : index
    %253 = vector.load %arg2[%252, %c0_204, %c0_205] : memref<16x8x128xf32, #tpu.memory_space<vmem>>, vector<1x8x128xf32>
    %254 = vector.shape_cast %253 : vector<1x8x128xf32> to vector<8x128xf32>
    %cst_206 = arith.constant dense<0.000000e+00> : vector<16x128xf32>
    %255 = tpu.matmul %3, %254, %cst_206 {dimension_numbers = #tpu.dot_dimension_numbers<[1], [0], [0], [1], [0, 0, 1, 1], [], []>} : vector<16x8xf32>, vector<8x128xf32>, vector<16x128xf32> -> vector<16x128xf32>
    %c0_207 = arith.constant 0 : index
    %c0_208 = arith.constant 0 : index
    %256 = vector.load %arg7[%c0_207, %c0_208] : memref<16x128xf32, #tpu.memory_space<vmem>>, vector<16x128xf32>
    %257 = arith.addf %256, %255 : vector<16x128xf32>
    %cst_209 = arith.constant 1.000000e+00 : f32
    %258 = vector.broadcast %cst_209 : f32 to vector<16x128xf32>
    %259 = arith.cmpf oge, %257, %258 : vector<16x128xf32>
    %cst_210 = arith.constant 0.000000e+00 : f32
    %260 = vector.broadcast %cst_210 : f32 to vector<16x128xf32>
    %261 = arith.select %259, %260, %257 : vector<16x128xi1>, vector<16x128xf32>
    %c0_211 = arith.constant 0 : index
    %c0_212 = arith.constant 0 : index
    %262 = vector.load %arg7[%c0_211, %c0_212] : memref<16x128xf32, #tpu.memory_space<vmem>>, vector<16x128xf32>
    tpu.vector_store %arg7[%c0_211, %c0_212], %261 {strides = array<i32>} : memref<16x128xf32, #tpu.memory_space<vmem>>, vector<16x128xf32>,
    %cst_213 = arith.constant 1.000000e+00 : f32
    %cst_214 = arith.constant 0.000000e+00 : f32
    %263 = vector.broadcast %cst_213 : f32 to vector<16x128xf32>
    %264 = vector.broadcast %cst_214 : f32 to vector<16x128xf32>
    %265 = arith.select %259, %263, %264 : vector<16x128xi1>, vector<16x128xf32>
    %266 = arith.truncf %265 : vector<16x128xf32> to vector<16x128xbf16>
    %cst_215 = arith.constant dense<0.000000e+00> : vector<32x128xf32>
    %267 = tpu.matmul %4, %266, %cst_215 {dimension_numbers = #tpu.dot_dimension_numbers<[1], [0], [0], [1], [0, 0, 1, 1], [], []>} : vector<32x16xbf16>, vector<16x128xbf16>, vector<32x128xf32> -> vector<32x128xf32>
    %c0_216 = arith.constant 0 : index
    %c0_217 = arith.constant 0 : index
    %268 = vector.load %arg8[%c0_216, %c0_217] : memref<32x128xf32, #tpu.memory_space<vmem>>, vector<32x128xf32>
    %269 = arith.addf %268, %267 : vector<32x128xf32>
    %cst_218 = arith.constant 1.000000e+00 : f32
    %270 = vector.broadcast %cst_218 : f32 to vector<32x128xf32>
    %271 = arith.cmpf oge, %269, %270 : vector<32x128xf32>
    %cst_219 = arith.constant 0.000000e+00 : f32
    %272 = vector.broadcast %cst_219 : f32 to vector<32x128xf32>
    %273 = arith.select %271, %272, %269 : vector<32x128xi1>, vector<32x128xf32>
    %c0_220 = arith.constant 0 : index
    %c0_221 = arith.constant 0 : index
    %274 = vector.load %arg8[%c0_220, %c0_221] : memref<32x128xf32, #tpu.memory_space<vmem>>, vector<32x128xf32>
    tpu.vector_store %arg8[%c0_220, %c0_221], %273 {strides = array<i32>} : memref<32x128xf32, #tpu.memory_space<vmem>>, vector<32x128xf32>,
    %cst_222 = arith.constant 1.000000e+00 : f32
    %cst_223 = arith.constant 0.000000e+00 : f32
    %275 = vector.broadcast %cst_222 : f32 to vector<32x128xf32>
    %276 = vector.broadcast %cst_223 : f32 to vector<32x128xf32>
    %277 = arith.select %271, %275, %276 : vector<32x128xi1>, vector<32x128xf32>
    %278 = arith.truncf %277 : vector<32x128xf32> to vector<32x128xbf16>
    %cst_224 = arith.constant dense<0.000000e+00> : vector<16x128xf32>
    %279 = tpu.matmul %5, %278, %cst_224 {dimension_numbers = #tpu.dot_dimension_numbers<[1], [0], [0], [1], [0, 0, 1, 1], [], []>} : vector<16x32xbf16>, vector<32x128xbf16>, vector<16x128xf32> -> vector<16x128xf32>
    %c0_225 = arith.constant 0 : index
    %c0_226 = arith.constant 0 : index
    %280 = vector.load %arg9[%c0_225, %c0_226] : memref<16x128xf32, #tpu.memory_space<vmem>>, vector<16x128xf32>
    %281 = arith.addf %280, %279 : vector<16x128xf32>
    %cst_227 = arith.constant 1.000000e+00 : f32
    %282 = vector.broadcast %cst_227 : f32 to vector<16x128xf32>
    %283 = arith.cmpf oge, %281, %282 : vector<16x128xf32>
    %cst_228 = arith.constant 0.000000e+00 : f32
    %284 = vector.broadcast %cst_228 : f32 to vector<16x128xf32>
    %285 = arith.select %283, %284, %281 : vector<16x128xi1>, vector<16x128xf32>
    %c0_229 = arith.constant 0 : index
    %c0_230 = arith.constant 0 : index
    %286 = vector.load %arg9[%c0_229, %c0_230] : memref<16x128xf32, #tpu.memory_space<vmem>>, vector<16x128xf32>
    tpu.vector_store %arg9[%c0_229, %c0_230], %285 {strides = array<i32>} : memref<16x128xf32, #tpu.memory_space<vmem>>, vector<16x128xf32>,
    %cst_231 = arith.constant 1.000000e+00 : f32
    %cst_232 = arith.constant 0.000000e+00 : f32
    %287 = vector.broadcast %cst_231 : f32 to vector<16x128xf32>
    %288 = vector.broadcast %cst_232 : f32 to vector<16x128xf32>
    %289 = arith.select %283, %287, %288 : vector<16x128xi1>, vector<16x128xf32>
    %c0_233 = arith.constant 0 : index
    %c0_234 = arith.constant 0 : index
    %290 = vector.load %arg6[%c0_233, %c0_234] : memref<16x128xf32, #tpu.memory_space<vmem>>, vector<16x128xf32>
    %291 = arith.addf %290, %289 : vector<16x128xf32>
    %c0_235 = arith.constant 0 : index
    %c0_236 = arith.constant 0 : index
    %292 = vector.load %arg6[%c0_235, %c0_236] : memref<16x128xf32, #tpu.memory_space<vmem>>, vector<16x128xf32>
    tpu.vector_store %arg6[%c0_235, %c0_236], %291 {strides = array<i32>} : memref<16x128xf32, #tpu.memory_space<vmem>>, vector<16x128xf32>,
    %c7_i32 = arith.constant 7 : i32
    %293 = arith.index_cast %c7_i32 : i32 to index
    %c0_237 = arith.constant 0 : index
    %c0_238 = arith.constant 0 : index
    %294 = vector.load %arg2[%293, %c0_237, %c0_238] : memref<16x8x128xf32, #tpu.memory_space<vmem>>, vector<1x8x128xf32>
    %295 = vector.shape_cast %294 : vector<1x8x128xf32> to vector<8x128xf32>
    %cst_239 = arith.constant dense<0.000000e+00> : vector<16x128xf32>
    %296 = tpu.matmul %3, %295, %cst_239 {dimension_numbers = #tpu.dot_dimension_numbers<[1], [0], [0], [1], [0, 0, 1, 1], [], []>} : vector<16x8xf32>, vector<8x128xf32>, vector<16x128xf32> -> vector<16x128xf32>
    %c0_240 = arith.constant 0 : index
    %c0_241 = arith.constant 0 : index
    %297 = vector.load %arg7[%c0_240, %c0_241] : memref<16x128xf32, #tpu.memory_space<vmem>>, vector<16x128xf32>
    %298 = arith.addf %297, %296 : vector<16x128xf32>
    %cst_242 = arith.constant 1.000000e+00 : f32
    %299 = vector.broadcast %cst_242 : f32 to vector<16x128xf32>
    %300 = arith.cmpf oge, %298, %299 : vector<16x128xf32>
    %cst_243 = arith.constant 0.000000e+00 : f32
    %301 = vector.broadcast %cst_243 : f32 to vector<16x128xf32>
    %302 = arith.select %300, %301, %298 : vector<16x128xi1>, vector<16x128xf32>
    %c0_244 = arith.constant 0 : index
    %c0_245 = arith.constant 0 : index
    %303 = vector.load %arg7[%c0_244, %c0_245] : memref<16x128xf32, #tpu.memory_space<vmem>>, vector<16x128xf32>
    tpu.vector_store %arg7[%c0_244, %c0_245], %302 {strides = array<i32>} : memref<16x128xf32, #tpu.memory_space<vmem>>, vector<16x128xf32>,
    %cst_246 = arith.constant 1.000000e+00 : f32
    %cst_247 = arith.constant 0.000000e+00 : f32
    %304 = vector.broadcast %cst_246 : f32 to vector<16x128xf32>
    %305 = vector.broadcast %cst_247 : f32 to vector<16x128xf32>
    %306 = arith.select %300, %304, %305 : vector<16x128xi1>, vector<16x128xf32>
    %307 = arith.truncf %306 : vector<16x128xf32> to vector<16x128xbf16>
    %cst_248 = arith.constant dense<0.000000e+00> : vector<32x128xf32>
    %308 = tpu.matmul %4, %307, %cst_248 {dimension_numbers = #tpu.dot_dimension_numbers<[1], [0], [0], [1], [0, 0, 1, 1], [], []>} : vector<32x16xbf16>, vector<16x128xbf16>, vector<32x128xf32> -> vector<32x128xf32>
    %c0_249 = arith.constant 0 : index
    %c0_250 = arith.constant 0 : index
    %309 = vector.load %arg8[%c0_249, %c0_250] : memref<32x128xf32, #tpu.memory_space<vmem>>, vector<32x128xf32>
    %310 = arith.addf %309, %308 : vector<32x128xf32>
    %cst_251 = arith.constant 1.000000e+00 : f32
    %311 = vector.broadcast %cst_251 : f32 to vector<32x128xf32>
    %312 = arith.cmpf oge, %310, %311 : vector<32x128xf32>
    %cst_252 = arith.constant 0.000000e+00 : f32
    %313 = vector.broadcast %cst_252 : f32 to vector<32x128xf32>
    %314 = arith.select %312, %313, %310 : vector<32x128xi1>, vector<32x128xf32>
    %c0_253 = arith.constant 0 : index
    %c0_254 = arith.constant 0 : index
    %315 = vector.load %arg8[%c0_253, %c0_254] : memref<32x128xf32, #tpu.memory_space<vmem>>, vector<32x128xf32>
    tpu.vector_store %arg8[%c0_253, %c0_254], %314 {strides = array<i32>} : memref<32x128xf32, #tpu.memory_space<vmem>>, vector<32x128xf32>,
    %cst_255 = arith.constant 1.000000e+00 : f32
    %cst_256 = arith.constant 0.000000e+00 : f32
    %316 = vector.broadcast %cst_255 : f32 to vector<32x128xf32>
    %317 = vector.broadcast %cst_256 : f32 to vector<32x128xf32>
    %318 = arith.select %312, %316, %317 : vector<32x128xi1>, vector<32x128xf32>
    %319 = arith.truncf %318 : vector<32x128xf32> to vector<32x128xbf16>
    %cst_257 = arith.constant dense<0.000000e+00> : vector<16x128xf32>
    %320 = tpu.matmul %5, %319, %cst_257 {dimension_numbers = #tpu.dot_dimension_numbers<[1], [0], [0], [1], [0, 0, 1, 1], [], []>} : vector<16x32xbf16>, vector<32x128xbf16>, vector<16x128xf32> -> vector<16x128xf32>
    %c0_258 = arith.constant 0 : index
    %c0_259 = arith.constant 0 : index
    %321 = vector.load %arg9[%c0_258, %c0_259] : memref<16x128xf32, #tpu.memory_space<vmem>>, vector<16x128xf32>
    %322 = arith.addf %321, %320 : vector<16x128xf32>
    %cst_260 = arith.constant 1.000000e+00 : f32
    %323 = vector.broadcast %cst_260 : f32 to vector<16x128xf32>
    %324 = arith.cmpf oge, %322, %323 : vector<16x128xf32>
    %cst_261 = arith.constant 0.000000e+00 : f32
    %325 = vector.broadcast %cst_261 : f32 to vector<16x128xf32>
    %326 = arith.select %324, %325, %322 : vector<16x128xi1>, vector<16x128xf32>
    %c0_262 = arith.constant 0 : index
    %c0_263 = arith.constant 0 : index
    %327 = vector.load %arg9[%c0_262, %c0_263] : memref<16x128xf32, #tpu.memory_space<vmem>>, vector<16x128xf32>
    tpu.vector_store %arg9[%c0_262, %c0_263], %326 {strides = array<i32>} : memref<16x128xf32, #tpu.memory_space<vmem>>, vector<16x128xf32>,
    %cst_264 = arith.constant 1.000000e+00 : f32
    %cst_265 = arith.constant 0.000000e+00 : f32
    %328 = vector.broadcast %cst_264 : f32 to vector<16x128xf32>
    %329 = vector.broadcast %cst_265 : f32 to vector<16x128xf32>
    %330 = arith.select %324, %328, %329 : vector<16x128xi1>, vector<16x128xf32>
    %c0_266 = arith.constant 0 : index
    %c0_267 = arith.constant 0 : index
    %331 = vector.load %arg6[%c0_266, %c0_267] : memref<16x128xf32, #tpu.memory_space<vmem>>, vector<16x128xf32>
    %332 = arith.addf %331, %330 : vector<16x128xf32>
    %c0_268 = arith.constant 0 : index
    %c0_269 = arith.constant 0 : index
    %333 = vector.load %arg6[%c0_268, %c0_269] : memref<16x128xf32, #tpu.memory_space<vmem>>, vector<16x128xf32>
    tpu.vector_store %arg6[%c0_268, %c0_269], %332 {strides = array<i32>} : memref<16x128xf32, #tpu.memory_space<vmem>>, vector<16x128xf32>,
    %c8_i32 = arith.constant 8 : i32
    %334 = arith.index_cast %c8_i32 : i32 to index
    %c0_270 = arith.constant 0 : index
    %c0_271 = arith.constant 0 : index
    %335 = vector.load %arg2[%334, %c0_270, %c0_271] : memref<16x8x128xf32, #tpu.memory_space<vmem>>, vector<1x8x128xf32>
    %336 = vector.shape_cast %335 : vector<1x8x128xf32> to vector<8x128xf32>
    %cst_272 = arith.constant dense<0.000000e+00> : vector<16x128xf32>
    %337 = tpu.matmul %3, %336, %cst_272 {dimension_numbers = #tpu.dot_dimension_numbers<[1], [0], [0], [1], [0, 0, 1, 1], [], []>} : vector<16x8xf32>, vector<8x128xf32>, vector<16x128xf32> -> vector<16x128xf32>
    %c0_273 = arith.constant 0 : index
    %c0_274 = arith.constant 0 : index
    %338 = vector.load %arg7[%c0_273, %c0_274] : memref<16x128xf32, #tpu.memory_space<vmem>>, vector<16x128xf32>
    %339 = arith.addf %338, %337 : vector<16x128xf32>
    %cst_275 = arith.constant 1.000000e+00 : f32
    %340 = vector.broadcast %cst_275 : f32 to vector<16x128xf32>
    %341 = arith.cmpf oge, %339, %340 : vector<16x128xf32>
    %cst_276 = arith.constant 0.000000e+00 : f32
    %342 = vector.broadcast %cst_276 : f32 to vector<16x128xf32>
    %343 = arith.select %341, %342, %339 : vector<16x128xi1>, vector<16x128xf32>
    %c0_277 = arith.constant 0 : index
    %c0_278 = arith.constant 0 : index
    %344 = vector.load %arg7[%c0_277, %c0_278] : memref<16x128xf32, #tpu.memory_space<vmem>>, vector<16x128xf32>
    tpu.vector_store %arg7[%c0_277, %c0_278], %343 {strides = array<i32>} : memref<16x128xf32, #tpu.memory_space<vmem>>, vector<16x128xf32>,
    %cst_279 = arith.constant 1.000000e+00 : f32
    %cst_280 = arith.constant 0.000000e+00 : f32
    %345 = vector.broadcast %cst_279 : f32 to vector<16x128xf32>
    %346 = vector.broadcast %cst_280 : f32 to vector<16x128xf32>
    %347 = arith.select %341, %345, %346 : vector<16x128xi1>, vector<16x128xf32>
    %348 = arith.truncf %347 : vector<16x128xf32> to vector<16x128xbf16>
    %cst_281 = arith.constant dense<0.000000e+00> : vector<32x128xf32>
    %349 = tpu.matmul %4, %348, %cst_281 {dimension_numbers = #tpu.dot_dimension_numbers<[1], [0], [0], [1], [0, 0, 1, 1], [], []>} : vector<32x16xbf16>, vector<16x128xbf16>, vector<32x128xf32> -> vector<32x128xf32>
    %c0_282 = arith.constant 0 : index
    %c0_283 = arith.constant 0 : index
    %350 = vector.load %arg8[%c0_282, %c0_283] : memref<32x128xf32, #tpu.memory_space<vmem>>, vector<32x128xf32>
    %351 = arith.addf %350, %349 : vector<32x128xf32>
    %cst_284 = arith.constant 1.000000e+00 : f32
    %352 = vector.broadcast %cst_284 : f32 to vector<32x128xf32>
    %353 = arith.cmpf oge, %351, %352 : vector<32x128xf32>
    %cst_285 = arith.constant 0.000000e+00 : f32
    %354 = vector.broadcast %cst_285 : f32 to vector<32x128xf32>
    %355 = arith.select %353, %354, %351 : vector<32x128xi1>, vector<32x128xf32>
    %c0_286 = arith.constant 0 : index
    %c0_287 = arith.constant 0 : index
    %356 = vector.load %arg8[%c0_286, %c0_287] : memref<32x128xf32, #tpu.memory_space<vmem>>, vector<32x128xf32>
    tpu.vector_store %arg8[%c0_286, %c0_287], %355 {strides = array<i32>} : memref<32x128xf32, #tpu.memory_space<vmem>>, vector<32x128xf32>,
    %cst_288 = arith.constant 1.000000e+00 : f32
    %cst_289 = arith.constant 0.000000e+00 : f32
    %357 = vector.broadcast %cst_288 : f32 to vector<32x128xf32>
    %358 = vector.broadcast %cst_289 : f32 to vector<32x128xf32>
    %359 = arith.select %353, %357, %358 : vector<32x128xi1>, vector<32x128xf32>
    %360 = arith.truncf %359 : vector<32x128xf32> to vector<32x128xbf16>
    %cst_290 = arith.constant dense<0.000000e+00> : vector<16x128xf32>
    %361 = tpu.matmul %5, %360, %cst_290 {dimension_numbers = #tpu.dot_dimension_numbers<[1], [0], [0], [1], [0, 0, 1, 1], [], []>} : vector<16x32xbf16>, vector<32x128xbf16>, vector<16x128xf32> -> vector<16x128xf32>
    %c0_291 = arith.constant 0 : index
    %c0_292 = arith.constant 0 : index
    %362 = vector.load %arg9[%c0_291, %c0_292] : memref<16x128xf32, #tpu.memory_space<vmem>>, vector<16x128xf32>
    %363 = arith.addf %362, %361 : vector<16x128xf32>
    %cst_293 = arith.constant 1.000000e+00 : f32
    %364 = vector.broadcast %cst_293 : f32 to vector<16x128xf32>
    %365 = arith.cmpf oge, %363, %364 : vector<16x128xf32>
    %cst_294 = arith.constant 0.000000e+00 : f32
    %366 = vector.broadcast %cst_294 : f32 to vector<16x128xf32>
    %367 = arith.select %365, %366, %363 : vector<16x128xi1>, vector<16x128xf32>
    %c0_295 = arith.constant 0 : index
    %c0_296 = arith.constant 0 : index
    %368 = vector.load %arg9[%c0_295, %c0_296] : memref<16x128xf32, #tpu.memory_space<vmem>>, vector<16x128xf32>
    tpu.vector_store %arg9[%c0_295, %c0_296], %367 {strides = array<i32>} : memref<16x128xf32, #tpu.memory_space<vmem>>, vector<16x128xf32>,
    %cst_297 = arith.constant 1.000000e+00 : f32
    %cst_298 = arith.constant 0.000000e+00 : f32
    %369 = vector.broadcast %cst_297 : f32 to vector<16x128xf32>
    %370 = vector.broadcast %cst_298 : f32 to vector<16x128xf32>
    %371 = arith.select %365, %369, %370 : vector<16x128xi1>, vector<16x128xf32>
    %c0_299 = arith.constant 0 : index
    %c0_300 = arith.constant 0 : index
    %372 = vector.load %arg6[%c0_299, %c0_300] : memref<16x128xf32, #tpu.memory_space<vmem>>, vector<16x128xf32>
    %373 = arith.addf %372, %371 : vector<16x128xf32>
    %c0_301 = arith.constant 0 : index
    %c0_302 = arith.constant 0 : index
    %374 = vector.load %arg6[%c0_301, %c0_302] : memref<16x128xf32, #tpu.memory_space<vmem>>, vector<16x128xf32>
    tpu.vector_store %arg6[%c0_301, %c0_302], %373 {strides = array<i32>} : memref<16x128xf32, #tpu.memory_space<vmem>>, vector<16x128xf32>,
    %c9_i32 = arith.constant 9 : i32
    %375 = arith.index_cast %c9_i32 : i32 to index
    %c0_303 = arith.constant 0 : index
    %c0_304 = arith.constant 0 : index
    %376 = vector.load %arg2[%375, %c0_303, %c0_304] : memref<16x8x128xf32, #tpu.memory_space<vmem>>, vector<1x8x128xf32>
    %377 = vector.shape_cast %376 : vector<1x8x128xf32> to vector<8x128xf32>
    %cst_305 = arith.constant dense<0.000000e+00> : vector<16x128xf32>
    %378 = tpu.matmul %3, %377, %cst_305 {dimension_numbers = #tpu.dot_dimension_numbers<[1], [0], [0], [1], [0, 0, 1, 1], [], []>} : vector<16x8xf32>, vector<8x128xf32>, vector<16x128xf32> -> vector<16x128xf32>
    %c0_306 = arith.constant 0 : index
    %c0_307 = arith.constant 0 : index
    %379 = vector.load %arg7[%c0_306, %c0_307] : memref<16x128xf32, #tpu.memory_space<vmem>>, vector<16x128xf32>
    %380 = arith.addf %379, %378 : vector<16x128xf32>
    %cst_308 = arith.constant 1.000000e+00 : f32
    %381 = vector.broadcast %cst_308 : f32 to vector<16x128xf32>
    %382 = arith.cmpf oge, %380, %381 : vector<16x128xf32>
    %cst_309 = arith.constant 0.000000e+00 : f32
    %383 = vector.broadcast %cst_309 : f32 to vector<16x128xf32>
    %384 = arith.select %382, %383, %380 : vector<16x128xi1>, vector<16x128xf32>
    %c0_310 = arith.constant 0 : index
    %c0_311 = arith.constant 0 : index
    %385 = vector.load %arg7[%c0_310, %c0_311] : memref<16x128xf32, #tpu.memory_space<vmem>>, vector<16x128xf32>
    tpu.vector_store %arg7[%c0_310, %c0_311], %384 {strides = array<i32>} : memref<16x128xf32, #tpu.memory_space<vmem>>, vector<16x128xf32>,
    %cst_312 = arith.constant 1.000000e+00 : f32
    %cst_313 = arith.constant 0.000000e+00 : f32
    %386 = vector.broadcast %cst_312 : f32 to vector<16x128xf32>
    %387 = vector.broadcast %cst_313 : f32 to vector<16x128xf32>
    %388 = arith.select %382, %386, %387 : vector<16x128xi1>, vector<16x128xf32>
    %389 = arith.truncf %388 : vector<16x128xf32> to vector<16x128xbf16>
    %cst_314 = arith.constant dense<0.000000e+00> : vector<32x128xf32>
    %390 = tpu.matmul %4, %389, %cst_314 {dimension_numbers = #tpu.dot_dimension_numbers<[1], [0], [0], [1], [0, 0, 1, 1], [], []>} : vector<32x16xbf16>, vector<16x128xbf16>, vector<32x128xf32> -> vector<32x128xf32>
    %c0_315 = arith.constant 0 : index
    %c0_316 = arith.constant 0 : index
    %391 = vector.load %arg8[%c0_315, %c0_316] : memref<32x128xf32, #tpu.memory_space<vmem>>, vector<32x128xf32>
    %392 = arith.addf %391, %390 : vector<32x128xf32>
    %cst_317 = arith.constant 1.000000e+00 : f32
    %393 = vector.broadcast %cst_317 : f32 to vector<32x128xf32>
    %394 = arith.cmpf oge, %392, %393 : vector<32x128xf32>
    %cst_318 = arith.constant 0.000000e+00 : f32
    %395 = vector.broadcast %cst_318 : f32 to vector<32x128xf32>
    %396 = arith.select %394, %395, %392 : vector<32x128xi1>, vector<32x128xf32>
    %c0_319 = arith.constant 0 : index
    %c0_320 = arith.constant 0 : index
    %397 = vector.load %arg8[%c0_319, %c0_320] : memref<32x128xf32, #tpu.memory_space<vmem>>, vector<32x128xf32>
    tpu.vector_store %arg8[%c0_319, %c0_320], %396 {strides = array<i32>} : memref<32x128xf32, #tpu.memory_space<vmem>>, vector<32x128xf32>,
    %cst_321 = arith.constant 1.000000e+00 : f32
    %cst_322 = arith.constant 0.000000e+00 : f32
    %398 = vector.broadcast %cst_321 : f32 to vector<32x128xf32>
    %399 = vector.broadcast %cst_322 : f32 to vector<32x128xf32>
    %400 = arith.select %394, %398, %399 : vector<32x128xi1>, vector<32x128xf32>
    %401 = arith.truncf %400 : vector<32x128xf32> to vector<32x128xbf16>
    %cst_323 = arith.constant dense<0.000000e+00> : vector<16x128xf32>
    %402 = tpu.matmul %5, %401, %cst_323 {dimension_numbers = #tpu.dot_dimension_numbers<[1], [0], [0], [1], [0, 0, 1, 1], [], []>} : vector<16x32xbf16>, vector<32x128xbf16>, vector<16x128xf32> -> vector<16x128xf32>
    %c0_324 = arith.constant 0 : index
    %c0_325 = arith.constant 0 : index
    %403 = vector.load %arg9[%c0_324, %c0_325] : memref<16x128xf32, #tpu.memory_space<vmem>>, vector<16x128xf32>
    %404 = arith.addf %403, %402 : vector<16x128xf32>
    %cst_326 = arith.constant 1.000000e+00 : f32
    %405 = vector.broadcast %cst_326 : f32 to vector<16x128xf32>
    %406 = arith.cmpf oge, %404, %405 : vector<16x128xf32>
    %cst_327 = arith.constant 0.000000e+00 : f32
    %407 = vector.broadcast %cst_327 : f32 to vector<16x128xf32>
    %408 = arith.select %406, %407, %404 : vector<16x128xi1>, vector<16x128xf32>
    %c0_328 = arith.constant 0 : index
    %c0_329 = arith.constant 0 : index
    %409 = vector.load %arg9[%c0_328, %c0_329] : memref<16x128xf32, #tpu.memory_space<vmem>>, vector<16x128xf32>
    tpu.vector_store %arg9[%c0_328, %c0_329], %408 {strides = array<i32>} : memref<16x128xf32, #tpu.memory_space<vmem>>, vector<16x128xf32>,
    %cst_330 = arith.constant 1.000000e+00 : f32
    %cst_331 = arith.constant 0.000000e+00 : f32
    %410 = vector.broadcast %cst_330 : f32 to vector<16x128xf32>
    %411 = vector.broadcast %cst_331 : f32 to vector<16x128xf32>
    %412 = arith.select %406, %410, %411 : vector<16x128xi1>, vector<16x128xf32>
    %c0_332 = arith.constant 0 : index
    %c0_333 = arith.constant 0 : index
    %413 = vector.load %arg6[%c0_332, %c0_333] : memref<16x128xf32, #tpu.memory_space<vmem>>, vector<16x128xf32>
    %414 = arith.addf %413, %412 : vector<16x128xf32>
    %c0_334 = arith.constant 0 : index
    %c0_335 = arith.constant 0 : index
    %415 = vector.load %arg6[%c0_334, %c0_335] : memref<16x128xf32, #tpu.memory_space<vmem>>, vector<16x128xf32>
    tpu.vector_store %arg6[%c0_334, %c0_335], %414 {strides = array<i32>} : memref<16x128xf32, #tpu.memory_space<vmem>>, vector<16x128xf32>,
    %c10_i32 = arith.constant 10 : i32
    %416 = arith.index_cast %c10_i32 : i32 to index
    %c0_336 = arith.constant 0 : index
    %c0_337 = arith.constant 0 : index
    %417 = vector.load %arg2[%416, %c0_336, %c0_337] : memref<16x8x128xf32, #tpu.memory_space<vmem>>, vector<1x8x128xf32>
    %418 = vector.shape_cast %417 : vector<1x8x128xf32> to vector<8x128xf32>
    %cst_338 = arith.constant dense<0.000000e+00> : vector<16x128xf32>
    %419 = tpu.matmul %3, %418, %cst_338 {dimension_numbers = #tpu.dot_dimension_numbers<[1], [0], [0], [1], [0, 0, 1, 1], [], []>} : vector<16x8xf32>, vector<8x128xf32>, vector<16x128xf32> -> vector<16x128xf32>
    %c0_339 = arith.constant 0 : index
    %c0_340 = arith.constant 0 : index
    %420 = vector.load %arg7[%c0_339, %c0_340] : memref<16x128xf32, #tpu.memory_space<vmem>>, vector<16x128xf32>
    %421 = arith.addf %420, %419 : vector<16x128xf32>
    %cst_341 = arith.constant 1.000000e+00 : f32
    %422 = vector.broadcast %cst_341 : f32 to vector<16x128xf32>
    %423 = arith.cmpf oge, %421, %422 : vector<16x128xf32>
    %cst_342 = arith.constant 0.000000e+00 : f32
    %424 = vector.broadcast %cst_342 : f32 to vector<16x128xf32>
    %425 = arith.select %423, %424, %421 : vector<16x128xi1>, vector<16x128xf32>
    %c0_343 = arith.constant 0 : index
    %c0_344 = arith.constant 0 : index
    %426 = vector.load %arg7[%c0_343, %c0_344] : memref<16x128xf32, #tpu.memory_space<vmem>>, vector<16x128xf32>
    tpu.vector_store %arg7[%c0_343, %c0_344], %425 {strides = array<i32>} : memref<16x128xf32, #tpu.memory_space<vmem>>, vector<16x128xf32>,
    %cst_345 = arith.constant 1.000000e+00 : f32
    %cst_346 = arith.constant 0.000000e+00 : f32
    %427 = vector.broadcast %cst_345 : f32 to vector<16x128xf32>
    %428 = vector.broadcast %cst_346 : f32 to vector<16x128xf32>
    %429 = arith.select %423, %427, %428 : vector<16x128xi1>, vector<16x128xf32>
    %430 = arith.truncf %429 : vector<16x128xf32> to vector<16x128xbf16>
    %cst_347 = arith.constant dense<0.000000e+00> : vector<32x128xf32>
    %431 = tpu.matmul %4, %430, %cst_347 {dimension_numbers = #tpu.dot_dimension_numbers<[1], [0], [0], [1], [0, 0, 1, 1], [], []>} : vector<32x16xbf16>, vector<16x128xbf16>, vector<32x128xf32> -> vector<32x128xf32>
    %c0_348 = arith.constant 0 : index
    %c0_349 = arith.constant 0 : index
    %432 = vector.load %arg8[%c0_348, %c0_349] : memref<32x128xf32, #tpu.memory_space<vmem>>, vector<32x128xf32>
    %433 = arith.addf %432, %431 : vector<32x128xf32>
    %cst_350 = arith.constant 1.000000e+00 : f32
    %434 = vector.broadcast %cst_350 : f32 to vector<32x128xf32>
    %435 = arith.cmpf oge, %433, %434 : vector<32x128xf32>
    %cst_351 = arith.constant 0.000000e+00 : f32
    %436 = vector.broadcast %cst_351 : f32 to vector<32x128xf32>
    %437 = arith.select %435, %436, %433 : vector<32x128xi1>, vector<32x128xf32>
    %c0_352 = arith.constant 0 : index
    %c0_353 = arith.constant 0 : index
    %438 = vector.load %arg8[%c0_352, %c0_353] : memref<32x128xf32, #tpu.memory_space<vmem>>, vector<32x128xf32>
    tpu.vector_store %arg8[%c0_352, %c0_353], %437 {strides = array<i32>} : memref<32x128xf32, #tpu.memory_space<vmem>>, vector<32x128xf32>,
    %cst_354 = arith.constant 1.000000e+00 : f32
    %cst_355 = arith.constant 0.000000e+00 : f32
    %439 = vector.broadcast %cst_354 : f32 to vector<32x128xf32>
    %440 = vector.broadcast %cst_355 : f32 to vector<32x128xf32>
    %441 = arith.select %435, %439, %440 : vector<32x128xi1>, vector<32x128xf32>
    %442 = arith.truncf %441 : vector<32x128xf32> to vector<32x128xbf16>
    %cst_356 = arith.constant dense<0.000000e+00> : vector<16x128xf32>
    %443 = tpu.matmul %5, %442, %cst_356 {dimension_numbers = #tpu.dot_dimension_numbers<[1], [0], [0], [1], [0, 0, 1, 1], [], []>} : vector<16x32xbf16>, vector<32x128xbf16>, vector<16x128xf32> -> vector<16x128xf32>
    %c0_357 = arith.constant 0 : index
    %c0_358 = arith.constant 0 : index
    %444 = vector.load %arg9[%c0_357, %c0_358] : memref<16x128xf32, #tpu.memory_space<vmem>>, vector<16x128xf32>
    %445 = arith.addf %444, %443 : vector<16x128xf32>
    %cst_359 = arith.constant 1.000000e+00 : f32
    %446 = vector.broadcast %cst_359 : f32 to vector<16x128xf32>
    %447 = arith.cmpf oge, %445, %446 : vector<16x128xf32>
    %cst_360 = arith.constant 0.000000e+00 : f32
    %448 = vector.broadcast %cst_360 : f32 to vector<16x128xf32>
    %449 = arith.select %447, %448, %445 : vector<16x128xi1>, vector<16x128xf32>
    %c0_361 = arith.constant 0 : index
    %c0_362 = arith.constant 0 : index
    %450 = vector.load %arg9[%c0_361, %c0_362] : memref<16x128xf32, #tpu.memory_space<vmem>>, vector<16x128xf32>
    tpu.vector_store %arg9[%c0_361, %c0_362], %449 {strides = array<i32>} : memref<16x128xf32, #tpu.memory_space<vmem>>, vector<16x128xf32>,
    %cst_363 = arith.constant 1.000000e+00 : f32
    %cst_364 = arith.constant 0.000000e+00 : f32
    %451 = vector.broadcast %cst_363 : f32 to vector<16x128xf32>
    %452 = vector.broadcast %cst_364 : f32 to vector<16x128xf32>
    %453 = arith.select %447, %451, %452 : vector<16x128xi1>, vector<16x128xf32>
    %c0_365 = arith.constant 0 : index
    %c0_366 = arith.constant 0 : index
    %454 = vector.load %arg6[%c0_365, %c0_366] : memref<16x128xf32, #tpu.memory_space<vmem>>, vector<16x128xf32>
    %455 = arith.addf %454, %453 : vector<16x128xf32>
    %c0_367 = arith.constant 0 : index
    %c0_368 = arith.constant 0 : index
    %456 = vector.load %arg6[%c0_367, %c0_368] : memref<16x128xf32, #tpu.memory_space<vmem>>, vector<16x128xf32>
    tpu.vector_store %arg6[%c0_367, %c0_368], %455 {strides = array<i32>} : memref<16x128xf32, #tpu.memory_space<vmem>>, vector<16x128xf32>,
    %c11_i32 = arith.constant 11 : i32
    %457 = arith.index_cast %c11_i32 : i32 to index
    %c0_369 = arith.constant 0 : index
    %c0_370 = arith.constant 0 : index
    %458 = vector.load %arg2[%457, %c0_369, %c0_370] : memref<16x8x128xf32, #tpu.memory_space<vmem>>, vector<1x8x128xf32>
    %459 = vector.shape_cast %458 : vector<1x8x128xf32> to vector<8x128xf32>
    %cst_371 = arith.constant dense<0.000000e+00> : vector<16x128xf32>
    %460 = tpu.matmul %3, %459, %cst_371 {dimension_numbers = #tpu.dot_dimension_numbers<[1], [0], [0], [1], [0, 0, 1, 1], [], []>} : vector<16x8xf32>, vector<8x128xf32>, vector<16x128xf32> -> vector<16x128xf32>
    %c0_372 = arith.constant 0 : index
    %c0_373 = arith.constant 0 : index
    %461 = vector.load %arg7[%c0_372, %c0_373] : memref<16x128xf32, #tpu.memory_space<vmem>>, vector<16x128xf32>
    %462 = arith.addf %461, %460 : vector<16x128xf32>
    %cst_374 = arith.constant 1.000000e+00 : f32
    %463 = vector.broadcast %cst_374 : f32 to vector<16x128xf32>
    %464 = arith.cmpf oge, %462, %463 : vector<16x128xf32>
    %cst_375 = arith.constant 0.000000e+00 : f32
    %465 = vector.broadcast %cst_375 : f32 to vector<16x128xf32>
    %466 = arith.select %464, %465, %462 : vector<16x128xi1>, vector<16x128xf32>
    %c0_376 = arith.constant 0 : index
    %c0_377 = arith.constant 0 : index
    %467 = vector.load %arg7[%c0_376, %c0_377] : memref<16x128xf32, #tpu.memory_space<vmem>>, vector<16x128xf32>
    tpu.vector_store %arg7[%c0_376, %c0_377], %466 {strides = array<i32>} : memref<16x128xf32, #tpu.memory_space<vmem>>, vector<16x128xf32>,
    %cst_378 = arith.constant 1.000000e+00 : f32
    %cst_379 = arith.constant 0.000000e+00 : f32
    %468 = vector.broadcast %cst_378 : f32 to vector<16x128xf32>
    %469 = vector.broadcast %cst_379 : f32 to vector<16x128xf32>
    %470 = arith.select %464, %468, %469 : vector<16x128xi1>, vector<16x128xf32>
    %471 = arith.truncf %470 : vector<16x128xf32> to vector<16x128xbf16>
    %cst_380 = arith.constant dense<0.000000e+00> : vector<32x128xf32>
    %472 = tpu.matmul %4, %471, %cst_380 {dimension_numbers = #tpu.dot_dimension_numbers<[1], [0], [0], [1], [0, 0, 1, 1], [], []>} : vector<32x16xbf16>, vector<16x128xbf16>, vector<32x128xf32> -> vector<32x128xf32>
    %c0_381 = arith.constant 0 : index
    %c0_382 = arith.constant 0 : index
    %473 = vector.load %arg8[%c0_381, %c0_382] : memref<32x128xf32, #tpu.memory_space<vmem>>, vector<32x128xf32>
    %474 = arith.addf %473, %472 : vector<32x128xf32>
    %cst_383 = arith.constant 1.000000e+00 : f32
    %475 = vector.broadcast %cst_383 : f32 to vector<32x128xf32>
    %476 = arith.cmpf oge, %474, %475 : vector<32x128xf32>
    %cst_384 = arith.constant 0.000000e+00 : f32
    %477 = vector.broadcast %cst_384 : f32 to vector<32x128xf32>
    %478 = arith.select %476, %477, %474 : vector<32x128xi1>, vector<32x128xf32>
    %c0_385 = arith.constant 0 : index
    %c0_386 = arith.constant 0 : index
    %479 = vector.load %arg8[%c0_385, %c0_386] : memref<32x128xf32, #tpu.memory_space<vmem>>, vector<32x128xf32>
    tpu.vector_store %arg8[%c0_385, %c0_386], %478 {strides = array<i32>} : memref<32x128xf32, #tpu.memory_space<vmem>>, vector<32x128xf32>,
    %cst_387 = arith.constant 1.000000e+00 : f32
    %cst_388 = arith.constant 0.000000e+00 : f32
    %480 = vector.broadcast %cst_387 : f32 to vector<32x128xf32>
    %481 = vector.broadcast %cst_388 : f32 to vector<32x128xf32>
    %482 = arith.select %476, %480, %481 : vector<32x128xi1>, vector<32x128xf32>
    %483 = arith.truncf %482 : vector<32x128xf32> to vector<32x128xbf16>
    %cst_389 = arith.constant dense<0.000000e+00> : vector<16x128xf32>
    %484 = tpu.matmul %5, %483, %cst_389 {dimension_numbers = #tpu.dot_dimension_numbers<[1], [0], [0], [1], [0, 0, 1, 1], [], []>} : vector<16x32xbf16>, vector<32x128xbf16>, vector<16x128xf32> -> vector<16x128xf32>
    %c0_390 = arith.constant 0 : index
    %c0_391 = arith.constant 0 : index
    %485 = vector.load %arg9[%c0_390, %c0_391] : memref<16x128xf32, #tpu.memory_space<vmem>>, vector<16x128xf32>
    %486 = arith.addf %485, %484 : vector<16x128xf32>
    %cst_392 = arith.constant 1.000000e+00 : f32
    %487 = vector.broadcast %cst_392 : f32 to vector<16x128xf32>
    %488 = arith.cmpf oge, %486, %487 : vector<16x128xf32>
    %cst_393 = arith.constant 0.000000e+00 : f32
    %489 = vector.broadcast %cst_393 : f32 to vector<16x128xf32>
    %490 = arith.select %488, %489, %486 : vector<16x128xi1>, vector<16x128xf32>
    %c0_394 = arith.constant 0 : index
    %c0_395 = arith.constant 0 : index
    %491 = vector.load %arg9[%c0_394, %c0_395] : memref<16x128xf32, #tpu.memory_space<vmem>>, vector<16x128xf32>
    tpu.vector_store %arg9[%c0_394, %c0_395], %490 {strides = array<i32>} : memref<16x128xf32, #tpu.memory_space<vmem>>, vector<16x128xf32>,
    %cst_396 = arith.constant 1.000000e+00 : f32
    %cst_397 = arith.constant 0.000000e+00 : f32
    %492 = vector.broadcast %cst_396 : f32 to vector<16x128xf32>
    %493 = vector.broadcast %cst_397 : f32 to vector<16x128xf32>
    %494 = arith.select %488, %492, %493 : vector<16x128xi1>, vector<16x128xf32>
    %c0_398 = arith.constant 0 : index
    %c0_399 = arith.constant 0 : index
    %495 = vector.load %arg6[%c0_398, %c0_399] : memref<16x128xf32, #tpu.memory_space<vmem>>, vector<16x128xf32>
    %496 = arith.addf %495, %494 : vector<16x128xf32>
    %c0_400 = arith.constant 0 : index
    %c0_401 = arith.constant 0 : index
    %497 = vector.load %arg6[%c0_400, %c0_401] : memref<16x128xf32, #tpu.memory_space<vmem>>, vector<16x128xf32>
    tpu.vector_store %arg6[%c0_400, %c0_401], %496 {strides = array<i32>} : memref<16x128xf32, #tpu.memory_space<vmem>>, vector<16x128xf32>,
    %c12_i32 = arith.constant 12 : i32
    %498 = arith.index_cast %c12_i32 : i32 to index
    %c0_402 = arith.constant 0 : index
    %c0_403 = arith.constant 0 : index
    %499 = vector.load %arg2[%498, %c0_402, %c0_403] : memref<16x8x128xf32, #tpu.memory_space<vmem>>, vector<1x8x128xf32>
    %500 = vector.shape_cast %499 : vector<1x8x128xf32> to vector<8x128xf32>
    %cst_404 = arith.constant dense<0.000000e+00> : vector<16x128xf32>
    %501 = tpu.matmul %3, %500, %cst_404 {dimension_numbers = #tpu.dot_dimension_numbers<[1], [0], [0], [1], [0, 0, 1, 1], [], []>} : vector<16x8xf32>, vector<8x128xf32>, vector<16x128xf32> -> vector<16x128xf32>
    %c0_405 = arith.constant 0 : index
    %c0_406 = arith.constant 0 : index
    %502 = vector.load %arg7[%c0_405, %c0_406] : memref<16x128xf32, #tpu.memory_space<vmem>>, vector<16x128xf32>
    %503 = arith.addf %502, %501 : vector<16x128xf32>
    %cst_407 = arith.constant 1.000000e+00 : f32
    %504 = vector.broadcast %cst_407 : f32 to vector<16x128xf32>
    %505 = arith.cmpf oge, %503, %504 : vector<16x128xf32>
    %cst_408 = arith.constant 0.000000e+00 : f32
    %506 = vector.broadcast %cst_408 : f32 to vector<16x128xf32>
    %507 = arith.select %505, %506, %503 : vector<16x128xi1>, vector<16x128xf32>
    %c0_409 = arith.constant 0 : index
    %c0_410 = arith.constant 0 : index
    %508 = vector.load %arg7[%c0_409, %c0_410] : memref<16x128xf32, #tpu.memory_space<vmem>>, vector<16x128xf32>
    tpu.vector_store %arg7[%c0_409, %c0_410], %507 {strides = array<i32>} : memref<16x128xf32, #tpu.memory_space<vmem>>, vector<16x128xf32>,
    %cst_411 = arith.constant 1.000000e+00 : f32
    %cst_412 = arith.constant 0.000000e+00 : f32
    %509 = vector.broadcast %cst_411 : f32 to vector<16x128xf32>
    %510 = vector.broadcast %cst_412 : f32 to vector<16x128xf32>
    %511 = arith.select %505, %509, %510 : vector<16x128xi1>, vector<16x128xf32>
    %512 = arith.truncf %511 : vector<16x128xf32> to vector<16x128xbf16>
    %cst_413 = arith.constant dense<0.000000e+00> : vector<32x128xf32>
    %513 = tpu.matmul %4, %512, %cst_413 {dimension_numbers = #tpu.dot_dimension_numbers<[1], [0], [0], [1], [0, 0, 1, 1], [], []>} : vector<32x16xbf16>, vector<16x128xbf16>, vector<32x128xf32> -> vector<32x128xf32>
    %c0_414 = arith.constant 0 : index
    %c0_415 = arith.constant 0 : index
    %514 = vector.load %arg8[%c0_414, %c0_415] : memref<32x128xf32, #tpu.memory_space<vmem>>, vector<32x128xf32>
    %515 = arith.addf %514, %513 : vector<32x128xf32>
    %cst_416 = arith.constant 1.000000e+00 : f32
    %516 = vector.broadcast %cst_416 : f32 to vector<32x128xf32>
    %517 = arith.cmpf oge, %515, %516 : vector<32x128xf32>
    %cst_417 = arith.constant 0.000000e+00 : f32
    %518 = vector.broadcast %cst_417 : f32 to vector<32x128xf32>
    %519 = arith.select %517, %518, %515 : vector<32x128xi1>, vector<32x128xf32>
    %c0_418 = arith.constant 0 : index
    %c0_419 = arith.constant 0 : index
    %520 = vector.load %arg8[%c0_418, %c0_419] : memref<32x128xf32, #tpu.memory_space<vmem>>, vector<32x128xf32>
    tpu.vector_store %arg8[%c0_418, %c0_419], %519 {strides = array<i32>} : memref<32x128xf32, #tpu.memory_space<vmem>>, vector<32x128xf32>,
    %cst_420 = arith.constant 1.000000e+00 : f32
    %cst_421 = arith.constant 0.000000e+00 : f32
    %521 = vector.broadcast %cst_420 : f32 to vector<32x128xf32>
    %522 = vector.broadcast %cst_421 : f32 to vector<32x128xf32>
    %523 = arith.select %517, %521, %522 : vector<32x128xi1>, vector<32x128xf32>
    %524 = arith.truncf %523 : vector<32x128xf32> to vector<32x128xbf16>
    %cst_422 = arith.constant dense<0.000000e+00> : vector<16x128xf32>
    %525 = tpu.matmul %5, %524, %cst_422 {dimension_numbers = #tpu.dot_dimension_numbers<[1], [0], [0], [1], [0, 0, 1, 1], [], []>} : vector<16x32xbf16>, vector<32x128xbf16>, vector<16x128xf32> -> vector<16x128xf32>
    %c0_423 = arith.constant 0 : index
    %c0_424 = arith.constant 0 : index
    %526 = vector.load %arg9[%c0_423, %c0_424] : memref<16x128xf32, #tpu.memory_space<vmem>>, vector<16x128xf32>
    %527 = arith.addf %526, %525 : vector<16x128xf32>
    %cst_425 = arith.constant 1.000000e+00 : f32
    %528 = vector.broadcast %cst_425 : f32 to vector<16x128xf32>
    %529 = arith.cmpf oge, %527, %528 : vector<16x128xf32>
    %cst_426 = arith.constant 0.000000e+00 : f32
    %530 = vector.broadcast %cst_426 : f32 to vector<16x128xf32>
    %531 = arith.select %529, %530, %527 : vector<16x128xi1>, vector<16x128xf32>
    %c0_427 = arith.constant 0 : index
    %c0_428 = arith.constant 0 : index
    %532 = vector.load %arg9[%c0_427, %c0_428] : memref<16x128xf32, #tpu.memory_space<vmem>>, vector<16x128xf32>
    tpu.vector_store %arg9[%c0_427, %c0_428], %531 {strides = array<i32>} : memref<16x128xf32, #tpu.memory_space<vmem>>, vector<16x128xf32>,
    %cst_429 = arith.constant 1.000000e+00 : f32
    %cst_430 = arith.constant 0.000000e+00 : f32
    %533 = vector.broadcast %cst_429 : f32 to vector<16x128xf32>
    %534 = vector.broadcast %cst_430 : f32 to vector<16x128xf32>
    %535 = arith.select %529, %533, %534 : vector<16x128xi1>, vector<16x128xf32>
    %c0_431 = arith.constant 0 : index
    %c0_432 = arith.constant 0 : index
    %536 = vector.load %arg6[%c0_431, %c0_432] : memref<16x128xf32, #tpu.memory_space<vmem>>, vector<16x128xf32>
    %537 = arith.addf %536, %535 : vector<16x128xf32>
    %c0_433 = arith.constant 0 : index
    %c0_434 = arith.constant 0 : index
    %538 = vector.load %arg6[%c0_433, %c0_434] : memref<16x128xf32, #tpu.memory_space<vmem>>, vector<16x128xf32>
    tpu.vector_store %arg6[%c0_433, %c0_434], %537 {strides = array<i32>} : memref<16x128xf32, #tpu.memory_space<vmem>>, vector<16x128xf32>,
    %c13_i32 = arith.constant 13 : i32
    %539 = arith.index_cast %c13_i32 : i32 to index
    %c0_435 = arith.constant 0 : index
    %c0_436 = arith.constant 0 : index
    %540 = vector.load %arg2[%539, %c0_435, %c0_436] : memref<16x8x128xf32, #tpu.memory_space<vmem>>, vector<1x8x128xf32>
    %541 = vector.shape_cast %540 : vector<1x8x128xf32> to vector<8x128xf32>
    %cst_437 = arith.constant dense<0.000000e+00> : vector<16x128xf32>
    %542 = tpu.matmul %3, %541, %cst_437 {dimension_numbers = #tpu.dot_dimension_numbers<[1], [0], [0], [1], [0, 0, 1, 1], [], []>} : vector<16x8xf32>, vector<8x128xf32>, vector<16x128xf32> -> vector<16x128xf32>
    %c0_438 = arith.constant 0 : index
    %c0_439 = arith.constant 0 : index
    %543 = vector.load %arg7[%c0_438, %c0_439] : memref<16x128xf32, #tpu.memory_space<vmem>>, vector<16x128xf32>
    %544 = arith.addf %543, %542 : vector<16x128xf32>
    %cst_440 = arith.constant 1.000000e+00 : f32
    %545 = vector.broadcast %cst_440 : f32 to vector<16x128xf32>
    %546 = arith.cmpf oge, %544, %545 : vector<16x128xf32>
    %cst_441 = arith.constant 0.000000e+00 : f32
    %547 = vector.broadcast %cst_441 : f32 to vector<16x128xf32>
    %548 = arith.select %546, %547, %544 : vector<16x128xi1>, vector<16x128xf32>
    %c0_442 = arith.constant 0 : index
    %c0_443 = arith.constant 0 : index
    %549 = vector.load %arg7[%c0_442, %c0_443] : memref<16x128xf32, #tpu.memory_space<vmem>>, vector<16x128xf32>
    tpu.vector_store %arg7[%c0_442, %c0_443], %548 {strides = array<i32>} : memref<16x128xf32, #tpu.memory_space<vmem>>, vector<16x128xf32>,
    %cst_444 = arith.constant 1.000000e+00 : f32
    %cst_445 = arith.constant 0.000000e+00 : f32
    %550 = vector.broadcast %cst_444 : f32 to vector<16x128xf32>
    %551 = vector.broadcast %cst_445 : f32 to vector<16x128xf32>
    %552 = arith.select %546, %550, %551 : vector<16x128xi1>, vector<16x128xf32>
    %553 = arith.truncf %552 : vector<16x128xf32> to vector<16x128xbf16>
    %cst_446 = arith.constant dense<0.000000e+00> : vector<32x128xf32>
    %554 = tpu.matmul %4, %553, %cst_446 {dimension_numbers = #tpu.dot_dimension_numbers<[1], [0], [0], [1], [0, 0, 1, 1], [], []>} : vector<32x16xbf16>, vector<16x128xbf16>, vector<32x128xf32> -> vector<32x128xf32>
    %c0_447 = arith.constant 0 : index
    %c0_448 = arith.constant 0 : index
    %555 = vector.load %arg8[%c0_447, %c0_448] : memref<32x128xf32, #tpu.memory_space<vmem>>, vector<32x128xf32>
    %556 = arith.addf %555, %554 : vector<32x128xf32>
    %cst_449 = arith.constant 1.000000e+00 : f32
    %557 = vector.broadcast %cst_449 : f32 to vector<32x128xf32>
    %558 = arith.cmpf oge, %556, %557 : vector<32x128xf32>
    %cst_450 = arith.constant 0.000000e+00 : f32
    %559 = vector.broadcast %cst_450 : f32 to vector<32x128xf32>
    %560 = arith.select %558, %559, %556 : vector<32x128xi1>, vector<32x128xf32>
    %c0_451 = arith.constant 0 : index
    %c0_452 = arith.constant 0 : index
    %561 = vector.load %arg8[%c0_451, %c0_452] : memref<32x128xf32, #tpu.memory_space<vmem>>, vector<32x128xf32>
    tpu.vector_store %arg8[%c0_451, %c0_452], %560 {strides = array<i32>} : memref<32x128xf32, #tpu.memory_space<vmem>>, vector<32x128xf32>,
    %cst_453 = arith.constant 1.000000e+00 : f32
    %cst_454 = arith.constant 0.000000e+00 : f32
    %562 = vector.broadcast %cst_453 : f32 to vector<32x128xf32>
    %563 = vector.broadcast %cst_454 : f32 to vector<32x128xf32>
    %564 = arith.select %558, %562, %563 : vector<32x128xi1>, vector<32x128xf32>
    %565 = arith.truncf %564 : vector<32x128xf32> to vector<32x128xbf16>
    %cst_455 = arith.constant dense<0.000000e+00> : vector<16x128xf32>
    %566 = tpu.matmul %5, %565, %cst_455 {dimension_numbers = #tpu.dot_dimension_numbers<[1], [0], [0], [1], [0, 0, 1, 1], [], []>} : vector<16x32xbf16>, vector<32x128xbf16>, vector<16x128xf32> -> vector<16x128xf32>
    %c0_456 = arith.constant 0 : index
    %c0_457 = arith.constant 0 : index
    %567 = vector.load %arg9[%c0_456, %c0_457] : memref<16x128xf32, #tpu.memory_space<vmem>>, vector<16x128xf32>
    %568 = arith.addf %567, %566 : vector<16x128xf32>
    %cst_458 = arith.constant 1.000000e+00 : f32
    %569 = vector.broadcast %cst_458 : f32 to vector<16x128xf32>
    %570 = arith.cmpf oge, %568, %569 : vector<16x128xf32>
    %cst_459 = arith.constant 0.000000e+00 : f32
    %571 = vector.broadcast %cst_459 : f32 to vector<16x128xf32>
    %572 = arith.select %570, %571, %568 : vector<16x128xi1>, vector<16x128xf32>
    %c0_460 = arith.constant 0 : index
    %c0_461 = arith.constant 0 : index
    %573 = vector.load %arg9[%c0_460, %c0_461] : memref<16x128xf32, #tpu.memory_space<vmem>>, vector<16x128xf32>
    tpu.vector_store %arg9[%c0_460, %c0_461], %572 {strides = array<i32>} : memref<16x128xf32, #tpu.memory_space<vmem>>, vector<16x128xf32>,
    %cst_462 = arith.constant 1.000000e+00 : f32
    %cst_463 = arith.constant 0.000000e+00 : f32
    %574 = vector.broadcast %cst_462 : f32 to vector<16x128xf32>
    %575 = vector.broadcast %cst_463 : f32 to vector<16x128xf32>
    %576 = arith.select %570, %574, %575 : vector<16x128xi1>, vector<16x128xf32>
    %c0_464 = arith.constant 0 : index
    %c0_465 = arith.constant 0 : index
    %577 = vector.load %arg6[%c0_464, %c0_465] : memref<16x128xf32, #tpu.memory_space<vmem>>, vector<16x128xf32>
    %578 = arith.addf %577, %576 : vector<16x128xf32>
    %c0_466 = arith.constant 0 : index
    %c0_467 = arith.constant 0 : index
    %579 = vector.load %arg6[%c0_466, %c0_467] : memref<16x128xf32, #tpu.memory_space<vmem>>, vector<16x128xf32>
    tpu.vector_store %arg6[%c0_466, %c0_467], %578 {strides = array<i32>} : memref<16x128xf32, #tpu.memory_space<vmem>>, vector<16x128xf32>,
    %c14_i32 = arith.constant 14 : i32
    %580 = arith.index_cast %c14_i32 : i32 to index
    %c0_468 = arith.constant 0 : index
    %c0_469 = arith.constant 0 : index
    %581 = vector.load %arg2[%580, %c0_468, %c0_469] : memref<16x8x128xf32, #tpu.memory_space<vmem>>, vector<1x8x128xf32>
    %582 = vector.shape_cast %581 : vector<1x8x128xf32> to vector<8x128xf32>
    %cst_470 = arith.constant dense<0.000000e+00> : vector<16x128xf32>
    %583 = tpu.matmul %3, %582, %cst_470 {dimension_numbers = #tpu.dot_dimension_numbers<[1], [0], [0], [1], [0, 0, 1, 1], [], []>} : vector<16x8xf32>, vector<8x128xf32>, vector<16x128xf32> -> vector<16x128xf32>
    %c0_471 = arith.constant 0 : index
    %c0_472 = arith.constant 0 : index
    %584 = vector.load %arg7[%c0_471, %c0_472] : memref<16x128xf32, #tpu.memory_space<vmem>>, vector<16x128xf32>
    %585 = arith.addf %584, %583 : vector<16x128xf32>
    %cst_473 = arith.constant 1.000000e+00 : f32
    %586 = vector.broadcast %cst_473 : f32 to vector<16x128xf32>
    %587 = arith.cmpf oge, %585, %586 : vector<16x128xf32>
    %cst_474 = arith.constant 0.000000e+00 : f32
    %588 = vector.broadcast %cst_474 : f32 to vector<16x128xf32>
    %589 = arith.select %587, %588, %585 : vector<16x128xi1>, vector<16x128xf32>
    %c0_475 = arith.constant 0 : index
    %c0_476 = arith.constant 0 : index
    %590 = vector.load %arg7[%c0_475, %c0_476] : memref<16x128xf32, #tpu.memory_space<vmem>>, vector<16x128xf32>
    tpu.vector_store %arg7[%c0_475, %c0_476], %589 {strides = array<i32>} : memref<16x128xf32, #tpu.memory_space<vmem>>, vector<16x128xf32>,
    %cst_477 = arith.constant 1.000000e+00 : f32
    %cst_478 = arith.constant 0.000000e+00 : f32
    %591 = vector.broadcast %cst_477 : f32 to vector<16x128xf32>
    %592 = vector.broadcast %cst_478 : f32 to vector<16x128xf32>
    %593 = arith.select %587, %591, %592 : vector<16x128xi1>, vector<16x128xf32>
    %594 = arith.truncf %593 : vector<16x128xf32> to vector<16x128xbf16>
    %cst_479 = arith.constant dense<0.000000e+00> : vector<32x128xf32>
    %595 = tpu.matmul %4, %594, %cst_479 {dimension_numbers = #tpu.dot_dimension_numbers<[1], [0], [0], [1], [0, 0, 1, 1], [], []>} : vector<32x16xbf16>, vector<16x128xbf16>, vector<32x128xf32> -> vector<32x128xf32>
    %c0_480 = arith.constant 0 : index
    %c0_481 = arith.constant 0 : index
    %596 = vector.load %arg8[%c0_480, %c0_481] : memref<32x128xf32, #tpu.memory_space<vmem>>, vector<32x128xf32>
    %597 = arith.addf %596, %595 : vector<32x128xf32>
    %cst_482 = arith.constant 1.000000e+00 : f32
    %598 = vector.broadcast %cst_482 : f32 to vector<32x128xf32>
    %599 = arith.cmpf oge, %597, %598 : vector<32x128xf32>
    %cst_483 = arith.constant 0.000000e+00 : f32
    %600 = vector.broadcast %cst_483 : f32 to vector<32x128xf32>
    %601 = arith.select %599, %600, %597 : vector<32x128xi1>, vector<32x128xf32>
    %c0_484 = arith.constant 0 : index
    %c0_485 = arith.constant 0 : index
    %602 = vector.load %arg8[%c0_484, %c0_485] : memref<32x128xf32, #tpu.memory_space<vmem>>, vector<32x128xf32>
    tpu.vector_store %arg8[%c0_484, %c0_485], %601 {strides = array<i32>} : memref<32x128xf32, #tpu.memory_space<vmem>>, vector<32x128xf32>,
    %cst_486 = arith.constant 1.000000e+00 : f32
    %cst_487 = arith.constant 0.000000e+00 : f32
    %603 = vector.broadcast %cst_486 : f32 to vector<32x128xf32>
    %604 = vector.broadcast %cst_487 : f32 to vector<32x128xf32>
    %605 = arith.select %599, %603, %604 : vector<32x128xi1>, vector<32x128xf32>
    %606 = arith.truncf %605 : vector<32x128xf32> to vector<32x128xbf16>
    %cst_488 = arith.constant dense<0.000000e+00> : vector<16x128xf32>
    %607 = tpu.matmul %5, %606, %cst_488 {dimension_numbers = #tpu.dot_dimension_numbers<[1], [0], [0], [1], [0, 0, 1, 1], [], []>} : vector<16x32xbf16>, vector<32x128xbf16>, vector<16x128xf32> -> vector<16x128xf32>
    %c0_489 = arith.constant 0 : index
    %c0_490 = arith.constant 0 : index
    %608 = vector.load %arg9[%c0_489, %c0_490] : memref<16x128xf32, #tpu.memory_space<vmem>>, vector<16x128xf32>
    %609 = arith.addf %608, %607 : vector<16x128xf32>
    %cst_491 = arith.constant 1.000000e+00 : f32
    %610 = vector.broadcast %cst_491 : f32 to vector<16x128xf32>
    %611 = arith.cmpf oge, %609, %610 : vector<16x128xf32>
    %cst_492 = arith.constant 0.000000e+00 : f32
    %612 = vector.broadcast %cst_492 : f32 to vector<16x128xf32>
    %613 = arith.select %611, %612, %609 : vector<16x128xi1>, vector<16x128xf32>
    %c0_493 = arith.constant 0 : index
    %c0_494 = arith.constant 0 : index
    %614 = vector.load %arg9[%c0_493, %c0_494] : memref<16x128xf32, #tpu.memory_space<vmem>>, vector<16x128xf32>
    tpu.vector_store %arg9[%c0_493, %c0_494], %613 {strides = array<i32>} : memref<16x128xf32, #tpu.memory_space<vmem>>, vector<16x128xf32>,
    %cst_495 = arith.constant 1.000000e+00 : f32
    %cst_496 = arith.constant 0.000000e+00 : f32
    %615 = vector.broadcast %cst_495 : f32 to vector<16x128xf32>
    %616 = vector.broadcast %cst_496 : f32 to vector<16x128xf32>
    %617 = arith.select %611, %615, %616 : vector<16x128xi1>, vector<16x128xf32>
    %c0_497 = arith.constant 0 : index
    %c0_498 = arith.constant 0 : index
    %618 = vector.load %arg6[%c0_497, %c0_498] : memref<16x128xf32, #tpu.memory_space<vmem>>, vector<16x128xf32>
    %619 = arith.addf %618, %617 : vector<16x128xf32>
    %c0_499 = arith.constant 0 : index
    %c0_500 = arith.constant 0 : index
    %620 = vector.load %arg6[%c0_499, %c0_500] : memref<16x128xf32, #tpu.memory_space<vmem>>, vector<16x128xf32>
    tpu.vector_store %arg6[%c0_499, %c0_500], %619 {strides = array<i32>} : memref<16x128xf32, #tpu.memory_space<vmem>>, vector<16x128xf32>,
    %c15_i32 = arith.constant 15 : i32
    %621 = arith.index_cast %c15_i32 : i32 to index
    %c0_501 = arith.constant 0 : index
    %c0_502 = arith.constant 0 : index
    %622 = vector.load %arg2[%621, %c0_501, %c0_502] : memref<16x8x128xf32, #tpu.memory_space<vmem>>, vector<1x8x128xf32>
    %623 = vector.shape_cast %622 : vector<1x8x128xf32> to vector<8x128xf32>
    %cst_503 = arith.constant dense<0.000000e+00> : vector<16x128xf32>
    %624 = tpu.matmul %3, %623, %cst_503 {dimension_numbers = #tpu.dot_dimension_numbers<[1], [0], [0], [1], [0, 0, 1, 1], [], []>} : vector<16x8xf32>, vector<8x128xf32>, vector<16x128xf32> -> vector<16x128xf32>
    %c0_504 = arith.constant 0 : index
    %c0_505 = arith.constant 0 : index
    %625 = vector.load %arg7[%c0_504, %c0_505] : memref<16x128xf32, #tpu.memory_space<vmem>>, vector<16x128xf32>
    %626 = arith.addf %625, %624 : vector<16x128xf32>
    %cst_506 = arith.constant 1.000000e+00 : f32
    %627 = vector.broadcast %cst_506 : f32 to vector<16x128xf32>
    %628 = arith.cmpf oge, %626, %627 : vector<16x128xf32>
    %cst_507 = arith.constant 0.000000e+00 : f32
    %629 = vector.broadcast %cst_507 : f32 to vector<16x128xf32>
    %630 = arith.select %628, %629, %626 : vector<16x128xi1>, vector<16x128xf32>
    %c0_508 = arith.constant 0 : index
    %c0_509 = arith.constant 0 : index
    %631 = vector.load %arg7[%c0_508, %c0_509] : memref<16x128xf32, #tpu.memory_space<vmem>>, vector<16x128xf32>
    tpu.vector_store %arg7[%c0_508, %c0_509], %630 {strides = array<i32>} : memref<16x128xf32, #tpu.memory_space<vmem>>, vector<16x128xf32>,
    %cst_510 = arith.constant 1.000000e+00 : f32
    %cst_511 = arith.constant 0.000000e+00 : f32
    %632 = vector.broadcast %cst_510 : f32 to vector<16x128xf32>
    %633 = vector.broadcast %cst_511 : f32 to vector<16x128xf32>
    %634 = arith.select %628, %632, %633 : vector<16x128xi1>, vector<16x128xf32>
    %635 = arith.truncf %634 : vector<16x128xf32> to vector<16x128xbf16>
    %cst_512 = arith.constant dense<0.000000e+00> : vector<32x128xf32>
    %636 = tpu.matmul %4, %635, %cst_512 {dimension_numbers = #tpu.dot_dimension_numbers<[1], [0], [0], [1], [0, 0, 1, 1], [], []>} : vector<32x16xbf16>, vector<16x128xbf16>, vector<32x128xf32> -> vector<32x128xf32>
    %c0_513 = arith.constant 0 : index
    %c0_514 = arith.constant 0 : index
    %637 = vector.load %arg8[%c0_513, %c0_514] : memref<32x128xf32, #tpu.memory_space<vmem>>, vector<32x128xf32>
    %638 = arith.addf %637, %636 : vector<32x128xf32>
    %cst_515 = arith.constant 1.000000e+00 : f32
    %639 = vector.broadcast %cst_515 : f32 to vector<32x128xf32>
    %640 = arith.cmpf oge, %638, %639 : vector<32x128xf32>
    %cst_516 = arith.constant 0.000000e+00 : f32
    %641 = vector.broadcast %cst_516 : f32 to vector<32x128xf32>
    %642 = arith.select %640, %641, %638 : vector<32x128xi1>, vector<32x128xf32>
    %c0_517 = arith.constant 0 : index
    %c0_518 = arith.constant 0 : index
    %643 = vector.load %arg8[%c0_517, %c0_518] : memref<32x128xf32, #tpu.memory_space<vmem>>, vector<32x128xf32>
    tpu.vector_store %arg8[%c0_517, %c0_518], %642 {strides = array<i32>} : memref<32x128xf32, #tpu.memory_space<vmem>>, vector<32x128xf32>,
    %cst_519 = arith.constant 1.000000e+00 : f32
    %cst_520 = arith.constant 0.000000e+00 : f32
    %644 = vector.broadcast %cst_519 : f32 to vector<32x128xf32>
    %645 = vector.broadcast %cst_520 : f32 to vector<32x128xf32>
    %646 = arith.select %640, %644, %645 : vector<32x128xi1>, vector<32x128xf32>
    %647 = arith.truncf %646 : vector<32x128xf32> to vector<32x128xbf16>
    %cst_521 = arith.constant dense<0.000000e+00> : vector<16x128xf32>
    %648 = tpu.matmul %5, %647, %cst_521 {dimension_numbers = #tpu.dot_dimension_numbers<[1], [0], [0], [1], [0, 0, 1, 1], [], []>} : vector<16x32xbf16>, vector<32x128xbf16>, vector<16x128xf32> -> vector<16x128xf32>
    %c0_522 = arith.constant 0 : index
    %c0_523 = arith.constant 0 : index
    %649 = vector.load %arg9[%c0_522, %c0_523] : memref<16x128xf32, #tpu.memory_space<vmem>>, vector<16x128xf32>
    %650 = arith.addf %649, %648 : vector<16x128xf32>
    %cst_524 = arith.constant 1.000000e+00 : f32
    %651 = vector.broadcast %cst_524 : f32 to vector<16x128xf32>
    %652 = arith.cmpf oge, %650, %651 : vector<16x128xf32>
    %cst_525 = arith.constant 0.000000e+00 : f32
    %653 = vector.broadcast %cst_525 : f32 to vector<16x128xf32>
    %654 = arith.select %652, %653, %650 : vector<16x128xi1>, vector<16x128xf32>
    %c0_526 = arith.constant 0 : index
    %c0_527 = arith.constant 0 : index
    %655 = vector.load %arg9[%c0_526, %c0_527] : memref<16x128xf32, #tpu.memory_space<vmem>>, vector<16x128xf32>
    tpu.vector_store %arg9[%c0_526, %c0_527], %654 {strides = array<i32>} : memref<16x128xf32, #tpu.memory_space<vmem>>, vector<16x128xf32>,
    %cst_528 = arith.constant 1.000000e+00 : f32
    %cst_529 = arith.constant 0.000000e+00 : f32
    %656 = vector.broadcast %cst_528 : f32 to vector<16x128xf32>
    %657 = vector.broadcast %cst_529 : f32 to vector<16x128xf32>
    %658 = arith.select %652, %656, %657 : vector<16x128xi1>, vector<16x128xf32>
    %c0_530 = arith.constant 0 : index
    %c0_531 = arith.constant 0 : index
    %659 = vector.load %arg6[%c0_530, %c0_531] : memref<16x128xf32, #tpu.memory_space<vmem>>, vector<16x128xf32>
    %660 = arith.addf %659, %658 : vector<16x128xf32>
    %c0_532 = arith.constant 0 : index
    %c0_533 = arith.constant 0 : index
    %661 = vector.load %arg6[%c0_532, %c0_533] : memref<16x128xf32, #tpu.memory_space<vmem>>, vector<16x128xf32>
    tpu.vector_store %arg6[%c0_532, %c0_533], %660 {strides = array<i32>} : memref<16x128xf32, #tpu.memory_space<vmem>>, vector<16x128xf32>,
    %c16_i32 = arith.constant 16 : i32
    %c0_i32_534 = arith.constant 0 : i32
    %662 = arith.cmpi eq, %arg1, %c0_i32_534 : i32
    %663 = arith.extui %662 : i1 to i32
    %c0_i32_535 = arith.constant 0 : i32
    %664 = arith.cmpi ne, %663, %c0_i32_535 : i32
    scf.if %664 {
      %c0_536 = arith.constant 0 : index
      %c0_537 = arith.constant 0 : index
      %665 = vector.load %arg6[%c0_536, %c0_537] : memref<16x128xf32, #tpu.memory_space<vmem>>, vector<16x128xf32>
      %cst_538 = arith.constant 6.250000e-02 : f32
      %666 = vector.broadcast %cst_538 : f32 to vector<16x128xf32>
      %667 = arith.mulf %665, %666 : vector<16x128xf32>
      %c0_539 = arith.constant 0 : index
      %c0_540 = arith.constant 0 : index
      %668 = vector.load %arg6[%c0_539, %c0_540] : memref<16x128xf32, #tpu.memory_space<vmem>>, vector<16x128xf32>
      tpu.vector_store %arg6[%c0_539, %c0_540], %667 {strides = array<i32>} : memref<16x128xf32, #tpu.memory_space<vmem>>, vector<16x128xf32>,
    } else {
    }
    return
  }
  func.func @transform_0(%arg0: i32, %arg1: i32) -> (i32, i32, i32) {
    %c0_i32 = arith.constant 0 : i32
    %c0_i32_0 = arith.constant 0 : i32
    return %arg1, %c0_i32, %arg0 : i32, i32, i32
  }
  func.func @transform_1(%arg0: i32, %arg1: i32) -> (i32, i32) {
    %c0_i32 = arith.constant 0 : i32
    %c0_i32_0 = arith.constant 0 : i32
    %c0_i32_1 = arith.constant 0 : i32
    return %c0_i32, %c0_i32_0 : i32, i32
  }
  func.func @transform_2(%arg0: i32, %arg1: i32) -> (i32, i32) {
    %c0_i32 = arith.constant 0 : i32
    %c0_i32_0 = arith.constant 0 : i32
    %c0_i32_1 = arith.constant 0 : i32
    return %c0_i32, %c0_i32_0 : i32, i32
  }
  func.func @transform_3(%arg0: i32, %arg1: i32) -> (i32, i32) {
    %c0_i32 = arith.constant 0 : i32
    %c0_i32_0 = arith.constant 0 : i32
    %c0_i32_1 = arith.constant 0 : i32
    return %c0_i32, %c0_i32_0 : i32, i32
  }
  func.func @transform_4(%arg0: i32, %arg1: i32) -> (i32, i32) {
    %c0_i32 = arith.constant 0 : i32
    %c0_i32_0 = arith.constant 0 : i32
    return %c0_i32, %arg0 : i32, i32
  }
}

</mosaic_0001>

<llo_original>
// kernel: tpu_custom_call.1
$region0: #{tpu_custom_call.1}
  #allocation0 [shape = 'u32[]', space=smem, size = 0x4, offset = 0x4, fixed_abs, tag = 'smem constant byte address 0x4 - core index']
  #allocation1 [shape = 'u32[144,128]{1,0:T(1,128)}', space=vmem, size = 0x12000, scoped, tag = 'internal scratch']
  #allocation2 [shape = 'f32[16,128]{1,0:T(8,128)}', space=vmem, size = 0x2000, scoped, tag = 'scratch operand']
  #allocation3 [shape = 'f32[32,128]{1,0:T(8,128)}', space=vmem, size = 0x4000, scoped, tag = 'scratch operand']
  #allocation4 [shape = 'f32[16,128]{1,0:T(8,128)}', space=vmem, size = 0x2000, scoped, tag = 'scratch operand']
  %s0 = inlined_call_operand.hbm [shape: f32[16,8,128], index: 0, kind: input, shape index: {}]
  %s1 = inlined_call_operand.vmem [shape: f32[16,8], index: 1, kind: input, shape index: {}]
  %s2 = inlined_call_operand.vmem [shape: bf16[32,16], index: 2, kind: input, shape index: {}]
  %s3 = inlined_call_operand.vmem [shape: bf16[16,32], index: 3, kind: input, shape index: {}]
  %s4 = inlined_call_operand.hbm [shape: f32[16,128], index: 4, kind: output, shape index: {}]
  %s5 = sld [smem:[#allocation0]]
  $region38: #{tpu_custom_call.1} parent=0
    _
  %s7 = ssub.s32 1, %s5
  %s8 = scalar_select 0, %s7, %s5
  $region1: #{tpu_custom_call.1} parent=0
    #allocation5 [shape = 'u8[65536]{0}', space=vmem, size = 0x10000, scoped, tag = 'input window, operand 0, single buffered']
    #allocation6 [shape = 's32[1]{0}', space=sflag, size = 0x4, scoped, tag = 'scoped memory for tpu_custom_call.1']
    #allocation7 [shape = 's32[1]{0}', space=sflag, size = 0x4, scoped, tag = 'scoped memory for tpu_custom_call.1']
    #allocation8 [shape = 'u8[8192]{0}', space=vmem, size = 0x2000, scoped, tag = 'output window, operand 0, single buffered']
    %9 = vsyncpa [#allocation6], 0
    %10 = vsyncpa [#allocation7], 0
    // Predicated region
    $region2: #{tpu_custom_call.1} parent=1 // pred_check
      _
    $region3: #{tpu_custom_call.1} parent=1 // pred_check_branch
      %12 = sbr.rel (0) target = $region5
    $region4: #{tpu_custom_call.1} parent=1 // pred_region
      %s14 = ssub.s32 2048, 2048
      %15 = vsyncadd [#allocation6], %s14
      %s16 = sshll.u32 [#allocation5], 4
      %s17 = int_to_ptr.vmem [resolvable:$true] %s16
      %22 = dma.hbm_to_vmem [thread:$0]  %s0, 2048, %s17, [#allocation6], 128, 128, 8
    $region5: #{tpu_custom_call.1} parent=1 // pred_fallthru
      _
    // Predicated region
    $region6: #{tpu_custom_call.1} parent=1 // pred_check
      _
    $region7: #{tpu_custom_call.1} parent=1 // pred_check_branch
      %24 = sbr.rel (0) target = $region9
    $region8: #{tpu_custom_call.1} parent=1 // pred_region
      _
    $region9: #{tpu_custom_call.1} parent=1 // pred_fallthru
      _
    // Predicated region
    $region10: #{tpu_custom_call.1} parent=1 // pred_check
      _
    $region11: #{tpu_custom_call.1} parent=1 // pred_check_branch
      %26 = sbr.rel (0) target = $region13
    $region12: #{tpu_custom_call.1} parent=1 // pred_region
      _
    $region13: #{tpu_custom_call.1} parent=1 // pred_fallthru
      _
    // Predicated region
    $region14: #{tpu_custom_call.1} parent=1 // pred_check
      _
    $region15: #{tpu_custom_call.1} parent=1 // pred_check_branch
      %28 = sbr.rel (0) target = $region17
    $region16: #{tpu_custom_call.1} parent=1 // pred_region
      _
    $region17: #{tpu_custom_call.1} parent=1 // pred_fallthru
      _
    // Predicated region
    $region18: #{tpu_custom_call.1} parent=1 // pred_check
      _
    $region19: #{tpu_custom_call.1} parent=1 // pred_check_branch
      %30 = sbr.rel (0) target = $region21
    $region20: #{tpu_custom_call.1} parent=1 // pred_region
      %31 = dma.done [#allocation6], 2048
    $region21: #{tpu_custom_call.1} parent=1 // pred_fallthru
      _
    %p33 = scmp.eq.s32.totalorder 0, 0
    // Predicated region
    $region22: #{tpu_custom_call.1} parent=1 // pred_check
      %p34 = pneg %p33
    $region23: #{tpu_custom_call.1} parent=1 // pred_check_branch
      %36 = sbr.rel (%p34) target = $region25
    $region24: #{tpu_custom_call.1} parent=1 // pred_region
      %37 = vst [vmem:[#allocation2] sm:$0xff] 0.0
      %38 = vst [vmem:[#allocation2 + $0x8] sm:$0xff] 0.0
      %39 = vst [vmem:[#allocation3] sm:$0xff] 0.0
      %40 = vst [vmem:[#allocation3 + $0x8] sm:$0xff] 0.0
      %41 = vst [vmem:[#allocation3 + $0x10] sm:$0xff] 0.0
      %42 = vst [vmem:[#allocation3 + $0x18] sm:$0xff] 0.0
      %43 = vst [vmem:[#allocation4] sm:$0xff] 0.0
      %44 = vst [vmem:[#allocation4 + $0x8] sm:$0xff] 0.0
      %45 = vst [vmem:[#allocation8] sm:$0xff] 0.0
      %46 = vst [vmem:[#allocation8 + $0x8] sm:$0xff] 0.0
    $region25: #{tpu_custom_call.1} parent=1 // pred_fallthru
      _
    %v47 = vld [vmem:[%s1] sm:$0xff]
    %v48 = vld [vmem:[%s1 + $0x8] sm:$0xff]
    %v49 = vld [vmem:[%s2] sm:$0xf]
    %v50 = vld [vmem:[%s2 + $0x4] sm:$0xf]
    %v51 = vld [vmem:[%s2 + $0x8] sm:$0xf]
    %v52 = vld [vmem:[%s2 + $0xc] sm:$0xf]
    %v53 = vld [vmem:[%s3] sm:$0xf]
    %v54 = vld [vmem:[%s3 + $0x4] sm:$0xf]
    %v55 = vld [vmem:[#allocation5] sm:$0xff]
    %vm56 = vcmask 64512
    %v58 = vsel %vm56, %v47, 0
    %v61 = vsel %vm56, %v48, 0
    %63 = vmatprep.subr.mxu0 0.0
    %64 = vmatpush1.msra.mxu0 0.0
    %65 = vmatprep.subr.mxu0 0.0
    %66 = vmatpush1.msra.mxu0 0.0
    %67 = vmatprep.subr.mxu0 0.0
    %68 = vmatpush1.msra.mxu0 0.0
    %69 = vmatprep.subr.mxu0 0.0
    %70 = vmatpush1.msra.mxu0 0.0
    %71 = vmatprep.subr.mxu0 0.0
    %72 = vmatpush1.msra.mxu0 0.0
    %73 = vmatprep.subr.mxu0 0.0
    %74 = vmatpush1.msra.mxu0 0.0
    %75 = vmatprep.subr.mxu0 0.0
    %76 = vmatpush1.msra.mxu0 0.0
    %77 = vmatprep.subr.mxu0 0.0
    %78 = vmatpush1.msra.mxu0 0.0
    %79 = vmatprep.subr.mxu0 0.0
    %80 = vmatpush1.msra.mxu0 0.0
    %81 = vmatprep.subr.mxu0 0.0
    %82 = vmatpush1.msra.mxu0 0.0
    %83 = vmatprep.subr.mxu0 0.0
    %84 = vmatpush1.msra.mxu0 0.0
    %85 = vmatprep.subr.mxu0 0.0
    %86 = vmatpush1.msra.mxu0 0.0
    %87 = vmatprep.subr.mxu0 0.0
    %88 = vmatpush1.msra.mxu0 0.0
    %89 = vmatprep.subr.mxu0 0.0
    %90 = vmatpush1.msra.mxu0 0.0
    %91 = vmatprep.subr.mxu0 0.0
    %92 = vmatpush1.msra.mxu0 0.0
    %93 = vmatprep.subr.mxu0 0.0
    %94 = vmatpush1.msra.mxu0 %v55
    %95 = vmatprep.subr.mxu0 0.0
    %96 = vmatpush2.msra.mxu0 0.0
    %97 = vmatprep.subr.mxu0 0.0
    %98 = vmatpush2.msra.mxu0 0.0
    %99 = vmatprep.subr.mxu0 0.0
    %100 = vmatpush2.msra.mxu0 0.0
    %101 = vmatprep.subr.mxu0 0.0
    %102 = vmatpush2.msra.mxu0 0.0
    %103 = vmatprep.subr.mxu0 0.0
    %104 = vmatpush2.msra.mxu0 0.0
    %105 = vmatprep.subr.mxu0 0.0
    %106 = vmatpush2.msra.mxu0 0.0
    %107 = vmatprep.subr.mxu0 0.0
    %108 = vmatpush2.msra.mxu0 0.0
    %109 = vmatprep.subr.mxu0 0.0
    %110 = vmatpush2.msra.mxu0 0.0
    %111 = vmatprep.subr.mxu0 0.0
    %112 = vmatpush2.msra.mxu0 0.0
    %113 = vmatprep.subr.mxu0 0.0
    %114 = vmatpush2.msra.mxu0 0.0
    %115 = vmatprep.subr.mxu0 0.0
    %116 = vmatpush2.msra.mxu0 0.0
    %117 = vmatprep.subr.mxu0 0.0
    %118 = vmatpush2.msra.mxu0 0.0
    %119 = vmatprep.subr.mxu0 0.0
    %120 = vmatpush2.msra.mxu0 0.0
    %121 = vmatprep.subr.mxu0 0.0
    %122 = vmatpush2.msra.mxu0 0.0
    %123 = vmatprep.subr.mxu0 0.0
    %124 = vmatpush2.msra.mxu0 0.0
    %125 = vmatprep.subr.mxu0 0.0
    %126 = vmatpush2.msra.mxu0 0.0
    %127 = vmatprep.mubr.f32.mxu0 0.0
    %128 = vmatmul.mubr.f32.gmra.mxu0 %v58
    %v129 = vpop.f32.mrf.mxu0
    %v130 = vadd.f32 0.0, %v129
    %v131 = vpop.f32.mrf.mxu0
    %132 = vmatprep.mubr.f32.mxu0 0.0
    %133 = vmatmul.mubr.f32.gmra.mxu0 %v61
    %v134 = vpop.f32.mrf.mxu0
    %v135 = vadd.f32 0.0, %v134
    %v136 = vpop.f32.mrf.mxu0
    %137 = vdwg.mxu0
    %v138 = vld [vmem:[#allocation2] sm:$0xff]
    %v139 = vld [vmem:[#allocation2 + $0x8] sm:$0xff]
    %v140 = vadd.f32 %v138, %v130
    %v141 = vadd.f32 %v139, %v135
    %vm142 = vcmp.ge.f32.partialorder %v140, 1.0
    %vm143 = vcmp.ge.f32.partialorder %v141, 1.0
    %v144 = vsel %vm142, 0.0, %v140
    %v145 = vsel %vm143, 0.0, %v141
    %146 = vst [vmem:[#allocation2] sm:$0xff] %v144
    %147 = vst [vmem:[#allocation2 + $0x8] sm:$0xff] %v145
    %v148 = vsel %vm142, 1.0, 0.0
    %v149 = vsel %vm143, 1.0, 0.0
    %v150 = vpack.c.bf16 %v149, %v148
    %v155 = vunpack.c.l.b16 %v49
    %v156 = vunpack.c.l.b16 %v50
    %v157 = vunpack.c.l.b16 %v51
    %v158 = vunpack.c.l.b16 %v52
    %v159 = vpack.c.b16 %v156, %v155
    %v160 = vpack.c.b16 %v158, %v157
    %vm161 = vcmask 130048
    %v163 = vsel %vm161, %v159, 0
    %v166 = vsel %vm161, %v160, 0
    %168 = vmatprep.subr.bf16.mxu0 0
    %169 = vmatpush1.bf16.msra.mxu0 0
    %170 = vmatprep.subr.bf16.mxu0 0
    %171 = vmatpush1.bf16.msra.mxu0 0
    %172 = vmatprep.subr.bf16.mxu0 0
    %173 = vmatpush1.bf16.msra.mxu0 0
    %174 = vmatprep.subr.bf16.mxu0 0
    %175 = vmatpush1.bf16.msra.mxu0 0
    %176 = vmatprep.subr.bf16.mxu0 0
    %177 = vmatpush1.bf16.msra.mxu0 0
    %178 = vmatprep.subr.bf16.mxu0 0
    %179 = vmatpush1.bf16.msra.mxu0 0
    %180 = vmatprep.subr.bf16.mxu0 0
    %181 = vmatpush1.bf16.msra.mxu0 0
    %182 = vmatprep.subr.bf16.mxu0 0
    %183 = vmatpush1.bf16.msra.mxu0 %v150
    %184 = vmatprep.subr.bf16.mxu0 0
    %185 = vmatpush2.bf16.msra.mxu0 0
    %186 = vmatprep.subr.bf16.mxu0 0
    %187 = vmatpush2.bf16.msra.mxu0 0
    %188 = vmatprep.subr.bf16.mxu0 0
    %189 = vmatpush2.bf16.msra.mxu0 0
    %190 = vmatprep.subr.bf16.mxu0 0
    %191 = vmatpush2.bf16.msra.mxu0 0
    %192 = vmatprep.subr.bf16.mxu0 0
    %193 = vmatpush2.bf16.msra.mxu0 0
    %194 = vmatprep.subr.bf16.mxu0 0
    %195 = vmatpush2.bf16.msra.mxu0 0
    %196 = vmatprep.subr.bf16.mxu0 0
    %197 = vmatpush2.bf16.msra.mxu0 0
    %198 = vmatprep.subr.bf16.mxu0 0
    %199 = vmatpush2.bf16.msra.mxu0 0
    %200 = vmatprep.mubr.bf16.mxu0 0
    %201 = vmatmul.mubr.bf16.gmra.mxu0 %v163
    %v202 = vpop.f32.mrf.mxu0
    %v203 = vadd.f32 0.0, %v202
    %v204 = vpop.f32.mrf.mxu0
    %v205 = vpop.f32.mrf.mxu0
    %v206 = vadd.f32 0.0, %v205
    %v207 = vpop.f32.mrf.mxu0
    %208 = vmatprep.mubr.bf16.mxu0 0
    %209 = vmatmul.mubr.bf16.gmra.mxu0 %v166
    %v210 = vpop.f32.mrf.mxu0
    %v211 = vadd.f32 0.0, %v210
    %v212 = vpop.f32.mrf.mxu0
    %v213 = vpop.f32.mrf.mxu0
    %v214 = vadd.f32 0.0, %v213
    %v215 = vpop.f32.mrf.mxu0
    %216 = vdwg.mxu0
    %v217 = vld [vmem:[#allocation3] sm:$0xff]
    %v218 = vld [vmem:[#allocation3 + $0x8] sm:$0xff]
    %v219 = vld [vmem:[#allocation3 + $0x10] sm:$0xff]
    %v220 = vld [vmem:[#allocation3 + $0x18] sm:$0xff]
    %v221 = vadd.f32 %v217, %v203
    %v222 = vadd.f32 %v218, %v206
    %v223 = vadd.f32 %v219, %v211
    %v224 = vadd.f32 %v220, %v214
    %vm225 = vcmp.ge.f32.partialorder %v221, 1.0
    %vm226 = vcmp.ge.f32.partialorder %v222, 1.0
    %vm227 = vcmp.ge.f32.partialorder %v223, 1.0
    %vm228 = vcmp.ge.f32.partialorder %v224, 1.0
    %v229 = vsel %vm225, 0.0, %v221
    %v230 = vsel %vm226, 0.0, %v222
    %v231 = vsel %vm227, 0.0, %v223
    %v232 = vsel %vm228, 0.0, %v224
    %233 = vst [vmem:[#allocation3] sm:$0xff] %v229
    %234 = vst [vmem:[#allocation3 + $0x8] sm:$0xff] %v230
    %235 = vst [vmem:[#allocation3 + $0x10] sm:$0xff] %v231
    %236 = vst [vmem:[#allocation3 + $0x18] sm:$0xff] %v232
    %v237 = vsel %vm225, 1.0, 0.0
    %v238 = vsel %vm226, 1.0, 0.0
    %v239 = vsel %vm227, 1.0, 0.0
    %v240 = vsel %vm228, 1.0, 0.0
    %v241 = vpack.c.bf16 %v238, %v237
    %v242 = vpack.c.bf16 %v240, %v239
    %v245 = vunpack.c.l.b16 %v53
    %v246 = vunpack.c.l.b16 %v54
    %v247 = vpack.c.b16 %v246, %v245
    %vm248 = vcmask 261120
    %v250 = vsel %vm248, %v247, 0
    %252 = vmatprep.subr.bf16.mxu0 0
    %253 = vmatpush1.bf16.msra.mxu0 0
    %254 = vmatprep.subr.bf16.mxu0 0
    %255 = vmatpush1.bf16.msra.mxu0 0
    %256 = vmatprep.subr.bf16.mxu0 0
    %257 = vmatpush1.bf16.msra.mxu0 0
    %258 = vmatprep.subr.bf16.mxu0 0
    %259 = vmatpush1.bf16.msra.mxu0 0
    %260 = vmatprep.subr.bf16.mxu0 0
    %261 = vmatpush1.bf16.msra.mxu0 0
    %262 = vmatprep.subr.bf16.mxu0 0
    %263 = vmatpush1.bf16.msra.mxu0 0
    %264 = vmatprep.subr.bf16.mxu0 0
    %265 = vmatpush1.bf16.msra.mxu0 %v242
    %266 = vmatprep.subr.bf16.mxu0 0
    %267 = vmatpush1.bf16.msra.mxu0 %v241
    %268 = vmatprep.subr.bf16.mxu0 0
    %269 = vmatpush2.bf16.msra.mxu0 0
    %270 = vmatprep.subr.bf16.mxu0 0
    %271 = vmatpush2.bf16.msra.mxu0 0
    %272 = vmatprep.subr.bf16.mxu0 0
    %273 = vmatpush2.bf16.msra.mxu0 0
    %274 = vmatprep.subr.bf16.mxu0 0
    %275 = vmatpush2.bf16.msra.mxu0 0
    %276 = vmatprep.subr.bf16.mxu0 0
    %277 = vmatpush2.bf16.msra.mxu0 0
    %278 = vmatprep.subr.bf16.mxu0 0
    %279 = vmatpush2.bf16.msra.mxu0 0
    %280 = vmatprep.subr.bf16.mxu0 0
    %281 = vmatpush2.bf16.msra.mxu0 0
    %282 = vmatprep.subr.bf16.mxu0 0
    %283 = vmatpush2.bf16.msra.mxu0 0
    %284 = vmatprep.mubr.bf16.mxu0 0
    %285 = vmatmul.mubr.bf16.gmra.mxu0 %v250
    %v286 = vpop.f32.mrf.mxu0
    %v287 = vadd.f32 0.0, %v286
    %v288 = vpop.f32.mrf.mxu0
    %v289 = vpop.f32.mrf.mxu0
    %v290 = vadd.f32 0.0, %v289
    %v291 = vpop.f32.mrf.mxu0
    %292 = vdwg.mxu0
    %v293 = vld [vmem:[#allocation4] sm:$0xff]
    %v294 = vld [vmem:[#allocation4 + $0x8] sm:$0xff]
    %v295 = vadd.f32 %v293, %v287
    %v296 = vadd.f32 %v294, %v290
    %vm297 = vcmp.ge.f32.partialorder %v295, 1.0
    %vm298 = vcmp.ge.f32.partialorder %v296, 1.0
    %v299 = vsel %vm297, 0.0, %v295
    %v300 = vsel %vm298, 0.0, %v296
    %301 = vst [vmem:[#allocation4] sm:$0xff] %v299
    %302 = vst [vmem:[#allocation4 + $0x8] sm:$0xff] %v300
    %v303 = vsel %vm297, 1.0, 0.0
    %v304 = vsel %vm298, 1.0, 0.0
    %v305 = vld [vmem:[#allocation8] sm:$0xff]
    %v306 = vld [vmem:[#allocation8 + $0x8] sm:$0xff]
    %v307 = vadd.f32 %v305, %v303
    %v308 = vadd.f32 %v306, %v304
    %309 = vst [vmem:[#allocation8] sm:$0xff] %v307
    %310 = vst [vmem:[#allocation8 + $0x8] sm:$0xff] %v308
    %s311 = scalar_lea.vmem [#allocation5], 8
    %v312 = vld [vmem:[%s311] sm:$0xff]
    %313 = vmatprep.subr.mxu0 0.0
    %314 = vmatpush1.msra.mxu0 0.0
    %315 = vmatprep.subr.mxu0 0.0
    %316 = vmatpush1.msra.mxu0 0.0
    %317 = vmatprep.subr.mxu0 0.0
    %318 = vmatpush1.msra.mxu0 0.0
    %319 = vmatprep.subr.mxu0 0.0
    %320 = vmatpush1.msra.mxu0 0.0
    %321 = vmatprep.subr.mxu0 0.0
    %322 = vmatpush1.msra.mxu0 0.0
    %323 = vmatprep.subr.mxu0 0.0
    %324 = vmatpush1.msra.mxu0 0.0
    %325 = vmatprep.subr.mxu0 0.0
    %326 = vmatpush1.msra.mxu0 0.0
    %327 = vmatprep.subr.mxu0 0.0
    %328 = vmatpush1.msra.mxu0 0.0
    %329 = vmatprep.subr.mxu0 0.0
    %330 = vmatpush1.msra.mxu0 0.0
    %331 = vmatprep.subr.mxu0 0.0
    %332 = vmatpush1.msra.mxu0 0.0
    %333 = vmatprep.subr.mxu0 0.0
    %334 = vmatpush1.msra.mxu0 0.0
    %335 = vmatprep.subr.mxu0 0.0
    %336 = vmatpush1.msra.mxu0 0.0
    %337 = vmatprep.subr.mxu0 0.0
    %338 = vmatpush1.msra.mxu0 0.0
    %339 = vmatprep.subr.mxu0 0.0
    %340 = vmatpush1.msra.mxu0 0.0
    %341 = vmatprep.subr.mxu0 0.0
    %342 = vmatpush1.msra.mxu0 0.0
    %343 = vmatprep.subr.mxu0 0.0
    %344 = vmatpush1.msra.mxu0 %v312
    %345 = vmatprep.subr.mxu0 0.0
    %346 = vmatpush2.msra.mxu0 0.0
    %347 = vmatprep.subr.mxu0 0.0
    %348 = vmatpush2.msra.mxu0 0.0
    %349 = vmatprep.subr.mxu0 0.0
    %350 = vmatpush2.msra.mxu0 0.0
    %351 = vmatprep.subr.mxu0 0.0
    %352 = vmatpush2.msra.mxu0 0.0
    %353 = vmatprep.subr.mxu0 0.0
    %354 = vmatpush2.msra.mxu0 0.0
    %355 = vmatprep.subr.mxu0 0.0
    %356 = vmatpush2.msra.mxu0 0.0
    %357 = vmatprep.subr.mxu0 0.0
    %358 = vmatpush2.msra.mxu0 0.0
    %359 = vmatprep.subr.mxu0 0.0
    %360 = vmatpush2.msra.mxu0 0.0
    %361 = vmatprep.subr.mxu0 0.0
    %362 = vmatpush2.msra.mxu0 0.0
    %363 = vmatprep.subr.mxu0 0.0
    %364 = vmatpush2.msra.mxu0 0.0
    %365 = vmatprep.subr.mxu0 0.0
    %366 = vmatpush2.msra.mxu0 0.0
    %367 = vmatprep.subr.mxu0 0.0
    %368 = vmatpush2.msra.mxu0 0.0
    %369 = vmatprep.subr.mxu0 0.0
    %370 = vmatpush2.msra.mxu0 0.0
    %371 = vmatprep.subr.mxu0 0.0
    %372 = vmatpush2.msra.mxu0 0.0
    %373 = vmatprep.subr.mxu0 0.0
    %374 = vmatpush2.msra.mxu0 0.0
    %375 = vmatprep.subr.mxu0 0.0
    %376 = vmatpush2.msra.mxu0 0.0
    %377 = vmatprep.mubr.f32.mxu0 0.0
    %378 = vmatmul.mubr.f32.gmra.mxu0 %v58
    %v379 = vpop.f32.mrf.mxu0
    %v380 = vadd.f32 0.0, %v379
    %v381 = vpop.f32.mrf.mxu0
    %382 = vmatprep.mubr.f32.mxu0 0.0
    %383 = vmatmul.mubr.f32.gmra.mxu0 %v61
    %v384 = vpop.f32.mrf.mxu0
    %v385 = vadd.f32 0.0, %v384
    %v386 = vpop.f32.mrf.mxu0
    %387 = vdwg.mxu0
    %v388 = vld [vmem:[#allocation2] sm:$0xff]
    %v389 = vld [vmem:[#allocation2 + $0x8] sm:$0xff]
    %v390 = vadd.f32 %v388, %v380
    %v391 = vadd.f32 %v389, %v385
    %vm392 = vcmp.ge.f32.partialorder %v390, 1.0
    %vm393 = vcmp.ge.f32.partialorder %v391, 1.0
    %v394 = vsel %vm392, 0.0, %v390
    %v395 = vsel %vm393, 0.0, %v391
    %396 = vst [vmem:[#allocation2] sm:$0xff] %v394
    %397 = vst [vmem:[#allocation2 + $0x8] sm:$0xff] %v395
    %v398 = vsel %vm392, 1.0, 0.0
    %v399 = vsel %vm393, 1.0, 0.0
    %v400 = vpack.c.bf16 %v399, %v398
    %401 = vmatprep.subr.bf16.mxu0 0
    %402 = vmatpush1.bf16.msra.mxu0 0
    %403 = vmatprep.subr.bf16.mxu0 0
    %404 = vmatpush1.bf16.msra.mxu0 0
    %405 = vmatprep.subr.bf16.mxu0 0
    %406 = vmatpush1.bf16.msra.mxu0 0
    %407 = vmatprep.subr.bf16.mxu0 0
    %408 = vmatpush1.bf16.msra.mxu0 0
    %409 = vmatprep.subr.bf16.mxu0 0
    %410 = vmatpush1.bf16.msra.mxu0 0
    %411 = vmatprep.subr.bf16.mxu0 0
    %412 = vmatpush1.bf16.msra.mxu0 0
    %413 = vmatprep.subr.bf16.mxu0 0
    %414 = vmatpush1.bf16.msra.mxu0 0
    %415 = vmatprep.subr.bf16.mxu0 0
    %416 = vmatpush1.bf16.msra.mxu0 %v400
    %417 = vmatprep.subr.bf16.mxu0 0
    %418 = vmatpush2.bf16.msra.mxu0 0
    %419 = vmatprep.subr.bf16.mxu0 0
    %420 = vmatpush2.bf16.msra.mxu0 0
    %421 = vmatprep.subr.bf16.mxu0 0
    %422 = vmatpush2.bf16.msra.mxu0 0
    %423 = vmatprep.subr.bf16.mxu0 0
    %424 = vmatpush2.bf16.msra.mxu0 0
    %425 = vmatprep.subr.bf16.mxu0 0
    %426 = vmatpush2.bf16.msra.mxu0 0
    %427 = vmatprep.subr.bf16.mxu0 0
    %428 = vmatpush2.bf16.msra.mxu0 0
    %429 = vmatprep.subr.bf16.mxu0 0
    %430 = vmatpush2.bf16.msra.mxu0 0
    %431 = vmatprep.subr.bf16.mxu0 0
    %432 = vmatpush2.bf16.msra.mxu0 0
    %433 = vmatprep.mubr.bf16.mxu0 0
    %434 = vmatmul.mubr.bf16.gmra.mxu0 %v163
    %v435 = vpop.f32.mrf.mxu0
    %v436 = vadd.f32 0.0, %v435
    %v437 = vpop.f32.mrf.mxu0
    %v438 = vpop.f32.mrf.mxu0
    %v439 = vadd.f32 0.0, %v438
    %v440 = vpop.f32.mrf.mxu0
    %441 = vmatprep.mubr.bf16.mxu0 0
    %442 = vmatmul.mubr.bf16.gmra.mxu0 %v166
    %v443 = vpop.f32.mrf.mxu0
    %v444 = vadd.f32 0.0, %v443
    %v445 = vpop.f32.mrf.mxu0
    %v446 = vpop.f32.mrf.mxu0
    %v447 = vadd.f32 0.0, %v446
    %v448 = vpop.f32.mrf.mxu0
    %449 = vdwg.mxu0
    %v450 = vld [vmem:[#allocation3] sm:$0xff]
    %v451 = vld [vmem:[#allocation3 + $0x8] sm:$0xff]
    %v452 = vld [vmem:[#allocation3 + $0x10] sm:$0xff]
    %v453 = vld [vmem:[#allocation3 + $0x18] sm:$0xff]
    %v454 = vadd.f32 %v450, %v436
    %v455 = vadd.f32 %v451, %v439
    %v456 = vadd.f32 %v452, %v444
    %v457 = vadd.f32 %v453, %v447
    %vm458 = vcmp.ge.f32.partialorder %v454, 1.0
    %vm459 = vcmp.ge.f32.partialorder %v455, 1.0
    %vm460 = vcmp.ge.f32.partialorder %v456, 1.0
    %vm461 = vcmp.ge.f32.partialorder %v457, 1.0
    %v462 = vsel %vm458, 0.0, %v454
    %v463 = vsel %vm459, 0.0, %v455
    %v464 = vsel %vm460, 0.0, %v456
    %v465 = vsel %vm461, 0.0, %v457
    %466 = vst [vmem:[#allocation3] sm:$0xff] %v462
    %467 = vst [vmem:[#allocation3 + $0x8] sm:$0xff] %v463
    %468 = vst [vmem:[#allocation3 + $0x10] sm:$0xff] %v464
    %469 = vst [vmem:[#allocation3 + $0x18] sm:$0xff] %v465
    %v470 = vsel %vm458, 1.0, 0.0
    %v471 = vsel %vm459, 1.0, 0.0
    %v472 = vsel %vm460, 1.0, 0.0
    %v473 = vsel %vm461, 1.0, 0.0
    %v474 = vpack.c.bf16 %v471, %v470
    %v475 = vpack.c.bf16 %v473, %v472
    %476 = vmatprep.subr.bf16.mxu0 0
    %477 = vmatpush1.bf16.msra.mxu0 0
    %478 = vmatprep.subr.bf16.mxu0 0
    %479 = vmatpush1.bf16.msra.mxu0 0
    %480 = vmatprep.subr.bf16.mxu0 0
    %481 = vmatpush1.bf16.msra.mxu0 0
    %482 = vmatprep.subr.bf16.mxu0 0
    %483 = vmatpush1.bf16.msra.mxu0 0
    %484 = vmatprep.subr.bf16.mxu0 0
    %485 = vmatpush1.bf16.msra.mxu0 0
    %486 = vmatprep.subr.bf16.mxu0 0
    %487 = vmatpush1.bf16.msra.mxu0 0
    %488 = vmatprep.subr.bf16.mxu0 0
    %489 = vmatpush1.bf16.msra.mxu0 %v475
    %490 = vmatprep.subr.bf16.mxu0 0
    %491 = vmatpush1.bf16.msra.mxu0 %v474
    %492 = vmatprep.subr.bf16.mxu0 0
    %493 = vmatpush2.bf16.msra.mxu0 0
    %494 = vmatprep.subr.bf16.mxu0 0
    %495 = vmatpush2.bf16.msra.mxu0 0
    %496 = vmatprep.subr.bf16.mxu0 0
    %497 = vmatpush2.bf16.msra.mxu0 0
    %498 = vmatprep.subr.bf16.mxu0 0
    %499 = vmatpush2.bf16.msra.mxu0 0
    %500 = vmatprep.subr.bf16.mxu0 0
    %501 = vmatpush2.bf16.msra.mxu0 0
    %502 = vmatprep.subr.bf16.mxu0 0
    %503 = vmatpush2.bf16.msra.mxu0 0
    %504 = vmatprep.subr.bf16.mxu0 0
    %505 = vmatpush2.bf16.msra.mxu0 0
    %506 = vmatprep.subr.bf16.mxu0 0
    %507 = vmatpush2.bf16.msra.mxu0 0
    %508 = vmatprep.mubr.bf16.mxu0 0
    %509 = vmatmul.mubr.bf16.gmra.mxu0 %v250
    %v510 = vpop.f32.mrf.mxu0
    %v511 = vadd.f32 0.0, %v510
    %v512 = vpop.f32.mrf.mxu0
    %v513 = vpop.f32.mrf.mxu0
    %v514 = vadd.f32 0.0, %v513
    %v515 = vpop.f32.mrf.mxu0
    %516 = vdwg.mxu0
    %v517 = vld [vmem:[#allocation4] sm:$0xff]
    %v518 = vld [vmem:[#allocation4 + $0x8] sm:$0xff]
    %v519 = vadd.f32 %v517, %v511
    %v520 = vadd.f32 %v518, %v514
    %vm521 = vcmp.ge.f32.partialorder %v519, 1.0
    %vm522 = vcmp.ge.f32.partialorder %v520, 1.0
    %v523 = vsel %vm521, 0.0, %v519
    %v524 = vsel %vm522, 0.0, %v520
    %525 = vst [vmem:[#allocation4] sm:$0xff] %v523
    %526 = vst [vmem:[#allocation4 + $0x8] sm:$0xff] %v524
    %v527 = vsel %vm521, 1.0, 0.0
    %v528 = vsel %vm522, 1.0, 0.0
    %v529 = vld [vmem:[#allocation8] sm:$0xff]
    %v530 = vld [vmem:[#allocation8 + $0x8] sm:$0xff]
    %v531 = vadd.f32 %v529, %v527
    %v532 = vadd.f32 %v530, %v528
    %533 = vst [vmem:[#allocation8] sm:$0xff] %v531
    %534 = vst [vmem:[#allocation8 + $0x8] sm:$0xff] %v532
    %s535 = scalar_lea.vmem [#allocation5], 16
    %v536 = vld [vmem:[%s535] sm:$0xff]
    %537 = vmatprep.subr.mxu0 0.0
    %538 = vmatpush1.msra.mxu0 0.0
    %539 = vmatprep.subr.mxu0 0.0
    %540 = vmatpush1.msra.mxu0 0.0
    %541 = vmatprep.subr.mxu0 0.0
    %542 = vmatpush1.msra.mxu0 0.0
    %543 = vmatprep.subr.mxu0 0.0
    %544 = vmatpush1.msra.mxu0 0.0
    %545 = vmatprep.subr.mxu0 0.0
    %546 = vmatpush1.msra.mxu0 0.0
    %547 = vmatprep.subr.mxu0 0.0
    %548 = vmatpush1.msra.mxu0 0.0
    %549 = vmatprep.subr.mxu0 0.0
    %550 = vmatpush1.msra.mxu0 0.0
    %551 = vmatprep.subr.mxu0 0.0
    %552 = vmatpush1.msra.mxu0 0.0
    %553 = vmatprep.subr.mxu0 0.0
    %554 = vmatpush1.msra.mxu0 0.0
    %555 = vmatprep.subr.mxu0 0.0
    %556 = vmatpush1.msra.mxu0 0.0
    %557 = vmatprep.subr.mxu0 0.0
    %558 = vmatpush1.msra.mxu0 0.0
    %559 = vmatprep.subr.mxu0 0.0
    %560 = vmatpush1.msra.mxu0 0.0
    %561 = vmatprep.subr.mxu0 0.0
    %562 = vmatpush1.msra.mxu0 0.0
    %563 = vmatprep.subr.mxu0 0.0
    %564 = vmatpush1.msra.mxu0 0.0
    %565 = vmatprep.subr.mxu0 0.0
    %566 = vmatpush1.msra.mxu0 0.0
    %567 = vmatprep.subr.mxu0 0.0
    %568 = vmatpush1.msra.mxu0 %v536
    %569 = vmatprep.subr.mxu0 0.0
    %570 = vmatpush2.msra.mxu0 0.0
    %571 = vmatprep.subr.mxu0 0.0
    %572 = vmatpush2.msra.mxu0 0.0
    %573 = vmatprep.subr.mxu0 0.0
    %574 = vmatpush2.msra.mxu0 0.0
    %575 = vmatprep.subr.mxu0 0.0
    %576 = vmatpush2.msra.mxu0 0.0
    %577 = vmatprep.subr.mxu0 0.0
    %578 = vmatpush2.msra.mxu0 0.0
    %579 = vmatprep.subr.mxu0 0.0
    %580 = vmatpush2.msra.mxu0 0.0
    %581 = vmatprep.subr.mxu0 0.0
    %582 = vmatpush2.msra.mxu0 0.0
    %583 = vmatprep.subr.mxu0 0.0
    %584 = vmatpush2.msra.mxu0 0.0
    %585 = vmatprep.subr.mxu0 0.0
    %586 = vmatpush2.msra.mxu0 0.0
    %587 = vmatprep.subr.mxu0 0.0
    %588 = vmatpush2.msra.mxu0 0.0
    %589 = vmatprep.subr.mxu0 0.0
    %590 = vmatpush2.msra.mxu0 0.0
    %591 = vmatprep.subr.mxu0 0.0
    %592 = vmatpush2.msra.mxu0 0.0
    %593 = vmatprep.subr.mxu0 0.0
    %594 = vmatpush2.msra.mxu0 0.0
    %595 = vmatprep.subr.mxu0 0.0
    %596 = vmatpush2.msra.mxu0 0.0
    %597 = vmatprep.subr.mxu0 0.0
    %598 = vmatpush2.msra.mxu0 0.0
    %599 = vmatprep.subr.mxu0 0.0
    %600 = vmatpush2.msra.mxu0 0.0
    %601 = vmatprep.mubr.f32.mxu0 0.0
    %602 = vmatmul.mubr.f32.gmra.mxu0 %v58
    %v603 = vpop.f32.mrf.mxu0
    %v604 = vadd.f32 0.0, %v603
    %v605 = vpop.f32.mrf.mxu0
    %606 = vmatprep.mubr.f32.mxu0 0.0
    %607 = vmatmul.mubr.f32.gmra.mxu0 %v61
    %v608 = vpop.f32.mrf.mxu0
    %v609 = vadd.f32 0.0, %v608
    %v610 = vpop.f32.mrf.mxu0
    %611 = vdwg.mxu0
    %v612 = vld [vmem:[#allocation2] sm:$0xff]
    %v613 = vld [vmem:[#allocation2 + $0x8] sm:$0xff]
    %v614 = vadd.f32 %v612, %v604
    %v615 = vadd.f32 %v613, %v609
    %vm616 = vcmp.ge.f32.partialorder %v614, 1.0
    %vm617 = vcmp.ge.f32.partialorder %v615, 1.0
    %v618 = vsel %vm616, 0.0, %v614
    %v619 = vsel %vm617, 0.0, %v615
    %620 = vst [vmem:[#allocation2] sm:$0xff] %v618
    %621 = vst [vmem:[#allocation2 + $0x8] sm:$0xff] %v619
    %v622 = vsel %vm616, 1.0, 0.0
    %v623 = vsel %vm617, 1.0, 0.0
    %v624 = vpack.c.bf16 %v623, %v622
    %625 = vmatprep.subr.bf16.mxu0 0
    %626 = vmatpush1.bf16.msra.mxu0 0
    %627 = vmatprep.subr.bf16.mxu0 0
    %628 = vmatpush1.bf16.msra.mxu0 0
    %629 = vmatprep.subr.bf16.mxu0 0
    %630 = vmatpush1.bf16.msra.mxu0 0
    %631 = vmatprep.subr.bf16.mxu0 0
    %632 = vmatpush1.bf16.msra.mxu0 0
    %633 = vmatprep.subr.bf16.mxu0 0
    %634 = vmatpush1.bf16.msra.mxu0 0
    %635 = vmatprep.subr.bf16.mxu0 0
    %636 = vmatpush1.bf16.msra.mxu0 0
    %637 = vmatprep.subr.bf16.mxu0 0
    %638 = vmatpush1.bf16.msra.mxu0 0
    %639 = vmatprep.subr.bf16.mxu0 0
    %640 = vmatpush1.bf16.msra.mxu0 %v624
    %641 = vmatprep.subr.bf16.mxu0 0
    %642 = vmatpush2.bf16.msra.mxu0 0
    %643 = vmatprep.subr.bf16.mxu0 0
    %644 = vmatpush2.bf16.msra.mxu0 0
    %645 = vmatprep.subr.bf16.mxu0 0
    %646 = vmatpush2.bf16.msra.mxu0 0
    %647 = vmatprep.subr.bf16.mxu0 0
    %648 = vmatpush2.bf16.msra.mxu0 0
    %649 = vmatprep.subr.bf16.mxu0 0
    %650 = vmatpush2.bf16.msra.mxu0 0
    %651 = vmatprep.subr.bf16.mxu0 0
    %652 = vmatpush2.bf16.msra.mxu0 0
    %653 = vmatprep.subr.bf16.mxu0 0
    %654 = vmatpush2.bf16.msra.mxu0 0
    %655 = vmatprep.subr.bf16.mxu0 0
    %656 = vmatpush2.bf16.msra.mxu0 0
    %657 = vmatprep.mubr.bf16.mxu0 0
    %658 = vmatmul.mubr.bf16.gmra.mxu0 %v163
    %v659 = vpop.f32.mrf.mxu0
    %v660 = vadd.f32 0.0, %v659
    %v661 = vpop.f32.mrf.mxu0
    %v662 = vpop.f32.mrf.mxu0
    %v663 = vadd.f32 0.0, %v662
    %v664 = vpop.f32.mrf.mxu0
    %665 = vmatprep.mubr.bf16.mxu0 0
    %666 = vmatmul.mubr.bf16.gmra.mxu0 %v166
    %v667 = vpop.f32.mrf.mxu0
    %v668 = vadd.f32 0.0, %v667
    %v669 = vpop.f32.mrf.mxu0
    %v670 = vpop.f32.mrf.mxu0
    %v671 = vadd.f32 0.0, %v670
    %v672 = vpop.f32.mrf.mxu0
    %673 = vdwg.mxu0
    %v674 = vld [vmem:[#allocation3] sm:$0xff]
    %v675 = vld [vmem:[#allocation3 + $0x8] sm:$0xff]
    %v676 = vld [vmem:[#allocation3 + $0x10] sm:$0xff]
    %v677 = vld [vmem:[#allocation3 + $0x18] sm:$0xff]
    %v678 = vadd.f32 %v674, %v660
    %v679 = vadd.f32 %v675, %v663
    %v680 = vadd.f32 %v676, %v668
    %v681 = vadd.f32 %v677, %v671
    %vm682 = vcmp.ge.f32.partialorder %v678, 1.0
    %vm683 = vcmp.ge.f32.partialorder %v679, 1.0
    %vm684 = vcmp.ge.f32.partialorder %v680, 1.0
    %vm685 = vcmp.ge.f32.partialorder %v681, 1.0
    %v686 = vsel %vm682, 0.0, %v678
    %v687 = vsel %vm683, 0.0, %v679
    %v688 = vsel %vm684, 0.0, %v680
    %v689 = vsel %vm685, 0.0, %v681
    %690 = vst [vmem:[#allocation3] sm:$0xff] %v686
    %691 = vst [vmem:[#allocation3 + $0x8] sm:$0xff] %v687
    %692 = vst [vmem:[#allocation3 + $0x10] sm:$0xff] %v688
    %693 = vst [vmem:[#allocation3 + $0x18] sm:$0xff] %v689
    %v694 = vsel %vm682, 1.0, 0.0
    %v695 = vsel %vm683, 1.0, 0.0
    %v696 = vsel %vm684, 1.0, 0.0
    %v697 = vsel %vm685, 1.0, 0.0
    %v698 = vpack.c.bf16 %v695, %v694
    %v699 = vpack.c.bf16 %v697, %v696
    %700 = vmatprep.subr.bf16.mxu0 0
    %701 = vmatpush1.bf16.msra.mxu0 0
    %702 = vmatprep.subr.bf16.mxu0 0
    %703 = vmatpush1.bf16.msra.mxu0 0
    %704 = vmatprep.subr.bf16.mxu0 0
    %705 = vmatpush1.bf16.msra.mxu0 0
    %706 = vmatprep.subr.bf16.mxu0 0
    %707 = vmatpush1.bf16.msra.mxu0 0
    %708 = vmatprep.subr.bf16.mxu0 0
    %709 = vmatpush1.bf16.msra.mxu0 0
    %710 = vmatprep.subr.bf16.mxu0 0
    %711 = vmatpush1.bf16.msra.mxu0 0
    %712 = vmatprep.subr.bf16.mxu0 0
    %713 = vmatpush1.bf16.msra.mxu0 %v699
    %714 = vmatprep.subr.bf16.mxu0 0
    %715 = vmatpush1.bf16.msra.mxu0 %v698
    %716 = vmatprep.subr.bf16.mxu0 0
    %717 = vmatpush2.bf16.msra.mxu0 0
    %718 = vmatprep.subr.bf16.mxu0 0
    %719 = vmatpush2.bf16.msra.mxu0 0
    %720 = vmatprep.subr.bf16.mxu0 0
    %721 = vmatpush2.bf16.msra.mxu0 0
    %722 = vmatprep.subr.bf16.mxu0 0
    %723 = vmatpush2.bf16.msra.mxu0 0
    %724 = vmatprep.subr.bf16.mxu0 0
    %725 = vmatpush2.bf16.msra.mxu0 0
    %726 = vmatprep.subr.bf16.mxu0 0
    %727 = vmatpush2.bf16.msra.mxu0 0
    %728 = vmatprep.subr.bf16.mxu0 0
    %729 = vmatpush2.bf16.msra.mxu0 0
    %730 = vmatprep.subr.bf16.mxu0 0
    %731 = vmatpush2.bf16.msra.mxu0 0
    %732 = vmatprep.mubr.bf16.mxu0 0
    %733 = vmatmul.mubr.bf16.gmra.mxu0 %v250
    %v734 = vpop.f32.mrf.mxu0
    %v735 = vadd.f32 0.0, %v734
    %v736 = vpop.f32.mrf.mxu0
    %v737 = vpop.f32.mrf.mxu0
    %v738 = vadd.f32 0.0, %v737
    %v739 = vpop.f32.mrf.mxu0
    %740 = vdwg.mxu0
    %v741 = vld [vmem:[#allocation4] sm:$0xff]
    %v742 = vld [vmem:[#allocation4 + $0x8] sm:$0xff]
    %v743 = vadd.f32 %v741, %v735
    %v744 = vadd.f32 %v742, %v738
    %vm745 = vcmp.ge.f32.partialorder %v743, 1.0
    %vm746 = vcmp.ge.f32.partialorder %v744, 1.0
    %v747 = vsel %vm745, 0.0, %v743
    %v748 = vsel %vm746, 0.0, %v744
    %749 = vst [vmem:[#allocation4] sm:$0xff] %v747
    %750 = vst [vmem:[#allocation4 + $0x8] sm:$0xff] %v748
    %v751 = vsel %vm745, 1.0, 0.0
    %v752 = vsel %vm746, 1.0, 0.0
    %v753 = vld [vmem:[#allocation8] sm:$0xff]
    %v754 = vld [vmem:[#allocation8 + $0x8] sm:$0xff]
    %v755 = vadd.f32 %v753, %v751
    %v756 = vadd.f32 %v754, %v752
    %757 = vst [vmem:[#allocation8] sm:$0xff] %v755
    %758 = vst [vmem:[#allocation8 + $0x8] sm:$0xff] %v756
    %s759 = scalar_lea.vmem [#allocation5], 24
    %v760 = vld [vmem:[%s759] sm:$0xff]
    %761 = vmatprep.subr.mxu0 0.0
    %762 = vmatpush1.msra.mxu0 0.0
    %763 = vmatprep.subr.mxu0 0.0
    %764 = vmatpush1.msra.mxu0 0.0
    %765 = vmatprep.subr.mxu0 0.0
    %766 = vmatpush1.msra.mxu0 0.0
    %767 = vmatprep.subr.mxu0 0.0
    %768 = vmatpush1.msra.mxu0 0.0
    %769 = vmatprep.subr.mxu0 0.0
    %770 = vmatpush1.msra.mxu0 0.0
    %771 = vmatprep.subr.mxu0 0.0
    %772 = vmatpush1.msra.mxu0 0.0
    %773 = vmatprep.subr.mxu0 0.0
    %774 = vmatpush1.msra.mxu0 0.0
    %775 = vmatprep.subr.mxu0 0.0
    %776 = vmatpush1.msra.mxu0 0.0
    %777 = vmatprep.subr.mxu0 0.0
    %778 = vmatpush1.msra.mxu0 0.0
    %779 = vmatprep.subr.mxu0 0.0
    %780 = vmatpush1.msra.mxu0 0.0
    %781 = vmatprep.subr.mxu0 0.0
    %782 = vmatpush1.msra.mxu0 0.0
    %783 = vmatprep.subr.mxu0 0.0
    %784 = vmatpush1.msra.mxu0 0.0
    %785 = vmatprep.subr.mxu0 0.0
    %786 = vmatpush1.msra.mxu0 0.0
    %787 = vmatprep.subr.mxu0 0.0
    %788 = vmatpush1.msra.mxu0 0.0
    %789 = vmatprep.subr.mxu0 0.0
    %790 = vmatpush1.msra.mxu0 0.0
    %791 = vmatprep.subr.mxu0 0.0
    %792 = vmatpush1.msra.mxu0 %v760
    %793 = vmatprep.subr.mxu0 0.0
    %794 = vmatpush2.msra.mxu0 0.0
    %795 = vmatprep.subr.mxu0 0.0
    %796 = vmatpush2.msra.mxu0 0.0
    %797 = vmatprep.subr.mxu0 0.0
    %798 = vmatpush2.msra.mxu0 0.0
    %799 = vmatprep.subr.mxu0 0.0
    %800 = vmatpush2.msra.mxu0 0.0
    %801 = vmatprep.subr.mxu0 0.0
    %802 = vmatpush2.msra.mxu0 0.0
    %803 = vmatprep.subr.mxu0 0.0
    %804 = vmatpush2.msra.mxu0 0.0
    %805 = vmatprep.subr.mxu0 0.0
    %806 = vmatpush2.msra.mxu0 0.0
    %807 = vmatprep.subr.mxu0 0.0
    %808 = vmatpush2.msra.mxu0 0.0
    %809 = vmatprep.subr.mxu0 0.0
    %810 = vmatpush2.msra.mxu0 0.0
    %811 = vmatprep.subr.mxu0 0.0
    %812 = vmatpush2.msra.mxu0 0.0
    %813 = vmatprep.subr.mxu0 0.0
    %814 = vmatpush2.msra.mxu0 0.0
    %815 = vmatprep.subr.mxu0 0.0
    %816 = vmatpush2.msra.mxu0 0.0
    %817 = vmatprep.subr.mxu0 0.0
    %818 = vmatpush2.msra.mxu0 0.0
    %819 = vmatprep.subr.mxu0 0.0
    %820 = vmatpush2.msra.mxu0 0.0
    %821 = vmatprep.subr.mxu0 0.0
    %822 = vmatpush2.msra.mxu0 0.0
    %823 = vmatprep.subr.mxu0 0.0
    %824 = vmatpush2.msra.mxu0 0.0
    %825 = vmatprep.mubr.f32.mxu0 0.0
    %826 = vmatmul.mubr.f32.gmra.mxu0 %v58
    %v827 = vpop.f32.mrf.mxu0
    %v828 = vadd.f32 0.0, %v827
    %v829 = vpop.f32.mrf.mxu0
    %830 = vmatprep.mubr.f32.mxu0 0.0
    %831 = vmatmul.mubr.f32.gmra.mxu0 %v61
    %v832 = vpop.f32.mrf.mxu0
    %v833 = vadd.f32 0.0, %v832
    %v834 = vpop.f32.mrf.mxu0
    %835 = vdwg.mxu0
    %v836 = vld [vmem:[#allocation2] sm:$0xff]
    %v837 = vld [vmem:[#allocation2 + $0x8] sm:$0xff]
    %v838 = vadd.f32 %v836, %v828
    %v839 = vadd.f32 %v837, %v833
    %vm840 = vcmp.ge.f32.partialorder %v838, 1.0
    %vm841 = vcmp.ge.f32.partialorder %v839, 1.0
    %v842 = vsel %vm840, 0.0, %v838
    %v843 = vsel %vm841, 0.0, %v839
    %844 = vst [vmem:[#allocation2] sm:$0xff] %v842
    %845 = vst [vmem:[#allocation2 + $0x8] sm:$0xff] %v843
    %v846 = vsel %vm840, 1.0, 0.0
    %v847 = vsel %vm841, 1.0, 0.0
    %v848 = vpack.c.bf16 %v847, %v846
    %849 = vmatprep.subr.bf16.mxu0 0
    %850 = vmatpush1.bf16.msra.mxu0 0
    %851 = vmatprep.subr.bf16.mxu0 0
    %852 = vmatpush1.bf16.msra.mxu0 0
    %853 = vmatprep.subr.bf16.mxu0 0
    %854 = vmatpush1.bf16.msra.mxu0 0
    %855 = vmatprep.subr.bf16.mxu0 0
    %856 = vmatpush1.bf16.msra.mxu0 0
    %857 = vmatprep.subr.bf16.mxu0 0
    %858 = vmatpush1.bf16.msra.mxu0 0
    %859 = vmatprep.subr.bf16.mxu0 0
    %860 = vmatpush1.bf16.msra.mxu0 0
    %861 = vmatprep.subr.bf16.mxu0 0
    %862 = vmatpush1.bf16.msra.mxu0 0
    %863 = vmatprep.subr.bf16.mxu0 0
    %864 = vmatpush1.bf16.msra.mxu0 %v848
    %865 = vmatprep.subr.bf16.mxu0 0
    %866 = vmatpush2.bf16.msra.mxu0 0
    %867 = vmatprep.subr.bf16.mxu0 0
    %868 = vmatpush2.bf16.msra.mxu0 0
    %869 = vmatprep.subr.bf16.mxu0 0
    %870 = vmatpush2.bf16.msra.mxu0 0
    %871 = vmatprep.subr.bf16.mxu0 0
    %872 = vmatpush2.bf16.msra.mxu0 0
    %873 = vmatprep.subr.bf16.mxu0 0
    %874 = vmatpush2.bf16.msra.mxu0 0
    %875 = vmatprep.subr.bf16.mxu0 0
    %876 = vmatpush2.bf16.msra.mxu0 0
    %877 = vmatprep.subr.bf16.mxu0 0
    %878 = vmatpush2.bf16.msra.mxu0 0
    %879 = vmatprep.subr.bf16.mxu0 0
    %880 = vmatpush2.bf16.msra.mxu0 0
    %881 = vmatprep.mubr.bf16.mxu0 0
    %882 = vmatmul.mubr.bf16.gmra.mxu0 %v163
    %v883 = vpop.f32.mrf.mxu0
    %v884 = vadd.f32 0.0, %v883
    %v885 = vpop.f32.mrf.mxu0
    %v886 = vpop.f32.mrf.mxu0
    %v887 = vadd.f32 0.0, %v886
    %v888 = vpop.f32.mrf.mxu0
    %889 = vmatprep.mubr.bf16.mxu0 0
    %890 = vmatmul.mubr.bf16.gmra.mxu0 %v166
    %v891 = vpop.f32.mrf.mxu0
    %v892 = vadd.f32 0.0, %v891
    %v893 = vpop.f32.mrf.mxu0
    %v894 = vpop.f32.mrf.mxu0
    %v895 = vadd.f32 0.0, %v894
    %v896 = vpop.f32.mrf.mxu0
    %897 = vdwg.mxu0
    %v898 = vld [vmem:[#allocation3] sm:$0xff]
    %v899 = vld [vmem:[#allocation3 + $0x8] sm:$0xff]
    %v900 = vld [vmem:[#allocation3 + $0x10] sm:$0xff]
    %v901 = vld [vmem:[#allocation3 + $0x18] sm:$0xff]
    %v902 = vadd.f32 %v898, %v884
    %v903 = vadd.f32 %v899, %v887
    %v904 = vadd.f32 %v900, %v892
    %v905 = vadd.f32 %v901, %v895
    %vm906 = vcmp.ge.f32.partialorder %v902, 1.0
    %vm907 = vcmp.ge.f32.partialorder %v903, 1.0
    %vm908 = vcmp.ge.f32.partialorder %v904, 1.0
    %vm909 = vcmp.ge.f32.partialorder %v905, 1.0
    %v910 = vsel %vm906, 0.0, %v902
    %v911 = vsel %vm907, 0.0, %v903
    %v912 = vsel %vm908, 0.0, %v904
    %v913 = vsel %vm909, 0.0, %v905
    %914 = vst [vmem:[#allocation3] sm:$0xff] %v910
    %915 = vst [vmem:[#allocation3 + $0x8] sm:$0xff] %v911
    %916 = vst [vmem:[#allocation3 + $0x10] sm:$0xff] %v912
    %917 = vst [vmem:[#allocation3 + $0x18] sm:$0xff] %v913
    %v918 = vsel %vm906, 1.0, 0.0
    %v919 = vsel %vm907, 1.0, 0.0
    %v920 = vsel %vm908, 1.0, 0.0
    %v921 = vsel %vm909, 1.0, 0.0
    %v922 = vpack.c.bf16 %v919, %v918
    %v923 = vpack.c.bf16 %v921, %v920
    %924 = vmatprep.subr.bf16.mxu0 0
    %925 = vmatpush1.bf16.msra.mxu0 0
    %926 = vmatprep.subr.bf16.mxu0 0
    %927 = vmatpush1.bf16.msra.mxu0 0
    %928 = vmatprep.subr.bf16.mxu0 0
    %929 = vmatpush1.bf16.msra.mxu0 0
    %930 = vmatprep.subr.bf16.mxu0 0
    %931 = vmatpush1.bf16.msra.mxu0 0
    %932 = vmatprep.subr.bf16.mxu0 0
    %933 = vmatpush1.bf16.msra.mxu0 0
    %934 = vmatprep.subr.bf16.mxu0 0
    %935 = vmatpush1.bf16.msra.mxu0 0
    %936 = vmatprep.subr.bf16.mxu0 0
    %937 = vmatpush1.bf16.msra.mxu0 %v923
    %938 = vmatprep.subr.bf16.mxu0 0
    %939 = vmatpush1.bf16.msra.mxu0 %v922
    %940 = vmatprep.subr.bf16.mxu0 0
    %941 = vmatpush2.bf16.msra.mxu0 0
    %942 = vmatprep.subr.bf16.mxu0 0
    %943 = vmatpush2.bf16.msra.mxu0 0
    %944 = vmatprep.subr.bf16.mxu0 0
    %945 = vmatpush2.bf16.msra.mxu0 0
    %946 = vmatprep.subr.bf16.mxu0 0
    %947 = vmatpush2.bf16.msra.mxu0 0
    %948 = vmatprep.subr.bf16.mxu0 0
    %949 = vmatpush2.bf16.msra.mxu0 0
    %950 = vmatprep.subr.bf16.mxu0 0
    %951 = vmatpush2.bf16.msra.mxu0 0
    %952 = vmatprep.subr.bf16.mxu0 0
    %953 = vmatpush2.bf16.msra.mxu0 0
    %954 = vmatprep.subr.bf16.mxu0 0
    %955 = vmatpush2.bf16.msra.mxu0 0
    %956 = vmatprep.mubr.bf16.mxu0 0
    %957 = vmatmul.mubr.bf16.gmra.mxu0 %v250
    %v958 = vpop.f32.mrf.mxu0
    %v959 = vadd.f32 0.0, %v958
    %v960 = vpop.f32.mrf.mxu0
    %v961 = vpop.f32.mrf.mxu0
    %v962 = vadd.f32 0.0, %v961
    %v963 = vpop.f32.mrf.mxu0
    %964 = vdwg.mxu0
    %v965 = vld [vmem:[#allocation4] sm:$0xff]
    %v966 = vld [vmem:[#allocation4 + $0x8] sm:$0xff]
    %v967 = vadd.f32 %v965, %v959
    %v968 = vadd.f32 %v966, %v962
    %vm969 = vcmp.ge.f32.partialorder %v967, 1.0
    %vm970 = vcmp.ge.f32.partialorder %v968, 1.0
    %v971 = vsel %vm969, 0.0, %v967
    %v972 = vsel %vm970, 0.0, %v968
    %973 = vst [vmem:[#allocation4] sm:$0xff] %v971
    %974 = vst [vmem:[#allocation4 + $0x8] sm:$0xff] %v972
    %v975 = vsel %vm969, 1.0, 0.0
    %v976 = vsel %vm970, 1.0, 0.0
    %v977 = vld [vmem:[#allocation8] sm:$0xff]
    %v978 = vld [vmem:[#allocation8 + $0x8] sm:$0xff]
    %v979 = vadd.f32 %v977, %v975
    %v980 = vadd.f32 %v978, %v976
    %981 = vst [vmem:[#allocation8] sm:$0xff] %v979
    %982 = vst [vmem:[#allocation8 + $0x8] sm:$0xff] %v980
    %s983 = scalar_lea.vmem [#allocation5], 32
    %v984 = vld [vmem:[%s983] sm:$0xff]
    %985 = vmatprep.subr.mxu0 0.0
    %986 = vmatpush1.msra.mxu0 0.0
    %987 = vmatprep.subr.mxu0 0.0
    %988 = vmatpush1.msra.mxu0 0.0
    %989 = vmatprep.subr.mxu0 0.0
    %990 = vmatpush1.msra.mxu0 0.0
    %991 = vmatprep.subr.mxu0 0.0
    %992 = vmatpush1.msra.mxu0 0.0
    %993 = vmatprep.subr.mxu0 0.0
    %994 = vmatpush1.msra.mxu0 0.0
    %995 = vmatprep.subr.mxu0 0.0
    %996 = vmatpush1.msra.mxu0 0.0
    %997 = vmatprep.subr.mxu0 0.0
    %998 = vmatpush1.msra.mxu0 0.0
    %999 = vmatprep.subr.mxu0 0.0
    %1000 = vmatpush1.msra.mxu0 0.0
    %1001 = vmatprep.subr.mxu0 0.0
    %1002 = vmatpush1.msra.mxu0 0.0
    %1003 = vmatprep.subr.mxu0 0.0
    %1004 = vmatpush1.msra.mxu0 0.0
    %1005 = vmatprep.subr.mxu0 0.0
    %1006 = vmatpush1.msra.mxu0 0.0
    %1007 = vmatprep.subr.mxu0 0.0
    %1008 = vmatpush1.msra.mxu0 0.0
    %1009 = vmatprep.subr.mxu0 0.0
    %1010 = vmatpush1.msra.mxu0 0.0
    %1011 = vmatprep.subr.mxu0 0.0
    %1012 = vmatpush1.msra.mxu0 0.0
    %1013 = vmatprep.subr.mxu0 0.0
    %1014 = vmatpush1.msra.mxu0 0.0
    %1015 = vmatprep.subr.mxu0 0.0
    %1016 = vmatpush1.msra.mxu0 %v984
    %1017 = vmatprep.subr.mxu0 0.0
    %1018 = vmatpush2.msra.mxu0 0.0
    %1019 = vmatprep.subr.mxu0 0.0
    %1020 = vmatpush2.msra.mxu0 0.0
    %1021 = vmatprep.subr.mxu0 0.0
    %1022 = vmatpush2.msra.mxu0 0.0
    %1023 = vmatprep.subr.mxu0 0.0
    %1024 = vmatpush2.msra.mxu0 0.0
    %1025 = vmatprep.subr.mxu0 0.0
    %1026 = vmatpush2.msra.mxu0 0.0
    %1027 = vmatprep.subr.mxu0 0.0
    %1028 = vmatpush2.msra.mxu0 0.0
    %1029 = vmatprep.subr.mxu0 0.0
    %1030 = vmatpush2.msra.mxu0 0.0
    %1031 = vmatprep.subr.mxu0 0.0
    %1032 = vmatpush2.msra.mxu0 0.0
    %1033 = vmatprep.subr.mxu0 0.0
    %1034 = vmatpush2.msra.mxu0 0.0
    %1035 = vmatprep.subr.mxu0 0.0
    %1036 = vmatpush2.msra.mxu0 0.0
    %1037 = vmatprep.subr.mxu0 0.0
    %1038 = vmatpush2.msra.mxu0 0.0
    %1039 = vmatprep.subr.mxu0 0.0
    %1040 = vmatpush2.msra.mxu0 0.0
    %1041 = vmatprep.subr.mxu0 0.0
    %1042 = vmatpush2.msra.mxu0 0.0
    %1043 = vmatprep.subr.mxu0 0.0
    %1044 = vmatpush2.msra.mxu0 0.0
    %1045 = vmatprep.subr.mxu0 0.0
    %1046 = vmatpush2.msra.mxu0 0.0
    %1047 = vmatprep.subr.mxu0 0.0
    %1048 = vmatpush2.msra.mxu0 0.0
    %1049 = vmatprep.mubr.f32.mxu0 0.0
    %1050 = vmatmul.mubr.f32.gmra.mxu0 %v58
    %v1051 = vpop.f32.mrf.mxu0
    %v1052 = vadd.f32 0.0, %v1051
    %v1053 = vpop.f32.mrf.mxu0
    %1054 = vmatprep.mubr.f32.mxu0 0.0
    %1055 = vmatmul.mubr.f32.gmra.mxu0 %v61
    %v1056 = vpop.f32.mrf.mxu0
    %v1057 = vadd.f32 0.0, %v1056
    %v1058 = vpop.f32.mrf.mxu0
    %1059 = vdwg.mxu0
    %v1060 = vld [vmem:[#allocation2] sm:$0xff]
    %v1061 = vld [vmem:[#allocation2 + $0x8] sm:$0xff]
    %v1062 = vadd.f32 %v1060, %v1052
    %v1063 = vadd.f32 %v1061, %v1057
    %vm1064 = vcmp.ge.f32.partialorder %v1062, 1.0
    %vm1065 = vcmp.ge.f32.partialorder %v1063, 1.0
    %v1066 = vsel %vm1064, 0.0, %v1062
    %v1067 = vsel %vm1065, 0.0, %v1063
    %1068 = vst [vmem:[#allocation2] sm:$0xff] %v1066
    %1069 = vst [vmem:[#allocation2 + $0x8] sm:$0xff] %v1067
    %v1070 = vsel %vm1064, 1.0, 0.0
    %v1071 = vsel %vm1065, 1.0, 0.0
    %v1072 = vpack.c.bf16 %v1071, %v1070
    %1073 = vmatprep.subr.bf16.mxu0 0
    %1074 = vmatpush1.bf16.msra.mxu0 0
    %1075 = vmatprep.subr.bf16.mxu0 0
    %1076 = vmatpush1.bf16.msra.mxu0 0
    %1077 = vmatprep.subr.bf16.mxu0 0
    %1078 = vmatpush1.bf16.msra.mxu0 0
    %1079 = vmatprep.subr.bf16.mxu0 0
    %1080 = vmatpush1.bf16.msra.mxu0 0
    %1081 = vmatprep.subr.bf16.mxu0 0
    %1082 = vmatpush1.bf16.msra.mxu0 0
    %1083 = vmatprep.subr.bf16.mxu0 0
    %1084 = vmatpush1.bf16.msra.mxu0 0
    %1085 = vmatprep.subr.bf16.mxu0 0
    %1086 = vmatpush1.bf16.msra.mxu0 0
    %1087 = vmatprep.subr.bf16.mxu0 0
    %1088 = vmatpush1.bf16.msra.mxu0 %v1072
    %1089 = vmatprep.subr.bf16.mxu0 0
    %1090 = vmatpush2.bf16.msra.mxu0 0
    %1091 = vmatprep.subr.bf16.mxu0 0
    %1092 = vmatpush2.bf16.msra.mxu0 0
    %1093 = vmatprep.subr.bf16.mxu0 0
    %1094 = vmatpush2.bf16.msra.mxu0 0
    %1095 = vmatprep.subr.bf16.mxu0 0
    %1096 = vmatpush2.bf16.msra.mxu0 0
    %1097 = vmatprep.subr.bf16.mxu0 0
    %1098 = vmatpush2.bf16.msra.mxu0 0
    %1099 = vmatprep.subr.bf16.mxu0 0
    %1100 = vmatpush2.bf16.msra.mxu0 0
    %1101 = vmatprep.subr.bf16.mxu0 0
    %1102 = vmatpush2.bf16.msra.mxu0 0
    %1103 = vmatprep.subr.bf16.mxu0 0
    %1104 = vmatpush2.bf16.msra.mxu0 0
    %1105 = vmatprep.mubr.bf16.mxu0 0
    %1106 = vmatmul.mubr.bf16.gmra.mxu0 %v163
    %v1107 = vpop.f32.mrf.mxu0
    %v1108 = vadd.f32 0.0, %v1107
    %v1109 = vpop.f32.mrf.mxu0
    %v1110 = vpop.f32.mrf.mxu0
    %v1111 = vadd.f32 0.0, %v1110
    %v1112 = vpop.f32.mrf.mxu0
    %1113 = vmatprep.mubr.bf16.mxu0 0
    %1114 = vmatmul.mubr.bf16.gmra.mxu0 %v166
    %v1115 = vpop.f32.mrf.mxu0
    %v1116 = vadd.f32 0.0, %v1115
    %v1117 = vpop.f32.mrf.mxu0
    %v1118 = vpop.f32.mrf.mxu0
    %v1119 = vadd.f32 0.0, %v1118
    %v1120 = vpop.f32.mrf.mxu0
    %1121 = vdwg.mxu0
    %v1122 = vld [vmem:[#allocation3] sm:$0xff]
    %v1123 = vld [vmem:[#allocation3 + $0x8] sm:$0xff]
    %v1124 = vld [vmem:[#allocation3 + $0x10] sm:$0xff]
    %v1125 = vld [vmem:[#allocation3 + $0x18] sm:$0xff]
    %v1126 = vadd.f32 %v1122, %v1108
    %v1127 = vadd.f32 %v1123, %v1111
    %v1128 = vadd.f32 %v1124, %v1116
    %v1129 = vadd.f32 %v1125, %v1119
    %vm1130 = vcmp.ge.f32.partialorder %v1126, 1.0
    %vm1131 = vcmp.ge.f32.partialorder %v1127, 1.0
    %vm1132 = vcmp.ge.f32.partialorder %v1128, 1.0
    %vm1133 = vcmp.ge.f32.partialorder %v1129, 1.0
    %v1134 = vsel %vm1130, 0.0, %v1126
    %v1135 = vsel %vm1131, 0.0, %v1127
    %v1136 = vsel %vm1132, 0.0, %v1128
    %v1137 = vsel %vm1133, 0.0, %v1129
    %1138 = vst [vmem:[#allocation3] sm:$0xff] %v1134
    %1139 = vst [vmem:[#allocation3 + $0x8] sm:$0xff] %v1135
    %1140 = vst [vmem:[#allocation3 + $0x10] sm:$0xff] %v1136
    %1141 = vst [vmem:[#allocation3 + $0x18] sm:$0xff] %v1137
    %v1142 = vsel %vm1130, 1.0, 0.0
    %v1143 = vsel %vm1131, 1.0, 0.0
    %v1144 = vsel %vm1132, 1.0, 0.0
    %v1145 = vsel %vm1133, 1.0, 0.0
    %v1146 = vpack.c.bf16 %v1143, %v1142
    %v1147 = vpack.c.bf16 %v1145, %v1144
    %1148 = vmatprep.subr.bf16.mxu0 0
    %1149 = vmatpush1.bf16.msra.mxu0 0
    %1150 = vmatprep.subr.bf16.mxu0 0
    %1151 = vmatpush1.bf16.msra.mxu0 0
    %1152 = vmatprep.subr.bf16.mxu0 0
    %1153 = vmatpush1.bf16.msra.mxu0 0
    %1154 = vmatprep.subr.bf16.mxu0 0
    %1155 = vmatpush1.bf16.msra.mxu0 0
    %1156 = vmatprep.subr.bf16.mxu0 0
    %1157 = vmatpush1.bf16.msra.mxu0 0
    %1158 = vmatprep.subr.bf16.mxu0 0
    %1159 = vmatpush1.bf16.msra.mxu0 0
    %1160 = vmatprep.subr.bf16.mxu0 0
    %1161 = vmatpush1.bf16.msra.mxu0 %v1147
    %1162 = vmatprep.subr.bf16.mxu0 0
    %1163 = vmatpush1.bf16.msra.mxu0 %v1146
    %1164 = vmatprep.subr.bf16.mxu0 0
    %1165 = vmatpush2.bf16.msra.mxu0 0
    %1166 = vmatprep.subr.bf16.mxu0 0
    %1167 = vmatpush2.bf16.msra.mxu0 0
    %1168 = vmatprep.subr.bf16.mxu0 0
    %1169 = vmatpush2.bf16.msra.mxu0 0
    %1170 = vmatprep.subr.bf16.mxu0 0
    %1171 = vmatpush2.bf16.msra.mxu0 0
    %1172 = vmatprep.subr.bf16.mxu0 0
    %1173 = vmatpush2.bf16.msra.mxu0 0
    %1174 = vmatprep.subr.bf16.mxu0 0
    %1175 = vmatpush2.bf16.msra.mxu0 0
    %1176 = vmatprep.subr.bf16.mxu0 0
    %1177 = vmatpush2.bf16.msra.mxu0 0
    %1178 = vmatprep.subr.bf16.mxu0 0
    %1179 = vmatpush2.bf16.msra.mxu0 0
    %1180 = vmatprep.mubr.bf16.mxu0 0
    %1181 = vmatmul.mubr.bf16.gmra.mxu0 %v250
    %v1182 = vpop.f32.mrf.mxu0
    %v1183 = vadd.f32 0.0, %v1182
    %v1184 = vpop.f32.mrf.mxu0
    %v1185 = vpop.f32.mrf.mxu0
    %v1186 = vadd.f32 0.0, %v1185
    %v1187 = vpop.f32.mrf.mxu0
    %1188 = vdwg.mxu0
    %v1189 = vld [vmem:[#allocation4] sm:$0xff]
    %v1190 = vld [vmem:[#allocation4 + $0x8] sm:$0xff]
    %v1191 = vadd.f32 %v1189, %v1183
    %v1192 = vadd.f32 %v1190, %v1186
    %vm1193 = vcmp.ge.f32.partialorder %v1191, 1.0
    %vm1194 = vcmp.ge.f32.partialorder %v1192, 1.0
    %v1195 = vsel %vm1193, 0.0, %v1191
    %v1196 = vsel %vm1194, 0.0, %v1192
    %1197 = vst [vmem:[#allocation4] sm:$0xff] %v1195
    %1198 = vst [vmem:[#allocation4 + $0x8] sm:$0xff] %v1196
    %v1199 = vsel %vm1193, 1.0, 0.0
    %v1200 = vsel %vm1194, 1.0, 0.0
    %v1201 = vld [vmem:[#allocation8] sm:$0xff]
    %v1202 = vld [vmem:[#allocation8 + $0x8] sm:$0xff]
    %v1203 = vadd.f32 %v1201, %v1199
    %v1204 = vadd.f32 %v1202, %v1200
    %1205 = vst [vmem:[#allocation8] sm:$0xff] %v1203
    %1206 = vst [vmem:[#allocation8 + $0x8] sm:$0xff] %v1204
    %s1207 = scalar_lea.vmem [#allocation5], 40
    %v1208 = vld [vmem:[%s1207] sm:$0xff]
    %1209 = vmatprep.subr.mxu0 0.0
    %1210 = vmatpush1.msra.mxu0 0.0
    %1211 = vmatprep.subr.mxu0 0.0
    %1212 = vmatpush1.msra.mxu0 0.0
    %1213 = vmatprep.subr.mxu0 0.0
    %1214 = vmatpush1.msra.mxu0 0.0
    %1215 = vmatprep.subr.mxu0 0.0
    %1216 = vmatpush1.msra.mxu0 0.0
    %1217 = vmatprep.subr.mxu0 0.0
    %1218 = vmatpush1.msra.mxu0 0.0
    %1219 = vmatprep.subr.mxu0 0.0
    %1220 = vmatpush1.msra.mxu0 0.0
    %1221 = vmatprep.subr.mxu0 0.0
    %1222 = vmatpush1.msra.mxu0 0.0
    %1223 = vmatprep.subr.mxu0 0.0
    %1224 = vmatpush1.msra.mxu0 0.0
    %1225 = vmatprep.subr.mxu0 0.0
    %1226 = vmatpush1.msra.mxu0 0.0
    %1227 = vmatprep.subr.mxu0 0.0
    %1228 = vmatpush1.msra.mxu0 0.0
    %1229 = vmatprep.subr.mxu0 0.0
    %1230 = vmatpush1.msra.mxu0 0.0
    %1231 = vmatprep.subr.mxu0 0.0
    %1232 = vmatpush1.msra.mxu0 0.0
    %1233 = vmatprep.subr.mxu0 0.0
    %1234 = vmatpush1.msra.mxu0 0.0
    %1235 = vmatprep.subr.mxu0 0.0
    %1236 = vmatpush1.msra.mxu0 0.0
    %1237 = vmatprep.subr.mxu0 0.0
    %1238 = vmatpush1.msra.mxu0 0.0
    %1239 = vmatprep.subr.mxu0 0.0
    %1240 = vmatpush1.msra.mxu0 %v1208
    %1241 = vmatprep.subr.mxu0 0.0
    %1242 = vmatpush2.msra.mxu0 0.0
    %1243 = vmatprep.subr.mxu0 0.0
    %1244 = vmatpush2.msra.mxu0 0.0
    %1245 = vmatprep.subr.mxu0 0.0
    %1246 = vmatpush2.msra.mxu0 0.0
    %1247 = vmatprep.subr.mxu0 0.0
    %1248 = vmatpush2.msra.mxu0 0.0
    %1249 = vmatprep.subr.mxu0 0.0
    %1250 = vmatpush2.msra.mxu0 0.0
    %1251 = vmatprep.subr.mxu0 0.0
    %1252 = vmatpush2.msra.mxu0 0.0
    %1253 = vmatprep.subr.mxu0 0.0
    %1254 = vmatpush2.msra.mxu0 0.0
    %1255 = vmatprep.subr.mxu0 0.0
    %1256 = vmatpush2.msra.mxu0 0.0
    %1257 = vmatprep.subr.mxu0 0.0
    %1258 = vmatpush2.msra.mxu0 0.0
    %1259 = vmatprep.subr.mxu0 0.0
    %1260 = vmatpush2.msra.mxu0 0.0
    %1261 = vmatprep.subr.mxu0 0.0
    %1262 = vmatpush2.msra.mxu0 0.0
    %1263 = vmatprep.subr.mxu0 0.0
    %1264 = vmatpush2.msra.mxu0 0.0
    %1265 = vmatprep.subr.mxu0 0.0
    %1266 = vmatpush2.msra.mxu0 0.0
    %1267 = vmatprep.subr.mxu0 0.0
    %1268 = vmatpush2.msra.mxu0 0.0
    %1269 = vmatprep.subr.mxu0 0.0
    %1270 = vmatpush2.msra.mxu0 0.0
    %1271 = vmatprep.subr.mxu0 0.0
    %1272 = vmatpush2.msra.mxu0 0.0
    %1273 = vmatprep.mubr.f32.mxu0 0.0
    %1274 = vmatmul.mubr.f32.gmra.mxu0 %v58
    %v1275 = vpop.f32.mrf.mxu0
    %v1276 = vadd.f32 0.0, %v1275
    %v1277 = vpop.f32.mrf.mxu0
    %1278 = vmatprep.mubr.f32.mxu0 0.0
    %1279 = vmatmul.mubr.f32.gmra.mxu0 %v61
    %v1280 = vpop.f32.mrf.mxu0
    %v1281 = vadd.f32 0.0, %v1280
    %v1282 = vpop.f32.mrf.mxu0
    %1283 = vdwg.mxu0
    %v1284 = vld [vmem:[#allocation2] sm:$0xff]
    %v1285 = vld [vmem:[#allocation2 + $0x8] sm:$0xff]
    %v1286 = vadd.f32 %v1284, %v1276
    %v1287 = vadd.f32 %v1285, %v1281
    %vm1288 = vcmp.ge.f32.partialorder %v1286, 1.0
    %vm1289 = vcmp.ge.f32.partialorder %v1287, 1.0
    %v1290 = vsel %vm1288, 0.0, %v1286
    %v1291 = vsel %vm1289, 0.0, %v1287
    %1292 = vst [vmem:[#allocation2] sm:$0xff] %v1290
    %1293 = vst [vmem:[#allocation2 + $0x8] sm:$0xff] %v1291
    %v1294 = vsel %vm1288, 1.0, 0.0
    %v1295 = vsel %vm1289, 1.0, 0.0
    %v1296 = vpack.c.bf16 %v1295, %v1294
    %1297 = vmatprep.subr.bf16.mxu0 0
    %1298 = vmatpush1.bf16.msra.mxu0 0
    %1299 = vmatprep.subr.bf16.mxu0 0
    %1300 = vmatpush1.bf16.msra.mxu0 0
    %1301 = vmatprep.subr.bf16.mxu0 0
    %1302 = vmatpush1.bf16.msra.mxu0 0
    %1303 = vmatprep.subr.bf16.mxu0 0
    %1304 = vmatpush1.bf16.msra.mxu0 0
    %1305 = vmatprep.subr.bf16.mxu0 0
    %1306 = vmatpush1.bf16.msra.mxu0 0
    %1307 = vmatprep.subr.bf16.mxu0 0
    %1308 = vmatpush1.bf16.msra.mxu0 0
    %1309 = vmatprep.subr.bf16.mxu0 0
    %1310 = vmatpush1.bf16.msra.mxu0 0
    %1311 = vmatprep.subr.bf16.mxu0 0
    %1312 = vmatpush1.bf16.msra.mxu0 %v1296
    %1313 = vmatprep.subr.bf16.mxu0 0
    %1314 = vmatpush2.bf16.msra.mxu0 0
    %1315 = vmatprep.subr.bf16.mxu0 0
    %1316 = vmatpush2.bf16.msra.mxu0 0
    %1317 = vmatprep.subr.bf16.mxu0 0
    %1318 = vmatpush2.bf16.msra.mxu0 0
    %1319 = vmatprep.subr.bf16.mxu0 0
    %1320 = vmatpush2.bf16.msra.mxu0 0
    %1321 = vmatprep.subr.bf16.mxu0 0
    %1322 = vmatpush2.bf16.msra.mxu0 0
    %1323 = vmatprep.subr.bf16.mxu0 0
    %1324 = vmatpush2.bf16.msra.mxu0 0
    %1325 = vmatprep.subr.bf16.mxu0 0
    %1326 = vmatpush2.bf16.msra.mxu0 0
    %1327 = vmatprep.subr.bf16.mxu0 0
    %1328 = vmatpush2.bf16.msra.mxu0 0
    %1329 = vmatprep.mubr.bf16.mxu0 0
    %1330 = vmatmul.mubr.bf16.gmra.mxu0 %v163
    %v1331 = vpop.f32.mrf.mxu0
    %v1332 = vadd.f32 0.0, %v1331
    %v1333 = vpop.f32.mrf.mxu0
    %v1334 = vpop.f32.mrf.mxu0
    %v1335 = vadd.f32 0.0, %v1334
    %v1336 = vpop.f32.mrf.mxu0
    %1337 = vmatprep.mubr.bf16.mxu0 0
    %1338 = vmatmul.mubr.bf16.gmra.mxu0 %v166
    %v1339 = vpop.f32.mrf.mxu0
    %v1340 = vadd.f32 0.0, %v1339
    %v1341 = vpop.f32.mrf.mxu0
    %v1342 = vpop.f32.mrf.mxu0
    %v1343 = vadd.f32 0.0, %v1342
    %v1344 = vpop.f32.mrf.mxu0
    %1345 = vdwg.mxu0
    %v1346 = vld [vmem:[#allocation3] sm:$0xff]
    %v1347 = vld [vmem:[#allocation3 + $0x8] sm:$0xff]
    %v1348 = vld [vmem:[#allocation3 + $0x10] sm:$0xff]
    %v1349 = vld [vmem:[#allocation3 + $0x18] sm:$0xff]
    %v1350 = vadd.f32 %v1346, %v1332
    %v1351 = vadd.f32 %v1347, %v1335
    %v1352 = vadd.f32 %v1348, %v1340
    %v1353 = vadd.f32 %v1349, %v1343
    %vm1354 = vcmp.ge.f32.partialorder %v1350, 1.0
    %vm1355 = vcmp.ge.f32.partialorder %v1351, 1.0
    %vm1356 = vcmp.ge.f32.partialorder %v1352, 1.0
    %vm1357 = vcmp.ge.f32.partialorder %v1353, 1.0
    %v1358 = vsel %vm1354, 0.0, %v1350
    %v1359 = vsel %vm1355, 0.0, %v1351
    %v1360 = vsel %vm1356, 0.0, %v1352
    %v1361 = vsel %vm1357, 0.0, %v1353
    %1362 = vst [vmem:[#allocation3] sm:$0xff] %v1358
    %1363 = vst [vmem:[#allocation3 + $0x8] sm:$0xff] %v1359
    %1364 = vst [vmem:[#allocation3 + $0x10] sm:$0xff] %v1360
    %1365 = vst [vmem:[#allocation3 + $0x18] sm:$0xff] %v1361
    %v1366 = vsel %vm1354, 1.0, 0.0
    %v1367 = vsel %vm1355, 1.0, 0.0
    %v1368 = vsel %vm1356, 1.0, 0.0
    %v1369 = vsel %vm1357, 1.0, 0.0
    %v1370 = vpack.c.bf16 %v1367, %v1366
    %v1371 = vpack.c.bf16 %v1369, %v1368
    %1372 = vmatprep.subr.bf16.mxu0 0
    %1373 = vmatpush1.bf16.msra.mxu0 0
    %1374 = vmatprep.subr.bf16.mxu0 0
    %1375 = vmatpush1.bf16.msra.mxu0 0
    %1376 = vmatprep.subr.bf16.mxu0 0
    %1377 = vmatpush1.bf16.msra.mxu0 0
    %1378 = vmatprep.subr.bf16.mxu0 0
    %1379 = vmatpush1.bf16.msra.mxu0 0
    %1380 = vmatprep.subr.bf16.mxu0 0
    %1381 = vmatpush1.bf16.msra.mxu0 0
    %1382 = vmatprep.subr.bf16.mxu0 0
    %1383 = vmatpush1.bf16.msra.mxu0 0
    %1384 = vmatprep.subr.bf16.mxu0 0
    %1385 = vmatpush1.bf16.msra.mxu0 %v1371
    %1386 = vmatprep.subr.bf16.mxu0 0
    %1387 = vmatpush1.bf16.msra.mxu0 %v1370
    %1388 = vmatprep.subr.bf16.mxu0 0
    %1389 = vmatpush2.bf16.msra.mxu0 0
    %1390 = vmatprep.subr.bf16.mxu0 0
    %1391 = vmatpush2.bf16.msra.mxu0 0
    %1392 = vmatprep.subr.bf16.mxu0 0
    %1393 = vmatpush2.bf16.msra.mxu0 0
    %1394 = vmatprep.subr.bf16.mxu0 0
    %1395 = vmatpush2.bf16.msra.mxu0 0
    %1396 = vmatprep.subr.bf16.mxu0 0
    %1397 = vmatpush2.bf16.msra.mxu0 0
    %1398 = vmatprep.subr.bf16.mxu0 0
    %1399 = vmatpush2.bf16.msra.mxu0 0
    %1400 = vmatprep.subr.bf16.mxu0 0
    %1401 = vmatpush2.bf16.msra.mxu0 0
    %1402 = vmatprep.subr.bf16.mxu0 0
    %1403 = vmatpush2.bf16.msra.mxu0 0
    %1404 = vmatprep.mubr.bf16.mxu0 0
    %1405 = vmatmul.mubr.bf16.gmra.mxu0 %v250
    %v1406 = vpop.f32.mrf.mxu0
    %v1407 = vadd.f32 0.0, %v1406
    %v1408 = vpop.f32.mrf.mxu0
    %v1409 = vpop.f32.mrf.mxu0
    %v1410 = vadd.f32 0.0, %v1409
    %v1411 = vpop.f32.mrf.mxu0
    %1412 = vdwg.mxu0
    %v1413 = vld [vmem:[#allocation4] sm:$0xff]
    %v1414 = vld [vmem:[#allocation4 + $0x8] sm:$0xff]
    %v1415 = vadd.f32 %v1413, %v1407
    %v1416 = vadd.f32 %v1414, %v1410
    %vm1417 = vcmp.ge.f32.partialorder %v1415, 1.0
    %vm1418 = vcmp.ge.f32.partialorder %v1416, 1.0
    %v1419 = vsel %vm1417, 0.0, %v1415
    %v1420 = vsel %vm1418, 0.0, %v1416
    %1421 = vst [vmem:[#allocation4] sm:$0xff] %v1419
    %1422 = vst [vmem:[#allocation4 + $0x8] sm:$0xff] %v1420
    %v1423 = vsel %vm1417, 1.0, 0.0
    %v1424 = vsel %vm1418, 1.0, 0.0
    %v1425 = vld [vmem:[#allocation8] sm:$0xff]
    %v1426 = vld [vmem:[#allocation8 + $0x8] sm:$0xff]
    %v1427 = vadd.f32 %v1425, %v1423
    %v1428 = vadd.f32 %v1426, %v1424
    %1429 = vst [vmem:[#allocation8] sm:$0xff] %v1427
    %1430 = vst [vmem:[#allocation8 + $0x8] sm:$0xff] %v1428
    %s1431 = scalar_lea.vmem [#allocation5], 48
    %v1432 = vld [vmem:[%s1431] sm:$0xff]
    %1433 = vmatprep.subr.mxu0 0.0
    %1434 = vmatpush1.msra.mxu0 0.0
    %1435 = vmatprep.subr.mxu0 0.0
    %1436 = vmatpush1.msra.mxu0 0.0
    %1437 = vmatprep.subr.mxu0 0.0
    %1438 = vmatpush1.msra.mxu0 0.0
    %1439 = vmatprep.subr.mxu0 0.0
    %1440 = vmatpush1.msra.mxu0 0.0
    %1441 = vmatprep.subr.mxu0 0.0
    %1442 = vmatpush1.msra.mxu0 0.0
    %1443 = vmatprep.subr.mxu0 0.0
    %1444 = vmatpush1.msra.mxu0 0.0
    %1445 = vmatprep.subr.mxu0 0.0
    %1446 = vmatpush1.msra.mxu0 0.0
    %1447 = vmatprep.subr.mxu0 0.0
    %1448 = vmatpush1.msra.mxu0 0.0
    %1449 = vmatprep.subr.mxu0 0.0
    %1450 = vmatpush1.msra.mxu0 0.0
    %1451 = vmatprep.subr.mxu0 0.0
    %1452 = vmatpush1.msra.mxu0 0.0
    %1453 = vmatprep.subr.mxu0 0.0
    %1454 = vmatpush1.msra.mxu0 0.0
    %1455 = vmatprep.subr.mxu0 0.0
    %1456 = vmatpush1.msra.mxu0 0.0
    %1457 = vmatprep.subr.mxu0 0.0
    %1458 = vmatpush1.msra.mxu0 0.0
    %1459 = vmatprep.subr.mxu0 0.0
    %1460 = vmatpush1.msra.mxu0 0.0
    %1461 = vmatprep.subr.mxu0 0.0
    %1462 = vmatpush1.msra.mxu0 0.0
    %1463 = vmatprep.subr.mxu0 0.0
    %1464 = vmatpush1.msra.mxu0 %v1432
    %1465 = vmatprep.subr.mxu0 0.0
    %1466 = vmatpush2.msra.mxu0 0.0
    %1467 = vmatprep.subr.mxu0 0.0
    %1468 = vmatpush2.msra.mxu0 0.0
    %1469 = vmatprep.subr.mxu0 0.0
    %1470 = vmatpush2.msra.mxu0 0.0
    %1471 = vmatprep.subr.mxu0 0.0
    %1472 = vmatpush2.msra.mxu0 0.0
    %1473 = vmatprep.subr.mxu0 0.0
    %1474 = vmatpush2.msra.mxu0 0.0
    %1475 = vmatprep.subr.mxu0 0.0
    %1476 = vmatpush2.msra.mxu0 0.0
    %1477 = vmatprep.subr.mxu0 0.0
    %1478 = vmatpush2.msra.mxu0 0.0
    %1479 = vmatprep.subr.mxu0 0.0
    %1480 = vmatpush2.msra.mxu0 0.0
    %1481 = vmatprep.subr.mxu0 0.0
    %1482 = vmatpush2.msra.mxu0 0.0
    %1483 = vmatprep.subr.mxu0 0.0
    %1484 = vmatpush2.msra.mxu0 0.0
    %1485 = vmatprep.subr.mxu0 0.0
    %1486 = vmatpush2.msra.mxu0 0.0
    %1487 = vmatprep.subr.mxu0 0.0
    %1488 = vmatpush2.msra.mxu0 0.0
    %1489 = vmatprep.subr.mxu0 0.0
    %1490 = vmatpush2.msra.mxu0 0.0
    %1491 = vmatprep.subr.mxu0 0.0
    %1492 = vmatpush2.msra.mxu0 0.0
    %1493 = vmatprep.subr.mxu0 0.0
    %1494 = vmatpush2.msra.mxu0 0.0
    %1495 = vmatprep.subr.mxu0 0.0
    %1496 = vmatpush2.msra.mxu0 0.0
    %1497 = vmatprep.mubr.f32.mxu0 0.0
    %1498 = vmatmul.mubr.f32.gmra.mxu0 %v58
    %v1499 = vpop.f32.mrf.mxu0
    %v1500 = vadd.f32 0.0, %v1499
    %v1501 = vpop.f32.mrf.mxu0
    %1502 = vmatprep.mubr.f32.mxu0 0.0
    %1503 = vmatmul.mubr.f32.gmra.mxu0 %v61
    %v1504 = vpop.f32.mrf.mxu0
    %v1505 = vadd.f32 0.0, %v1504
    %v1506 = vpop.f32.mrf.mxu0
    %1507 = vdwg.mxu0
    %v1508 = vld [vmem:[#allocation2] sm:$0xff]
    %v1509 = vld [vmem:[#allocation2 + $0x8] sm:$0xff]
    %v1510 = vadd.f32 %v1508, %v1500
    %v1511 = vadd.f32 %v1509, %v1505
    %vm1512 = vcmp.ge.f32.partialorder %v1510, 1.0
    %vm1513 = vcmp.ge.f32.partialorder %v1511, 1.0
    %v1514 = vsel %vm1512, 0.0, %v1510
    %v1515 = vsel %vm1513, 0.0, %v1511
    %1516 = vst [vmem:[#allocation2] sm:$0xff] %v1514
    %1517 = vst [vmem:[#allocation2 + $0x8] sm:$0xff] %v1515
    %v1518 = vsel %vm1512, 1.0, 0.0
    %v1519 = vsel %vm1513, 1.0, 0.0
    %v1520 = vpack.c.bf16 %v1519, %v1518
    %1521 = vmatprep.subr.bf16.mxu0 0
    %1522 = vmatpush1.bf16.msra.mxu0 0
    %1523 = vmatprep.subr.bf16.mxu0 0
    %1524 = vmatpush1.bf16.msra.mxu0 0
    %1525 = vmatprep.subr.bf16.mxu0 0
    %1526 = vmatpush1.bf16.msra.mxu0 0
    %1527 = vmatprep.subr.bf16.mxu0 0
    %1528 = vmatpush1.bf16.msra.mxu0 0
    %1529 = vmatprep.subr.bf16.mxu0 0
    %1530 = vmatpush1.bf16.msra.mxu0 0
    %1531 = vmatprep.subr.bf16.mxu0 0
    %1532 = vmatpush1.bf16.msra.mxu0 0
    %1533 = vmatprep.subr.bf16.mxu0 0
    %1534 = vmatpush1.bf16.msra.mxu0 0
    %1535 = vmatprep.subr.bf16.mxu0 0
    %1536 = vmatpush1.bf16.msra.mxu0 %v1520
    %1537 = vmatprep.subr.bf16.mxu0 0
    %1538 = vmatpush2.bf16.msra.mxu0 0
    %1539 = vmatprep.subr.bf16.mxu0 0
    %1540 = vmatpush2.bf16.msra.mxu0 0
    %1541 = vmatprep.subr.bf16.mxu0 0
    %1542 = vmatpush2.bf16.msra.mxu0 0
    %1543 = vmatprep.subr.bf16.mxu0 0
    %1544 = vmatpush2.bf16.msra.mxu0 0
    %1545 = vmatprep.subr.bf16.mxu0 0
    %1546 = vmatpush2.bf16.msra.mxu0 0
    %1547 = vmatprep.subr.bf16.mxu0 0
    %1548 = vmatpush2.bf16.msra.mxu0 0
    %1549 = vmatprep.subr.bf16.mxu0 0
    %1550 = vmatpush2.bf16.msra.mxu0 0
    %1551 = vmatprep.subr.bf16.mxu0 0
    %1552 = vmatpush2.bf16.msra.mxu0 0
    %1553 = vmatprep.mubr.bf16.mxu0 0
    %1554 = vmatmul.mubr.bf16.gmra.mxu0 %v163
    %v1555 = vpop.f32.mrf.mxu0
    %v1556 = vadd.f32 0.0, %v1555
    %v1557 = vpop.f32.mrf.mxu0
    %v1558 = vpop.f32.mrf.mxu0
    %v1559 = vadd.f32 0.0, %v1558
    %v1560 = vpop.f32.mrf.mxu0
    %1561 = vmatprep.mubr.bf16.mxu0 0
    %1562 = vmatmul.mubr.bf16.gmra.mxu0 %v166
    %v1563 = vpop.f32.mrf.mxu0
    %v1564 = vadd.f32 0.0, %v1563
    %v1565 = vpop.f32.mrf.mxu0
    %v1566 = vpop.f32.mrf.mxu0
    %v1567 = vadd.f32 0.0, %v1566
    %v1568 = vpop.f32.mrf.mxu0
    %1569 = vdwg.mxu0
    %v1570 = vld [vmem:[#allocation3] sm:$0xff]
    %v1571 = vld [vmem:[#allocation3 + $0x8] sm:$0xff]
    %v1572 = vld [vmem:[#allocation3 + $0x10] sm:$0xff]
    %v1573 = vld [vmem:[#allocation3 + $0x18] sm:$0xff]
    %v1574 = vadd.f32 %v1570, %v1556
    %v1575 = vadd.f32 %v1571, %v1559
    %v1576 = vadd.f32 %v1572, %v1564
    %v1577 = vadd.f32 %v1573, %v1567
    %vm1578 = vcmp.ge.f32.partialorder %v1574, 1.0
    %vm1579 = vcmp.ge.f32.partialorder %v1575, 1.0
    %vm1580 = vcmp.ge.f32.partialorder %v1576, 1.0
    %vm1581 = vcmp.ge.f32.partialorder %v1577, 1.0
    %v1582 = vsel %vm1578, 0.0, %v1574
    %v1583 = vsel %vm1579, 0.0, %v1575
    %v1584 = vsel %vm1580, 0.0, %v1576
    %v1585 = vsel %vm1581, 0.0, %v1577
    %1586 = vst [vmem:[#allocation3] sm:$0xff] %v1582
    %1587 = vst [vmem:[#allocation3 + $0x8] sm:$0xff] %v1583
    %1588 = vst [vmem:[#allocation3 + $0x10] sm:$0xff] %v1584
    %1589 = vst [vmem:[#allocation3 + $0x18] sm:$0xff] %v1585
    %v1590 = vsel %vm1578, 1.0, 0.0
    %v1591 = vsel %vm1579, 1.0, 0.0
    %v1592 = vsel %vm1580, 1.0, 0.0
    %v1593 = vsel %vm1581, 1.0, 0.0
    %v1594 = vpack.c.bf16 %v1591, %v1590
    %v1595 = vpack.c.bf16 %v1593, %v1592
    %1596 = vmatprep.subr.bf16.mxu0 0
    %1597 = vmatpush1.bf16.msra.mxu0 0
    %1598 = vmatprep.subr.bf16.mxu0 0
    %1599 = vmatpush1.bf16.msra.mxu0 0
    %1600 = vmatprep.subr.bf16.mxu0 0
    %1601 = vmatpush1.bf16.msra.mxu0 0
    %1602 = vmatprep.subr.bf16.mxu0 0
    %1603 = vmatpush1.bf16.msra.mxu0 0
    %1604 = vmatprep.subr.bf16.mxu0 0
    %1605 = vmatpush1.bf16.msra.mxu0 0
    %1606 = vmatprep.subr.bf16.mxu0 0
    %1607 = vmatpush1.bf16.msra.mxu0 0
    %1608 = vmatprep.subr.bf16.mxu0 0
    %1609 = vmatpush1.bf16.msra.mxu0 %v1595
    %1610 = vmatprep.subr.bf16.mxu0 0
    %1611 = vmatpush1.bf16.msra.mxu0 %v1594
    %1612 = vmatprep.subr.bf16.mxu0 0
    %1613 = vmatpush2.bf16.msra.mxu0 0
    %1614 = vmatprep.subr.bf16.mxu0 0
    %1615 = vmatpush2.bf16.msra.mxu0 0
    %1616 = vmatprep.subr.bf16.mxu0 0
    %1617 = vmatpush2.bf16.msra.mxu0 0
    %1618 = vmatprep.subr.bf16.mxu0 0
    %1619 = vmatpush2.bf16.msra.mxu0 0
    %1620 = vmatprep.subr.bf16.mxu0 0
    %1621 = vmatpush2.bf16.msra.mxu0 0
    %1622 = vmatprep.subr.bf16.mxu0 0
    %1623 = vmatpush2.bf16.msra.mxu0 0
    %1624 = vmatprep.subr.bf16.mxu0 0
    %1625 = vmatpush2.bf16.msra.mxu0 0
    %1626 = vmatprep.subr.bf16.mxu0 0
    %1627 = vmatpush2.bf16.msra.mxu0 0
    %1628 = vmatprep.mubr.bf16.mxu0 0
    %1629 = vmatmul.mubr.bf16.gmra.mxu0 %v250
    %v1630 = vpop.f32.mrf.mxu0
    %v1631 = vadd.f32 0.0, %v1630
    %v1632 = vpop.f32.mrf.mxu0
    %v1633 = vpop.f32.mrf.mxu0
    %v1634 = vadd.f32 0.0, %v1633
    %v1635 = vpop.f32.mrf.mxu0
    %1636 = vdwg.mxu0
    %v1637 = vld [vmem:[#allocation4] sm:$0xff]
    %v1638 = vld [vmem:[#allocation4 + $0x8] sm:$0xff]
    %v1639 = vadd.f32 %v1637, %v1631
    %v1640 = vadd.f32 %v1638, %v1634
    %vm1641 = vcmp.ge.f32.partialorder %v1639, 1.0
    %vm1642 = vcmp.ge.f32.partialorder %v1640, 1.0
    %v1643 = vsel %vm1641, 0.0, %v1639
    %v1644 = vsel %vm1642, 0.0, %v1640
    %1645 = vst [vmem:[#allocation4] sm:$0xff] %v1643
    %1646 = vst [vmem:[#allocation4 + $0x8] sm:$0xff] %v1644
    %v1647 = vsel %vm1641, 1.0, 0.0
    %v1648 = vsel %vm1642, 1.0, 0.0
    %v1649 = vld [vmem:[#allocation8] sm:$0xff]
    %v1650 = vld [vmem:[#allocation8 + $0x8] sm:$0xff]
    %v1651 = vadd.f32 %v1649, %v1647
    %v1652 = vadd.f32 %v1650, %v1648
    %1653 = vst [vmem:[#allocation8] sm:$0xff] %v1651
    %1654 = vst [vmem:[#allocation8 + $0x8] sm:$0xff] %v1652
    %s1655 = scalar_lea.vmem [#allocation5], 56
    %v1656 = vld [vmem:[%s1655] sm:$0xff]
    %1657 = vmatprep.subr.mxu0 0.0
    %1658 = vmatpush1.msra.mxu0 0.0
    %1659 = vmatprep.subr.mxu0 0.0
    %1660 = vmatpush1.msra.mxu0 0.0
    %1661 = vmatprep.subr.mxu0 0.0
    %1662 = vmatpush1.msra.mxu0 0.0
    %1663 = vmatprep.subr.mxu0 0.0
    %1664 = vmatpush1.msra.mxu0 0.0
    %1665 = vmatprep.subr.mxu0 0.0
    %1666 = vmatpush1.msra.mxu0 0.0
    %1667 = vmatprep.subr.mxu0 0.0
    %1668 = vmatpush1.msra.mxu0 0.0
    %1669 = vmatprep.subr.mxu0 0.0
    %1670 = vmatpush1.msra.mxu0 0.0
    %1671 = vmatprep.subr.mxu0 0.0
    %1672 = vmatpush1.msra.mxu0 0.0
    %1673 = vmatprep.subr.mxu0 0.0
    %1674 = vmatpush1.msra.mxu0 0.0
    %1675 = vmatprep.subr.mxu0 0.0
    %1676 = vmatpush1.msra.mxu0 0.0
    %1677 = vmatprep.subr.mxu0 0.0
    %1678 = vmatpush1.msra.mxu0 0.0
    %1679 = vmatprep.subr.mxu0 0.0
    %1680 = vmatpush1.msra.mxu0 0.0
    %1681 = vmatprep.subr.mxu0 0.0
    %1682 = vmatpush1.msra.mxu0 0.0
    %1683 = vmatprep.subr.mxu0 0.0
    %1684 = vmatpush1.msra.mxu0 0.0
    %1685 = vmatprep.subr.mxu0 0.0
    %1686 = vmatpush1.msra.mxu0 0.0
    %1687 = vmatprep.subr.mxu0 0.0
    %1688 = vmatpush1.msra.mxu0 %v1656
    %1689 = vmatprep.subr.mxu0 0.0
    %1690 = vmatpush2.msra.mxu0 0.0
    %1691 = vmatprep.subr.mxu0 0.0
    %1692 = vmatpush2.msra.mxu0 0.0
    %1693 = vmatprep.subr.mxu0 0.0
    %1694 = vmatpush2.msra.mxu0 0.0
    %1695 = vmatprep.subr.mxu0 0.0
    %1696 = vmatpush2.msra.mxu0 0.0
    %1697 = vmatprep.subr.mxu0 0.0
    %1698 = vmatpush2.msra.mxu0 0.0
    %1699 = vmatprep.subr.mxu0 0.0
    %1700 = vmatpush2.msra.mxu0 0.0
    %1701 = vmatprep.subr.mxu0 0.0
    %1702 = vmatpush2.msra.mxu0 0.0
    %1703 = vmatprep.subr.mxu0 0.0
    %1704 = vmatpush2.msra.mxu0 0.0
    %1705 = vmatprep.subr.mxu0 0.0
    %1706 = vmatpush2.msra.mxu0 0.0
    %1707 = vmatprep.subr.mxu0 0.0
    %1708 = vmatpush2.msra.mxu0 0.0
    %1709 = vmatprep.subr.mxu0 0.0
    %1710 = vmatpush2.msra.mxu0 0.0
    %1711 = vmatprep.subr.mxu0 0.0
    %1712 = vmatpush2.msra.mxu0 0.0
    %1713 = vmatprep.subr.mxu0 0.0
    %1714 = vmatpush2.msra.mxu0 0.0
    %1715 = vmatprep.subr.mxu0 0.0
    %1716 = vmatpush2.msra.mxu0 0.0
    %1717 = vmatprep.subr.mxu0 0.0
    %1718 = vmatpush2.msra.mxu0 0.0
    %1719 = vmatprep.subr.mxu0 0.0
    %1720 = vmatpush2.msra.mxu0 0.0
    %1721 = vmatprep.mubr.f32.mxu0 0.0
    %1722 = vmatmul.mubr.f32.gmra.mxu0 %v58
    %v1723 = vpop.f32.mrf.mxu0
    %v1724 = vadd.f32 0.0, %v1723
    %v1725 = vpop.f32.mrf.mxu0
    %1726 = vmatprep.mubr.f32.mxu0 0.0
    %1727 = vmatmul.mubr.f32.gmra.mxu0 %v61
    %v1728 = vpop.f32.mrf.mxu0
    %v1729 = vadd.f32 0.0, %v1728
    %v1730 = vpop.f32.mrf.mxu0
    %1731 = vdwg.mxu0
    %v1732 = vld [vmem:[#allocation2] sm:$0xff]
    %v1733 = vld [vmem:[#allocation2 + $0x8] sm:$0xff]
    %v1734 = vadd.f32 %v1732, %v1724
    %v1735 = vadd.f32 %v1733, %v1729
    %vm1736 = vcmp.ge.f32.partialorder %v1734, 1.0
    %vm1737 = vcmp.ge.f32.partialorder %v1735, 1.0
    %v1738 = vsel %vm1736, 0.0, %v1734
    %v1739 = vsel %vm1737, 0.0, %v1735
    %1740 = vst [vmem:[#allocation2] sm:$0xff] %v1738
    %1741 = vst [vmem:[#allocation2 + $0x8] sm:$0xff] %v1739
    %v1742 = vsel %vm1736, 1.0, 0.0
    %v1743 = vsel %vm1737, 1.0, 0.0
    %v1744 = vpack.c.bf16 %v1743, %v1742
    %1745 = vmatprep.subr.bf16.mxu0 0
    %1746 = vmatpush1.bf16.msra.mxu0 0
    %1747 = vmatprep.subr.bf16.mxu0 0
    %1748 = vmatpush1.bf16.msra.mxu0 0
    %1749 = vmatprep.subr.bf16.mxu0 0
    %1750 = vmatpush1.bf16.msra.mxu0 0
    %1751 = vmatprep.subr.bf16.mxu0 0
    %1752 = vmatpush1.bf16.msra.mxu0 0
    %1753 = vmatprep.subr.bf16.mxu0 0
    %1754 = vmatpush1.bf16.msra.mxu0 0
    %1755 = vmatprep.subr.bf16.mxu0 0
    %1756 = vmatpush1.bf16.msra.mxu0 0
    %1757 = vmatprep.subr.bf16.mxu0 0
    %1758 = vmatpush1.bf16.msra.mxu0 0
    %1759 = vmatprep.subr.bf16.mxu0 0
    %1760 = vmatpush1.bf16.msra.mxu0 %v1744
    %1761 = vmatprep.subr.bf16.mxu0 0
    %1762 = vmatpush2.bf16.msra.mxu0 0
    %1763 = vmatprep.subr.bf16.mxu0 0
    %1764 = vmatpush2.bf16.msra.mxu0 0
    %1765 = vmatprep.subr.bf16.mxu0 0
    %1766 = vmatpush2.bf16.msra.mxu0 0
    %1767 = vmatprep.subr.bf16.mxu0 0
    %1768 = vmatpush2.bf16.msra.mxu0 0
    %1769 = vmatprep.subr.bf16.mxu0 0
    %1770 = vmatpush2.bf16.msra.mxu0 0
    %1771 = vmatprep.subr.bf16.mxu0 0
    %1772 = vmatpush2.bf16.msra.mxu0 0
    %1773 = vmatprep.subr.bf16.mxu0 0
    %1774 = vmatpush2.bf16.msra.mxu0 0
    %1775 = vmatprep.subr.bf16.mxu0 0
    %1776 = vmatpush2.bf16.msra.mxu0 0
    %1777 = vmatprep.mubr.bf16.mxu0 0
    %1778 = vmatmul.mubr.bf16.gmra.mxu0 %v163
    %v1779 = vpop.f32.mrf.mxu0
    %v1780 = vadd.f32 0.0, %v1779
    %v1781 = vpop.f32.mrf.mxu0
    %v1782 = vpop.f32.mrf.mxu0
    %v1783 = vadd.f32 0.0, %v1782
    %v1784 = vpop.f32.mrf.mxu0
    %1785 = vmatprep.mubr.bf16.mxu0 0
    %1786 = vmatmul.mubr.bf16.gmra.mxu0 %v166
    %v1787 = vpop.f32.mrf.mxu0
    %v1788 = vadd.f32 0.0, %v1787
    %v1789 = vpop.f32.mrf.mxu0
    %v1790 = vpop.f32.mrf.mxu0
    %v1791 = vadd.f32 0.0, %v1790
    %v1792 = vpop.f32.mrf.mxu0
    %1793 = vdwg.mxu0
    %v1794 = vld [vmem:[#allocation3] sm:$0xff]
    %v1795 = vld [vmem:[#allocation3 + $0x8] sm:$0xff]
    %v1796 = vld [vmem:[#allocation3 + $0x10] sm:$0xff]
    %v1797 = vld [vmem:[#allocation3 + $0x18] sm:$0xff]
    %v1798 = vadd.f32 %v1794, %v1780
    %v1799 = vadd.f32 %v1795, %v1783
    %v1800 = vadd.f32 %v1796, %v1788
    %v1801 = vadd.f32 %v1797, %v1791
    %vm1802 = vcmp.ge.f32.partialorder %v1798, 1.0
    %vm1803 = vcmp.ge.f32.partialorder %v1799, 1.0
    %vm1804 = vcmp.ge.f32.partialorder %v1800, 1.0
    %vm1805 = vcmp.ge.f32.partialorder %v1801, 1.0
    %v1806 = vsel %vm1802, 0.0, %v1798
    %v1807 = vsel %vm1803, 0.0, %v1799
    %v1808 = vsel %vm1804, 0.0, %v1800
    %v1809 = vsel %vm1805, 0.0, %v1801
    %1810 = vst [vmem:[#allocation3] sm:$0xff] %v1806
    %1811 = vst [vmem:[#allocation3 + $0x8] sm:$0xff] %v1807
    %1812 = vst [vmem:[#allocation3 + $0x10] sm:$0xff] %v1808
    %1813 = vst [vmem:[#allocation3 + $0x18] sm:$0xff] %v1809
    %v1814 = vsel %vm1802, 1.0, 0.0
    %v1815 = vsel %vm1803, 1.0, 0.0
    %v1816 = vsel %vm1804, 1.0, 0.0
    %v1817 = vsel %vm1805, 1.0, 0.0
    %v1818 = vpack.c.bf16 %v1815, %v1814
    %v1819 = vpack.c.bf16 %v1817, %v1816
    %1820 = vmatprep.subr.bf16.mxu0 0
    %1821 = vmatpush1.bf16.msra.mxu0 0
    %1822 = vmatprep.subr.bf16.mxu0 0
    %1823 = vmatpush1.bf16.msra.mxu0 0
    %1824 = vmatprep.subr.bf16.mxu0 0
    %1825 = vmatpush1.bf16.msra.mxu0 0
    %1826 = vmatprep.subr.bf16.mxu0 0
    %1827 = vmatpush1.bf16.msra.mxu0 0
    %1828 = vmatprep.subr.bf16.mxu0 0
    %1829 = vmatpush1.bf16.msra.mxu0 0
    %1830 = vmatprep.subr.bf16.mxu0 0
    %1831 = vmatpush1.bf16.msra.mxu0 0
    %1832 = vmatprep.subr.bf16.mxu0 0
    %1833 = vmatpush1.bf16.msra.mxu0 %v1819
    %1834 = vmatprep.subr.bf16.mxu0 0
    %1835 = vmatpush1.bf16.msra.mxu0 %v1818
    %1836 = vmatprep.subr.bf16.mxu0 0
    %1837 = vmatpush2.bf16.msra.mxu0 0
    %1838 = vmatprep.subr.bf16.mxu0 0
    %1839 = vmatpush2.bf16.msra.mxu0 0
    %1840 = vmatprep.subr.bf16.mxu0 0
    %1841 = vmatpush2.bf16.msra.mxu0 0
    %1842 = vmatprep.subr.bf16.mxu0 0
    %1843 = vmatpush2.bf16.msra.mxu0 0
    %1844 = vmatprep.subr.bf16.mxu0 0
    %1845 = vmatpush2.bf16.msra.mxu0 0
    %1846 = vmatprep.subr.bf16.mxu0 0
    %1847 = vmatpush2.bf16.msra.mxu0 0
    %1848 = vmatprep.subr.bf16.mxu0 0
    %1849 = vmatpush2.bf16.msra.mxu0 0
    %1850 = vmatprep.subr.bf16.mxu0 0
    %1851 = vmatpush2.bf16.msra.mxu0 0
    %1852 = vmatprep.mubr.bf16.mxu0 0
    %1853 = vmatmul.mubr.bf16.gmra.mxu0 %v250
    %v1854 = vpop.f32.mrf.mxu0
    %v1855 = vadd.f32 0.0, %v1854
    %v1856 = vpop.f32.mrf.mxu0
    %v1857 = vpop.f32.mrf.mxu0
    %v1858 = vadd.f32 0.0, %v1857
    %v1859 = vpop.f32.mrf.mxu0
    %1860 = vdwg.mxu0
    %v1861 = vld [vmem:[#allocation4] sm:$0xff]
    %v1862 = vld [vmem:[#allocation4 + $0x8] sm:$0xff]
    %v1863 = vadd.f32 %v1861, %v1855
    %v1864 = vadd.f32 %v1862, %v1858
    %vm1865 = vcmp.ge.f32.partialorder %v1863, 1.0
    %vm1866 = vcmp.ge.f32.partialorder %v1864, 1.0
    %v1867 = vsel %vm1865, 0.0, %v1863
    %v1868 = vsel %vm1866, 0.0, %v1864
    %1869 = vst [vmem:[#allocation4] sm:$0xff] %v1867
    %1870 = vst [vmem:[#allocation4 + $0x8] sm:$0xff] %v1868
    %v1871 = vsel %vm1865, 1.0, 0.0
    %v1872 = vsel %vm1866, 1.0, 0.0
    %v1873 = vld [vmem:[#allocation8] sm:$0xff]
    %v1874 = vld [vmem:[#allocation8 + $0x8] sm:$0xff]
    %v1875 = vadd.f32 %v1873, %v1871
    %v1876 = vadd.f32 %v1874, %v1872
    %1877 = vst [vmem:[#allocation8] sm:$0xff] %v1875
    %1878 = vst [vmem:[#allocation8 + $0x8] sm:$0xff] %v1876
    %s1879 = scalar_lea.vmem [#allocation5], 64
    %v1880 = vld [vmem:[%s1879] sm:$0xff]
    %1881 = vmatprep.subr.mxu0 0.0
    %1882 = vmatpush1.msra.mxu0 0.0
    %1883 = vmatprep.subr.mxu0 0.0
    %1884 = vmatpush1.msra.mxu0 0.0
    %1885 = vmatprep.subr.mxu0 0.0
    %1886 = vmatpush1.msra.mxu0 0.0
    %1887 = vmatprep.subr.mxu0 0.0
    %1888 = vmatpush1.msra.mxu0 0.0
    %1889 = vmatprep.subr.mxu0 0.0
    %1890 = vmatpush1.msra.mxu0 0.0
    %1891 = vmatprep.subr.mxu0 0.0
    %1892 = vmatpush1.msra.mxu0 0.0
    %1893 = vmatprep.subr.mxu0 0.0
    %1894 = vmatpush1.msra.mxu0 0.0
    %1895 = vmatprep.subr.mxu0 0.0
    %1896 = vmatpush1.msra.mxu0 0.0
    %1897 = vmatprep.subr.mxu0 0.0
    %1898 = vmatpush1.msra.mxu0 0.0
    %1899 = vmatprep.subr.mxu0 0.0
    %1900 = vmatpush1.msra.mxu0 0.0
    %1901 = vmatprep.subr.mxu0 0.0
    %1902 = vmatpush1.msra.mxu0 0.0
    %1903 = vmatprep.subr.mxu0 0.0
    %1904 = vmatpush1.msra.mxu0 0.0
    %1905 = vmatprep.subr.mxu0 0.0
    %1906 = vmatpush1.msra.mxu0 0.0
    %1907 = vmatprep.subr.mxu0 0.0
    %1908 = vmatpush1.msra.mxu0 0.0
    %1909 = vmatprep.subr.mxu0 0.0
    %1910 = vmatpush1.msra.mxu0 0.0
    %1911 = vmatprep.subr.mxu0 0.0
    %1912 = vmatpush1.msra.mxu0 %v1880
    %1913 = vmatprep.subr.mxu0 0.0
    %1914 = vmatpush2.msra.mxu0 0.0
    %1915 = vmatprep.subr.mxu0 0.0
    %1916 = vmatpush2.msra.mxu0 0.0
    %1917 = vmatprep.subr.mxu0 0.0
    %1918 = vmatpush2.msra.mxu0 0.0
    %1919 = vmatprep.subr.mxu0 0.0
    %1920 = vmatpush2.msra.mxu0 0.0
    %1921 = vmatprep.subr.mxu0 0.0
    %1922 = vmatpush2.msra.mxu0 0.0
    %1923 = vmatprep.subr.mxu0 0.0
    %1924 = vmatpush2.msra.mxu0 0.0
    %1925 = vmatprep.subr.mxu0 0.0
    %1926 = vmatpush2.msra.mxu0 0.0
    %1927 = vmatprep.subr.mxu0 0.0
    %1928 = vmatpush2.msra.mxu0 0.0
    %1929 = vmatprep.subr.mxu0 0.0
    %1930 = vmatpush2.msra.mxu0 0.0
    %1931 = vmatprep.subr.mxu0 0.0
    %1932 = vmatpush2.msra.mxu0 0.0
    %1933 = vmatprep.subr.mxu0 0.0
    %1934 = vmatpush2.msra.mxu0 0.0
    %1935 = vmatprep.subr.mxu0 0.0
    %1936 = vmatpush2.msra.mxu0 0.0
    %1937 = vmatprep.subr.mxu0 0.0
    %1938 = vmatpush2.msra.mxu0 0.0
    %1939 = vmatprep.subr.mxu0 0.0
    %1940 = vmatpush2.msra.mxu0 0.0
    %1941 = vmatprep.subr.mxu0 0.0
    %1942 = vmatpush2.msra.mxu0 0.0
    %1943 = vmatprep.subr.mxu0 0.0
    %1944 = vmatpush2.msra.mxu0 0.0
    %1945 = vmatprep.mubr.f32.mxu0 0.0
    %1946 = vmatmul.mubr.f32.gmra.mxu0 %v58
    %v1947 = vpop.f32.mrf.mxu0
    %v1948 = vadd.f32 0.0, %v1947
    %v1949 = vpop.f32.mrf.mxu0
    %1950 = vmatprep.mubr.f32.mxu0 0.0
    %1951 = vmatmul.mubr.f32.gmra.mxu0 %v61
    %v1952 = vpop.f32.mrf.mxu0
    %v1953 = vadd.f32 0.0, %v1952
    %v1954 = vpop.f32.mrf.mxu0
    %1955 = vdwg.mxu0
    %v1956 = vld [vmem:[#allocation2] sm:$0xff]
    %v1957 = vld [vmem:[#allocation2 + $0x8] sm:$0xff]
    %v1958 = vadd.f32 %v1956, %v1948
    %v1959 = vadd.f32 %v1957, %v1953
    %vm1960 = vcmp.ge.f32.partialorder %v1958, 1.0
    %vm1961 = vcmp.ge.f32.partialorder %v1959, 1.0
    %v1962 = vsel %vm1960, 0.0, %v1958
    %v1963 = vsel %vm1961, 0.0, %v1959
    %1964 = vst [vmem:[#allocation2] sm:$0xff] %v1962
    %1965 = vst [vmem:[#allocation2 + $0x8] sm:$0xff] %v1963
    %v1966 = vsel %vm1960, 1.0, 0.0
    %v1967 = vsel %vm1961, 1.0, 0.0
    %v1968 = vpack.c.bf16 %v1967, %v1966
    %1969 = vmatprep.subr.bf16.mxu0 0
    %1970 = vmatpush1.bf16.msra.mxu0 0
    %1971 = vmatprep.subr.bf16.mxu0 0
    %1972 = vmatpush1.bf16.msra.mxu0 0
    %1973 = vmatprep.subr.bf16.mxu0 0
    %1974 = vmatpush1.bf16.msra.mxu0 0
    %1975 = vmatprep.subr.bf16.mxu0 0
    %1976 = vmatpush1.bf16.msra.mxu0 0
    %1977 = vmatprep.subr.bf16.mxu0 0
    %1978 = vmatpush1.bf16.msra.mxu0 0
    %1979 = vmatprep.subr.bf16.mxu0 0
    %1980 = vmatpush1.bf16.msra.mxu0 0
    %1981 = vmatprep.subr.bf16.mxu0 0
    %1982 = vmatpush1.bf16.msra.mxu0 0
    %1983 = vmatprep.subr.bf16.mxu0 0
    %1984 = vmatpush1.bf16.msra.mxu0 %v1968
    %1985 = vmatprep.subr.bf16.mxu0 0
    %1986 = vmatpush2.bf16.msra.mxu0 0
    %1987 = vmatprep.subr.bf16.mxu0 0
    %1988 = vmatpush2.bf16.msra.mxu0 0
    %1989 = vmatprep.subr.bf16.mxu0 0
    %1990 = vmatpush2.bf16.msra.mxu0 0
    %1991 = vmatprep.subr.bf16.mxu0 0
    %1992 = vmatpush2.bf16.msra.mxu0 0
    %1993 = vmatprep.subr.bf16.mxu0 0
    %1994 = vmatpush2.bf16.msra.mxu0 0
    %1995 = vmatprep.subr.bf16.mxu0 0
    %1996 = vmatpush2.bf16.msra.mxu0 0
    %1997 = vmatprep.subr.bf16.mxu0 0
    %1998 = vmatpush2.bf16.msra.mxu0 0
    %1999 = vmatprep.subr.bf16.mxu0 0
    %2000 = vmatpush2.bf16.msra.mxu0 0
    %2001 = vmatprep.mubr.bf16.mxu0 0
    %2002 = vmatmul.mubr.bf16.gmra.mxu0 %v163
    %v2003 = vpop.f32.mrf.mxu0
    %v2004 = vadd.f32 0.0, %v2003
    %v2005 = vpop.f32.mrf.mxu0
    %v2006 = vpop.f32.mrf.mxu0
    %v2007 = vadd.f32 0.0, %v2006
    %v2008 = vpop.f32.mrf.mxu0
    %2009 = vmatprep.mubr.bf16.mxu0 0
    %2010 = vmatmul.mubr.bf16.gmra.mxu0 %v166
    %v2011 = vpop.f32.mrf.mxu0
    %v2012 = vadd.f32 0.0, %v2011
    %v2013 = vpop.f32.mrf.mxu0
    %v2014 = vpop.f32.mrf.mxu0
    %v2015 = vadd.f32 0.0, %v2014
    %v2016 = vpop.f32.mrf.mxu0
    %2017 = vdwg.mxu0
    %v2018 = vld [vmem:[#allocation3] sm:$0xff]
    %v2019 = vld [vmem:[#allocation3 + $0x8] sm:$0xff]
    %v2020 = vld [vmem:[#allocation3 + $0x10] sm:$0xff]
    %v2021 = vld [vmem:[#allocation3 + $0x18] sm:$0xff]
    %v2022 = vadd.f32 %v2018, %v2004
    %v2023 = vadd.f32 %v2019, %v2007
    %v2024 = vadd.f32 %v2020, %v2012
    %v2025 = vadd.f32 %v2021, %v2015
    %vm2026 = vcmp.ge.f32.partialorder %v2022, 1.0
    %vm2027 = vcmp.ge.f32.partialorder %v2023, 1.0
    %vm2028 = vcmp.ge.f32.partialorder %v2024, 1.0
    %vm2029 = vcmp.ge.f32.partialorder %v2025, 1.0
    %v2030 = vsel %vm2026, 0.0, %v2022
    %v2031 = vsel %vm2027, 0.0, %v2023
    %v2032 = vsel %vm2028, 0.0, %v2024
    %v2033 = vsel %vm2029, 0.0, %v2025
    %2034 = vst [vmem:[#allocation3] sm:$0xff] %v2030
    %2035 = vst [vmem:[#allocation3 + $0x8] sm:$0xff] %v2031
    %2036 = vst [vmem:[#allocation3 + $0x10] sm:$0xff] %v2032
    %2037 = vst [vmem:[#allocation3 + $0x18] sm:$0xff] %v2033
    %v2038 = vsel %vm2026, 1.0, 0.0
    %v2039 = vsel %vm2027, 1.0, 0.0
    %v2040 = vsel %vm2028, 1.0, 0.0
    %v2041 = vsel %vm2029, 1.0, 0.0
    %v2042 = vpack.c.bf16 %v2039, %v2038
    %v2043 = vpack.c.bf16 %v2041, %v2040
    %2044 = vmatprep.subr.bf16.mxu0 0
    %2045 = vmatpush1.bf16.msra.mxu0 0
    %2046 = vmatprep.subr.bf16.mxu0 0
    %2047 = vmatpush1.bf16.msra.mxu0 0
    %2048 = vmatprep.subr.bf16.mxu0 0
    %2049 = vmatpush1.bf16.msra.mxu0 0
    %2050 = vmatprep.subr.bf16.mxu0 0
    %2051 = vmatpush1.bf16.msra.mxu0 0
    %2052 = vmatprep.subr.bf16.mxu0 0
    %2053 = vmatpush1.bf16.msra.mxu0 0
    %2054 = vmatprep.subr.bf16.mxu0 0
    %2055 = vmatpush1.bf16.msra.mxu0 0
    %2056 = vmatprep.subr.bf16.mxu0 0
    %2057 = vmatpush1.bf16.msra.mxu0 %v2043
    %2058 = vmatprep.subr.bf16.mxu0 0
    %2059 = vmatpush1.bf16.msra.mxu0 %v2042
    %2060 = vmatprep.subr.bf16.mxu0 0
    %2061 = vmatpush2.bf16.msra.mxu0 0
    %2062 = vmatprep.subr.bf16.mxu0 0
    %2063 = vmatpush2.bf16.msra.mxu0 0
    %2064 = vmatprep.subr.bf16.mxu0 0
    %2065 = vmatpush2.bf16.msra.mxu0 0
    %2066 = vmatprep.subr.bf16.mxu0 0
    %2067 = vmatpush2.bf16.msra.mxu0 0
    %2068 = vmatprep.subr.bf16.mxu0 0
    %2069 = vmatpush2.bf16.msra.mxu0 0
    %2070 = vmatprep.subr.bf16.mxu0 0
    %2071 = vmatpush2.bf16.msra.mxu0 0
    %2072 = vmatprep.subr.bf16.mxu0 0
    %2073 = vmatpush2.bf16.msra.mxu0 0
    %2074 = vmatprep.subr.bf16.mxu0 0
    %2075 = vmatpush2.bf16.msra.mxu0 0
    %2076 = vmatprep.mubr.bf16.mxu0 0
    %2077 = vmatmul.mubr.bf16.gmra.mxu0 %v250
    %v2078 = vpop.f32.mrf.mxu0
    %v2079 = vadd.f32 0.0, %v2078
    %v2080 = vpop.f32.mrf.mxu0
    %v2081 = vpop.f32.mrf.mxu0
    %v2082 = vadd.f32 0.0, %v2081
    %v2083 = vpop.f32.mrf.mxu0
    %2084 = vdwg.mxu0
    %v2085 = vld [vmem:[#allocation4] sm:$0xff]
    %v2086 = vld [vmem:[#allocation4 + $0x8] sm:$0xff]
    %v2087 = vadd.f32 %v2085, %v2079
    %v2088 = vadd.f32 %v2086, %v2082
    %vm2089 = vcmp.ge.f32.partialorder %v2087, 1.0
    %vm2090 = vcmp.ge.f32.partialorder %v2088, 1.0
    %v2091 = vsel %vm2089, 0.0, %v2087
    %v2092 = vsel %vm2090, 0.0, %v2088
    %2093 = vst [vmem:[#allocation4] sm:$0xff] %v2091
    %2094 = vst [vmem:[#allocation4 + $0x8] sm:$0xff] %v2092
    %v2095 = vsel %vm2089, 1.0, 0.0
    %v2096 = vsel %vm2090, 1.0, 0.0
    %v2097 = vld [vmem:[#allocation8] sm:$0xff]
    %v2098 = vld [vmem:[#allocation8 + $0x8] sm:$0xff]
    %v2099 = vadd.f32 %v2097, %v2095
    %v2100 = vadd.f32 %v2098, %v2096
    %2101 = vst [vmem:[#allocation8] sm:$0xff] %v2099
    %2102 = vst [vmem:[#allocation8 + $0x8] sm:$0xff] %v2100
    %s2103 = scalar_lea.vmem [#allocation5], 72
    %v2104 = vld [vmem:[%s2103] sm:$0xff]
    %2105 = vmatprep.subr.mxu0 0.0
    %2106 = vmatpush1.msra.mxu0 0.0
    %2107 = vmatprep.subr.mxu0 0.0
    %2108 = vmatpush1.msra.mxu0 0.0
    %2109 = vmatprep.subr.mxu0 0.0
    %2110 = vmatpush1.msra.mxu0 0.0
    %2111 = vmatprep.subr.mxu0 0.0
    %2112 = vmatpush1.msra.mxu0 0.0
    %2113 = vmatprep.subr.mxu0 0.0
    %2114 = vmatpush1.msra.mxu0 0.0
    %2115 = vmatprep.subr.mxu0 0.0
    %2116 = vmatpush1.msra.mxu0 0.0
    %2117 = vmatprep.subr.mxu0 0.0
    %2118 = vmatpush1.msra.mxu0 0.0
    %2119 = vmatprep.subr.mxu0 0.0
    %2120 = vmatpush1.msra.mxu0 0.0
    %2121 = vmatprep.subr.mxu0 0.0
    %2122 = vmatpush1.msra.mxu0 0.0
    %2123 = vmatprep.subr.mxu0 0.0
    %2124 = vmatpush1.msra.mxu0 0.0
    %2125 = vmatprep.subr.mxu0 0.0
    %2126 = vmatpush1.msra.mxu0 0.0
    %2127 = vmatprep.subr.mxu0 0.0
    %2128 = vmatpush1.msra.mxu0 0.0
    %2129 = vmatprep.subr.mxu0 0.0
    %2130 = vmatpush1.msra.mxu0 0.0
    %2131 = vmatprep.subr.mxu0 0.0
    %2132 = vmatpush1.msra.mxu0 0.0
    %2133 = vmatprep.subr.mxu0 0.0
    %2134 = vmatpush1.msra.mxu0 0.0
    %2135 = vmatprep.subr.mxu0 0.0
    %2136 = vmatpush1.msra.mxu0 %v2104
    %2137 = vmatprep.subr.mxu0 0.0
    %2138 = vmatpush2.msra.mxu0 0.0
    %2139 = vmatprep.subr.mxu0 0.0
    %2140 = vmatpush2.msra.mxu0 0.0
    %2141 = vmatprep.subr.mxu0 0.0
    %2142 = vmatpush2.msra.mxu0 0.0
    %2143 = vmatprep.subr.mxu0 0.0
    %2144 = vmatpush2.msra.mxu0 0.0
    %2145 = vmatprep.subr.mxu0 0.0
    %2146 = vmatpush2.msra.mxu0 0.0
    %2147 = vmatprep.subr.mxu0 0.0
    %2148 = vmatpush2.msra.mxu0 0.0
    %2149 = vmatprep.subr.mxu0 0.0
    %2150 = vmatpush2.msra.mxu0 0.0
    %2151 = vmatprep.subr.mxu0 0.0
    %2152 = vmatpush2.msra.mxu0 0.0
    %2153 = vmatprep.subr.mxu0 0.0
    %2154 = vmatpush2.msra.mxu0 0.0
    %2155 = vmatprep.subr.mxu0 0.0
    %2156 = vmatpush2.msra.mxu0 0.0
    %2157 = vmatprep.subr.mxu0 0.0
    %2158 = vmatpush2.msra.mxu0 0.0
    %2159 = vmatprep.subr.mxu0 0.0
    %2160 = vmatpush2.msra.mxu0 0.0
    %2161 = vmatprep.subr.mxu0 0.0
    %2162 = vmatpush2.msra.mxu0 0.0
    %2163 = vmatprep.subr.mxu0 0.0
    %2164 = vmatpush2.msra.mxu0 0.0
    %2165 = vmatprep.subr.mxu0 0.0
    %2166 = vmatpush2.msra.mxu0 0.0
    %2167 = vmatprep.subr.mxu0 0.0
    %2168 = vmatpush2.msra.mxu0 0.0
    %2169 = vmatprep.mubr.f32.mxu0 0.0
    %2170 = vmatmul.mubr.f32.gmra.mxu0 %v58
    %v2171 = vpop.f32.mrf.mxu0
    %v2172 = vadd.f32 0.0, %v2171
    %v2173 = vpop.f32.mrf.mxu0
    %2174 = vmatprep.mubr.f32.mxu0 0.0
    %2175 = vmatmul.mubr.f32.gmra.mxu0 %v61
    %v2176 = vpop.f32.mrf.mxu0
    %v2177 = vadd.f32 0.0, %v2176
    %v2178 = vpop.f32.mrf.mxu0
    %2179 = vdwg.mxu0
    %v2180 = vld [vmem:[#allocation2] sm:$0xff]
    %v2181 = vld [vmem:[#allocation2 + $0x8] sm:$0xff]
    %v2182 = vadd.f32 %v2180, %v2172
    %v2183 = vadd.f32 %v2181, %v2177
    %vm2184 = vcmp.ge.f32.partialorder %v2182, 1.0
    %vm2185 = vcmp.ge.f32.partialorder %v2183, 1.0
    %v2186 = vsel %vm2184, 0.0, %v2182
    %v2187 = vsel %vm2185, 0.0, %v2183
    %2188 = vst [vmem:[#allocation2] sm:$0xff] %v2186
    %2189 = vst [vmem:[#allocation2 + $0x8] sm:$0xff] %v2187
    %v2190 = vsel %vm2184, 1.0, 0.0
    %v2191 = vsel %vm2185, 1.0, 0.0
    %v2192 = vpack.c.bf16 %v2191, %v2190
    %2193 = vmatprep.subr.bf16.mxu0 0
    %2194 = vmatpush1.bf16.msra.mxu0 0
    %2195 = vmatprep.subr.bf16.mxu0 0
    %2196 = vmatpush1.bf16.msra.mxu0 0
    %2197 = vmatprep.subr.bf16.mxu0 0
    %2198 = vmatpush1.bf16.msra.mxu0 0
    %2199 = vmatprep.subr.bf16.mxu0 0
    %2200 = vmatpush1.bf16.msra.mxu0 0
    %2201 = vmatprep.subr.bf16.mxu0 0
    %2202 = vmatpush1.bf16.msra.mxu0 0
    %2203 = vmatprep.subr.bf16.mxu0 0
    %2204 = vmatpush1.bf16.msra.mxu0 0
    %2205 = vmatprep.subr.bf16.mxu0 0
    %2206 = vmatpush1.bf16.msra.mxu0 0
    %2207 = vmatprep.subr.bf16.mxu0 0
    %2208 = vmatpush1.bf16.msra.mxu0 %v2192
    %2209 = vmatprep.subr.bf16.mxu0 0
    %2210 = vmatpush2.bf16.msra.mxu0 0
    %2211 = vmatprep.subr.bf16.mxu0 0
    %2212 = vmatpush2.bf16.msra.mxu0 0
    %2213 = vmatprep.subr.bf16.mxu0 0
    %2214 = vmatpush2.bf16.msra.mxu0 0
    %2215 = vmatprep.subr.bf16.mxu0 0
    %2216 = vmatpush2.bf16.msra.mxu0 0
    %2217 = vmatprep.subr.bf16.mxu0 0
    %2218 = vmatpush2.bf16.msra.mxu0 0
    %2219 = vmatprep.subr.bf16.mxu0 0
    %2220 = vmatpush2.bf16.msra.mxu0 0
    %2221 = vmatprep.subr.bf16.mxu0 0
    %2222 = vmatpush2.bf16.msra.mxu0 0
    %2223 = vmatprep.subr.bf16.mxu0 0
    %2224 = vmatpush2.bf16.msra.mxu0 0
    %2225 = vmatprep.mubr.bf16.mxu0 0
    %2226 = vmatmul.mubr.bf16.gmra.mxu0 %v163
    %v2227 = vpop.f32.mrf.mxu0
    %v2228 = vadd.f32 0.0, %v2227
    %v2229 = vpop.f32.mrf.mxu0
    %v2230 = vpop.f32.mrf.mxu0
    %v2231 = vadd.f32 0.0, %v2230
    %v2232 = vpop.f32.mrf.mxu0
    %2233 = vmatprep.mubr.bf16.mxu0 0
    %2234 = vmatmul.mubr.bf16.gmra.mxu0 %v166
    %v2235 = vpop.f32.mrf.mxu0
    %v2236 = vadd.f32 0.0, %v2235
    %v2237 = vpop.f32.mrf.mxu0
    %v2238 = vpop.f32.mrf.mxu0
    %v2239 = vadd.f32 0.0, %v2238
    %v2240 = vpop.f32.mrf.mxu0
    %2241 = vdwg.mxu0
    %v2242 = vld [vmem:[#allocation3] sm:$0xff]
    %v2243 = vld [vmem:[#allocation3 + $0x8] sm:$0xff]
    %v2244 = vld [vmem:[#allocation3 + $0x10] sm:$0xff]
    %v2245 = vld [vmem:[#allocation3 + $0x18] sm:$0xff]
    %v2246 = vadd.f32 %v2242, %v2228
    %v2247 = vadd.f32 %v2243, %v2231
    %v2248 = vadd.f32 %v2244, %v2236
    %v2249 = vadd.f32 %v2245, %v2239
    %vm2250 = vcmp.ge.f32.partialorder %v2246, 1.0
    %vm2251 = vcmp.ge.f32.partialorder %v2247, 1.0
    %vm2252 = vcmp.ge.f32.partialorder %v2248, 1.0
    %vm2253 = vcmp.ge.f32.partialorder %v2249, 1.0
    %v2254 = vsel %vm2250, 0.0, %v2246
    %v2255 = vsel %vm2251, 0.0, %v2247
    %v2256 = vsel %vm2252, 0.0, %v2248
    %v2257 = vsel %vm2253, 0.0, %v2249
    %2258 = vst [vmem:[#allocation3] sm:$0xff] %v2254
    %2259 = vst [vmem:[#allocation3 + $0x8] sm:$0xff] %v2255
    %2260 = vst [vmem:[#allocation3 + $0x10] sm:$0xff] %v2256
    %2261 = vst [vmem:[#allocation3 + $0x18] sm:$0xff] %v2257
    %v2262 = vsel %vm2250, 1.0, 0.0
    %v2263 = vsel %vm2251, 1.0, 0.0
    %v2264 = vsel %vm2252, 1.0, 0.0
    %v2265 = vsel %vm2253, 1.0, 0.0
    %v2266 = vpack.c.bf16 %v2263, %v2262
    %v2267 = vpack.c.bf16 %v2265, %v2264
    %2268 = vmatprep.subr.bf16.mxu0 0
    %2269 = vmatpush1.bf16.msra.mxu0 0
    %2270 = vmatprep.subr.bf16.mxu0 0
    %2271 = vmatpush1.bf16.msra.mxu0 0
    %2272 = vmatprep.subr.bf16.mxu0 0
    %2273 = vmatpush1.bf16.msra.mxu0 0
    %2274 = vmatprep.subr.bf16.mxu0 0
    %2275 = vmatpush1.bf16.msra.mxu0 0
    %2276 = vmatprep.subr.bf16.mxu0 0
    %2277 = vmatpush1.bf16.msra.mxu0 0
    %2278 = vmatprep.subr.bf16.mxu0 0
    %2279 = vmatpush1.bf16.msra.mxu0 0
    %2280 = vmatprep.subr.bf16.mxu0 0
    %2281 = vmatpush1.bf16.msra.mxu0 %v2267
    %2282 = vmatprep.subr.bf16.mxu0 0
    %2283 = vmatpush1.bf16.msra.mxu0 %v2266
    %2284 = vmatprep.subr.bf16.mxu0 0
    %2285 = vmatpush2.bf16.msra.mxu0 0
    %2286 = vmatprep.subr.bf16.mxu0 0
    %2287 = vmatpush2.bf16.msra.mxu0 0
    %2288 = vmatprep.subr.bf16.mxu0 0
    %2289 = vmatpush2.bf16.msra.mxu0 0
    %2290 = vmatprep.subr.bf16.mxu0 0
    %2291 = vmatpush2.bf16.msra.mxu0 0
    %2292 = vmatprep.subr.bf16.mxu0 0
    %2293 = vmatpush2.bf16.msra.mxu0 0
    %2294 = vmatprep.subr.bf16.mxu0 0
    %2295 = vmatpush2.bf16.msra.mxu0 0
    %2296 = vmatprep.subr.bf16.mxu0 0
    %2297 = vmatpush2.bf16.msra.mxu0 0
    %2298 = vmatprep.subr.bf16.mxu0 0
    %2299 = vmatpush2.bf16.msra.mxu0 0
    %2300 = vmatprep.mubr.bf16.mxu0 0
    %2301 = vmatmul.mubr.bf16.gmra.mxu0 %v250
    %v2302 = vpop.f32.mrf.mxu0
    %v2303 = vadd.f32 0.0, %v2302
    %v2304 = vpop.f32.mrf.mxu0
    %v2305 = vpop.f32.mrf.mxu0
    %v2306 = vadd.f32 0.0, %v2305
    %v2307 = vpop.f32.mrf.mxu0
    %2308 = vdwg.mxu0
    %v2309 = vld [vmem:[#allocation4] sm:$0xff]
    %v2310 = vld [vmem:[#allocation4 + $0x8] sm:$0xff]
    %v2311 = vadd.f32 %v2309, %v2303
    %v2312 = vadd.f32 %v2310, %v2306
    %vm2313 = vcmp.ge.f32.partialorder %v2311, 1.0
    %vm2314 = vcmp.ge.f32.partialorder %v2312, 1.0
    %v2315 = vsel %vm2313, 0.0, %v2311
    %v2316 = vsel %vm2314, 0.0, %v2312
    %2317 = vst [vmem:[#allocation4] sm:$0xff] %v2315
    %2318 = vst [vmem:[#allocation4 + $0x8] sm:$0xff] %v2316
    %v2319 = vsel %vm2313, 1.0, 0.0
    %v2320 = vsel %vm2314, 1.0, 0.0
    %v2321 = vld [vmem:[#allocation8] sm:$0xff]
    %v2322 = vld [vmem:[#allocation8 + $0x8] sm:$0xff]
    %v2323 = vadd.f32 %v2321, %v2319
    %v2324 = vadd.f32 %v2322, %v2320
    %2325 = vst [vmem:[#allocation8] sm:$0xff] %v2323
    %2326 = vst [vmem:[#allocation8 + $0x8] sm:$0xff] %v2324
    %s2327 = scalar_lea.vmem [#allocation5], 80
    %v2328 = vld [vmem:[%s2327] sm:$0xff]
    %2329 = vmatprep.subr.mxu0 0.0
    %2330 = vmatpush1.msra.mxu0 0.0
    %2331 = vmatprep.subr.mxu0 0.0
    %2332 = vmatpush1.msra.mxu0 0.0
    %2333 = vmatprep.subr.mxu0 0.0
    %2334 = vmatpush1.msra.mxu0 0.0
    %2335 = vmatprep.subr.mxu0 0.0
    %2336 = vmatpush1.msra.mxu0 0.0
    %2337 = vmatprep.subr.mxu0 0.0
    %2338 = vmatpush1.msra.mxu0 0.0
    %2339 = vmatprep.subr.mxu0 0.0
    %2340 = vmatpush1.msra.mxu0 0.0
    %2341 = vmatprep.subr.mxu0 0.0
    %2342 = vmatpush1.msra.mxu0 0.0
    %2343 = vmatprep.subr.mxu0 0.0
    %2344 = vmatpush1.msra.mxu0 0.0
    %2345 = vmatprep.subr.mxu0 0.0
    %2346 = vmatpush1.msra.mxu0 0.0
    %2347 = vmatprep.subr.mxu0 0.0
    %2348 = vmatpush1.msra.mxu0 0.0
    %2349 = vmatprep.subr.mxu0 0.0
    %2350 = vmatpush1.msra.mxu0 0.0
    %2351 = vmatprep.subr.mxu0 0.0
    %2352 = vmatpush1.msra.mxu0 0.0
    %2353 = vmatprep.subr.mxu0 0.0
    %2354 = vmatpush1.msra.mxu0 0.0
    %2355 = vmatprep.subr.mxu0 0.0
    %2356 = vmatpush1.msra.mxu0 0.0
    %2357 = vmatprep.subr.mxu0 0.0
    %2358 = vmatpush1.msra.mxu0 0.0
    %2359 = vmatprep.subr.mxu0 0.0
    %2360 = vmatpush1.msra.mxu0 %v2328
    %2361 = vmatprep.subr.mxu0 0.0
    %2362 = vmatpush2.msra.mxu0 0.0
    %2363 = vmatprep.subr.mxu0 0.0
    %2364 = vmatpush2.msra.mxu0 0.0
    %2365 = vmatprep.subr.mxu0 0.0
    %2366 = vmatpush2.msra.mxu0 0.0
    %2367 = vmatprep.subr.mxu0 0.0
    %2368 = vmatpush2.msra.mxu0 0.0
    %2369 = vmatprep.subr.mxu0 0.0
    %2370 = vmatpush2.msra.mxu0 0.0
    %2371 = vmatprep.subr.mxu0 0.0
    %2372 = vmatpush2.msra.mxu0 0.0
    %2373 = vmatprep.subr.mxu0 0.0
    %2374 = vmatpush2.msra.mxu0 0.0
    %2375 = vmatprep.subr.mxu0 0.0
    %2376 = vmatpush2.msra.mxu0 0.0
    %2377 = vmatprep.subr.mxu0 0.0
    %2378 = vmatpush2.msra.mxu0 0.0
    %2379 = vmatprep.subr.mxu0 0.0
    %2380 = vmatpush2.msra.mxu0 0.0
    %2381 = vmatprep.subr.mxu0 0.0
    %2382 = vmatpush2.msra.mxu0 0.0
    %2383 = vmatprep.subr.mxu0 0.0
    %2384 = vmatpush2.msra.mxu0 0.0
    %2385 = vmatprep.subr.mxu0 0.0
    %2386 = vmatpush2.msra.mxu0 0.0
    %2387 = vmatprep.subr.mxu0 0.0
    %2388 = vmatpush2.msra.mxu0 0.0
    %2389 = vmatprep.subr.mxu0 0.0
    %2390 = vmatpush2.msra.mxu0 0.0
    %2391 = vmatprep.subr.mxu0 0.0
    %2392 = vmatpush2.msra.mxu0 0.0
    %2393 = vmatprep.mubr.f32.mxu0 0.0
    %2394 = vmatmul.mubr.f32.gmra.mxu0 %v58
    %v2395 = vpop.f32.mrf.mxu0
    %v2396 = vadd.f32 0.0, %v2395
    %v2397 = vpop.f32.mrf.mxu0
    %2398 = vmatprep.mubr.f32.mxu0 0.0
    %2399 = vmatmul.mubr.f32.gmra.mxu0 %v61
    %v2400 = vpop.f32.mrf.mxu0
    %v2401 = vadd.f32 0.0, %v2400
    %v2402 = vpop.f32.mrf.mxu0
    %2403 = vdwg.mxu0
    %v2404 = vld [vmem:[#allocation2] sm:$0xff]
    %v2405 = vld [vmem:[#allocation2 + $0x8] sm:$0xff]
    %v2406 = vadd.f32 %v2404, %v2396
    %v2407 = vadd.f32 %v2405, %v2401
    %vm2408 = vcmp.ge.f32.partialorder %v2406, 1.0
    %vm2409 = vcmp.ge.f32.partialorder %v2407, 1.0
    %v2410 = vsel %vm2408, 0.0, %v2406
    %v2411 = vsel %vm2409, 0.0, %v2407
    %2412 = vst [vmem:[#allocation2] sm:$0xff] %v2410
    %2413 = vst [vmem:[#allocation2 + $0x8] sm:$0xff] %v2411
    %v2414 = vsel %vm2408, 1.0, 0.0
    %v2415 = vsel %vm2409, 1.0, 0.0
    %v2416 = vpack.c.bf16 %v2415, %v2414
    %2417 = vmatprep.subr.bf16.mxu0 0
    %2418 = vmatpush1.bf16.msra.mxu0 0
    %2419 = vmatprep.subr.bf16.mxu0 0
    %2420 = vmatpush1.bf16.msra.mxu0 0
    %2421 = vmatprep.subr.bf16.mxu0 0
    %2422 = vmatpush1.bf16.msra.mxu0 0
    %2423 = vmatprep.subr.bf16.mxu0 0
    %2424 = vmatpush1.bf16.msra.mxu0 0
    %2425 = vmatprep.subr.bf16.mxu0 0
    %2426 = vmatpush1.bf16.msra.mxu0 0
    %2427 = vmatprep.subr.bf16.mxu0 0
    %2428 = vmatpush1.bf16.msra.mxu0 0
    %2429 = vmatprep.subr.bf16.mxu0 0
    %2430 = vmatpush1.bf16.msra.mxu0 0
    %2431 = vmatprep.subr.bf16.mxu0 0
    %2432 = vmatpush1.bf16.msra.mxu0 %v2416
    %2433 = vmatprep.subr.bf16.mxu0 0
    %2434 = vmatpush2.bf16.msra.mxu0 0
    %2435 = vmatprep.subr.bf16.mxu0 0
    %2436 = vmatpush2.bf16.msra.mxu0 0
    %2437 = vmatprep.subr.bf16.mxu0 0
    %2438 = vmatpush2.bf16.msra.mxu0 0
    %2439 = vmatprep.subr.bf16.mxu0 0
    %2440 = vmatpush2.bf16.msra.mxu0 0
    %2441 = vmatprep.subr.bf16.mxu0 0
    %2442 = vmatpush2.bf16.msra.mxu0 0
    %2443 = vmatprep.subr.bf16.mxu0 0
    %2444 = vmatpush2.bf16.msra.mxu0 0
    %2445 = vmatprep.subr.bf16.mxu0 0
    %2446 = vmatpush2.bf16.msra.mxu0 0
    %2447 = vmatprep.subr.bf16.mxu0 0
    %2448 = vmatpush2.bf16.msra.mxu0 0
    %2449 = vmatprep.mubr.bf16.mxu0 0
    %2450 = vmatmul.mubr.bf16.gmra.mxu0 %v163
    %v2451 = vpop.f32.mrf.mxu0
    %v2452 = vadd.f32 0.0, %v2451
    %v2453 = vpop.f32.mrf.mxu0
    %v2454 = vpop.f32.mrf.mxu0
    %v2455 = vadd.f32 0.0, %v2454
    %v2456 = vpop.f32.mrf.mxu0
    %2457 = vmatprep.mubr.bf16.mxu0 0
    %2458 = vmatmul.mubr.bf16.gmra.mxu0 %v166
    %v2459 = vpop.f32.mrf.mxu0
    %v2460 = vadd.f32 0.0, %v2459
    %v2461 = vpop.f32.mrf.mxu0
    %v2462 = vpop.f32.mrf.mxu0
    %v2463 = vadd.f32 0.0, %v2462
    %v2464 = vpop.f32.mrf.mxu0
    %2465 = vdwg.mxu0
    %v2466 = vld [vmem:[#allocation3] sm:$0xff]
    %v2467 = vld [vmem:[#allocation3 + $0x8] sm:$0xff]
    %v2468 = vld [vmem:[#allocation3 + $0x10] sm:$0xff]
    %v2469 = vld [vmem:[#allocation3 + $0x18] sm:$0xff]
    %v2470 = vadd.f32 %v2466, %v2452
    %v2471 = vadd.f32 %v2467, %v2455
    %v2472 = vadd.f32 %v2468, %v2460
    %v2473 = vadd.f32 %v2469, %v2463
    %vm2474 = vcmp.ge.f32.partialorder %v2470, 1.0
    %vm2475 = vcmp.ge.f32.partialorder %v2471, 1.0
    %vm2476 = vcmp.ge.f32.partialorder %v2472, 1.0
    %vm2477 = vcmp.ge.f32.partialorder %v2473, 1.0
    %v2478 = vsel %vm2474, 0.0, %v2470
    %v2479 = vsel %vm2475, 0.0, %v2471
    %v2480 = vsel %vm2476, 0.0, %v2472
    %v2481 = vsel %vm2477, 0.0, %v2473
    %2482 = vst [vmem:[#allocation3] sm:$0xff] %v2478
    %2483 = vst [vmem:[#allocation3 + $0x8] sm:$0xff] %v2479
    %2484 = vst [vmem:[#allocation3 + $0x10] sm:$0xff] %v2480
    %2485 = vst [vmem:[#allocation3 + $0x18] sm:$0xff] %v2481
    %v2486 = vsel %vm2474, 1.0, 0.0
    %v2487 = vsel %vm2475, 1.0, 0.0
    %v2488 = vsel %vm2476, 1.0, 0.0
    %v2489 = vsel %vm2477, 1.0, 0.0
    %v2490 = vpack.c.bf16 %v2487, %v2486
    %v2491 = vpack.c.bf16 %v2489, %v2488
    %2492 = vmatprep.subr.bf16.mxu0 0
    %2493 = vmatpush1.bf16.msra.mxu0 0
    %2494 = vmatprep.subr.bf16.mxu0 0
    %2495 = vmatpush1.bf16.msra.mxu0 0
    %2496 = vmatprep.subr.bf16.mxu0 0
    %2497 = vmatpush1.bf16.msra.mxu0 0
    %2498 = vmatprep.subr.bf16.mxu0 0
    %2499 = vmatpush1.bf16.msra.mxu0 0
    %2500 = vmatprep.subr.bf16.mxu0 0
    %2501 = vmatpush1.bf16.msra.mxu0 0
    %2502 = vmatprep.subr.bf16.mxu0 0
    %2503 = vmatpush1.bf16.msra.mxu0 0
    %2504 = vmatprep.subr.bf16.mxu0 0
    %2505 = vmatpush1.bf16.msra.mxu0 %v2491
    %2506 = vmatprep.subr.bf16.mxu0 0
    %2507 = vmatpush1.bf16.msra.mxu0 %v2490
    %2508 = vmatprep.subr.bf16.mxu0 0
    %2509 = vmatpush2.bf16.msra.mxu0 0
    %2510 = vmatprep.subr.bf16.mxu0 0
    %2511 = vmatpush2.bf16.msra.mxu0 0
    %2512 = vmatprep.subr.bf16.mxu0 0
    %2513 = vmatpush2.bf16.msra.mxu0 0
    %2514 = vmatprep.subr.bf16.mxu0 0
    %2515 = vmatpush2.bf16.msra.mxu0 0
    %2516 = vmatprep.subr.bf16.mxu0 0
    %2517 = vmatpush2.bf16.msra.mxu0 0
    %2518 = vmatprep.subr.bf16.mxu0 0
    %2519 = vmatpush2.bf16.msra.mxu0 0
    %2520 = vmatprep.subr.bf16.mxu0 0
    %2521 = vmatpush2.bf16.msra.mxu0 0
    %2522 = vmatprep.subr.bf16.mxu0 0
    %2523 = vmatpush2.bf16.msra.mxu0 0
    %2524 = vmatprep.mubr.bf16.mxu0 0
    %2525 = vmatmul.mubr.bf16.gmra.mxu0 %v250
    %v2526 = vpop.f32.mrf.mxu0
    %v2527 = vadd.f32 0.0, %v2526
    %v2528 = vpop.f32.mrf.mxu0
    %v2529 = vpop.f32.mrf.mxu0
    %v2530 = vadd.f32 0.0, %v2529
    %v2531 = vpop.f32.mrf.mxu0
    %2532 = vdwg.mxu0
    %v2533 = vld [vmem:[#allocation4] sm:$0xff]
    %v2534 = vld [vmem:[#allocation4 + $0x8] sm:$0xff]
    %v2535 = vadd.f32 %v2533, %v2527
    %v2536 = vadd.f32 %v2534, %v2530
    %vm2537 = vcmp.ge.f32.partialorder %v2535, 1.0
    %vm2538 = vcmp.ge.f32.partialorder %v2536, 1.0
    %v2539 = vsel %vm2537, 0.0, %v2535
    %v2540 = vsel %vm2538, 0.0, %v2536
    %2541 = vst [vmem:[#allocation4] sm:$0xff] %v2539
    %2542 = vst [vmem:[#allocation4 + $0x8] sm:$0xff] %v2540
    %v2543 = vsel %vm2537, 1.0, 0.0
    %v2544 = vsel %vm2538, 1.0, 0.0
    %v2545 = vld [vmem:[#allocation8] sm:$0xff]
    %v2546 = vld [vmem:[#allocation8 + $0x8] sm:$0xff]
    %v2547 = vadd.f32 %v2545, %v2543
    %v2548 = vadd.f32 %v2546, %v2544
    %2549 = vst [vmem:[#allocation8] sm:$0xff] %v2547
    %2550 = vst [vmem:[#allocation8 + $0x8] sm:$0xff] %v2548
    %s2551 = scalar_lea.vmem [#allocation5], 88
    %v2552 = vld [vmem:[%s2551] sm:$0xff]
    %2553 = vmatprep.subr.mxu0 0.0
    %2554 = vmatpush1.msra.mxu0 0.0
    %2555 = vmatprep.subr.mxu0 0.0
    %2556 = vmatpush1.msra.mxu0 0.0
    %2557 = vmatprep.subr.mxu0 0.0
    %2558 = vmatpush1.msra.mxu0 0.0
    %2559 = vmatprep.subr.mxu0 0.0
    %2560 = vmatpush1.msra.mxu0 0.0
    %2561 = vmatprep.subr.mxu0 0.0
    %2562 = vmatpush1.msra.mxu0 0.0
    %2563 = vmatprep.subr.mxu0 0.0
    %2564 = vmatpush1.msra.mxu0 0.0
    %2565 = vmatprep.subr.mxu0 0.0
    %2566 = vmatpush1.msra.mxu0 0.0
    %2567 = vmatprep.subr.mxu0 0.0
    %2568 = vmatpush1.msra.mxu0 0.0
    %2569 = vmatprep.subr.mxu0 0.0
    %2570 = vmatpush1.msra.mxu0 0.0
    %2571 = vmatprep.subr.mxu0 0.0
    %2572 = vmatpush1.msra.mxu0 0.0
    %2573 = vmatprep.subr.mxu0 0.0
    %2574 = vmatpush1.msra.mxu0 0.0
    %2575 = vmatprep.subr.mxu0 0.0
    %2576 = vmatpush1.msra.mxu0 0.0
    %2577 = vmatprep.subr.mxu0 0.0
    %2578 = vmatpush1.msra.mxu0 0.0
    %2579 = vmatprep.subr.mxu0 0.0
    %2580 = vmatpush1.msra.mxu0 0.0
    %2581 = vmatprep.subr.mxu0 0.0
    %2582 = vmatpush1.msra.mxu0 0.0
    %2583 = vmatprep.subr.mxu0 0.0
    %2584 = vmatpush1.msra.mxu0 %v2552
    %2585 = vmatprep.subr.mxu0 0.0
    %2586 = vmatpush2.msra.mxu0 0.0
    %2587 = vmatprep.subr.mxu0 0.0
    %2588 = vmatpush2.msra.mxu0 0.0
    %2589 = vmatprep.subr.mxu0 0.0
    %2590 = vmatpush2.msra.mxu0 0.0
    %2591 = vmatprep.subr.mxu0 0.0
    %2592 = vmatpush2.msra.mxu0 0.0
    %2593 = vmatprep.subr.mxu0 0.0
    %2594 = vmatpush2.msra.mxu0 0.0
    %2595 = vmatprep.subr.mxu0 0.0
    %2596 = vmatpush2.msra.mxu0 0.0
    %2597 = vmatprep.subr.mxu0 0.0
    %2598 = vmatpush2.msra.mxu0 0.0
    %2599 = vmatprep.subr.mxu0 0.0
    %2600 = vmatpush2.msra.mxu0 0.0
    %2601 = vmatprep.subr.mxu0 0.0
    %2602 = vmatpush2.msra.mxu0 0.0
    %2603 = vmatprep.subr.mxu0 0.0
    %2604 = vmatpush2.msra.mxu0 0.0
    %2605 = vmatprep.subr.mxu0 0.0
    %2606 = vmatpush2.msra.mxu0 0.0
    %2607 = vmatprep.subr.mxu0 0.0
    %2608 = vmatpush2.msra.mxu0 0.0
    %2609 = vmatprep.subr.mxu0 0.0
    %2610 = vmatpush2.msra.mxu0 0.0
    %2611 = vmatprep.subr.mxu0 0.0
    %2612 = vmatpush2.msra.mxu0 0.0
    %2613 = vmatprep.subr.mxu0 0.0
    %2614 = vmatpush2.msra.mxu0 0.0
    %2615 = vmatprep.subr.mxu0 0.0
    %2616 = vmatpush2.msra.mxu0 0.0
    %2617 = vmatprep.mubr.f32.mxu0 0.0
    %2618 = vmatmul.mubr.f32.gmra.mxu0 %v58
    %v2619 = vpop.f32.mrf.mxu0
    %v2620 = vadd.f32 0.0, %v2619
    %v2621 = vpop.f32.mrf.mxu0
    %2622 = vmatprep.mubr.f32.mxu0 0.0
    %2623 = vmatmul.mubr.f32.gmra.mxu0 %v61
    %v2624 = vpop.f32.mrf.mxu0
    %v2625 = vadd.f32 0.0, %v2624
    %v2626 = vpop.f32.mrf.mxu0
    %2627 = vdwg.mxu0
    %v2628 = vld [vmem:[#allocation2] sm:$0xff]
    %v2629 = vld [vmem:[#allocation2 + $0x8] sm:$0xff]
    %v2630 = vadd.f32 %v2628, %v2620
    %v2631 = vadd.f32 %v2629, %v2625
    %vm2632 = vcmp.ge.f32.partialorder %v2630, 1.0
    %vm2633 = vcmp.ge.f32.partialorder %v2631, 1.0
    %v2634 = vsel %vm2632, 0.0, %v2630
    %v2635 = vsel %vm2633, 0.0, %v2631
    %2636 = vst [vmem:[#allocation2] sm:$0xff] %v2634
    %2637 = vst [vmem:[#allocation2 + $0x8] sm:$0xff] %v2635
    %v2638 = vsel %vm2632, 1.0, 0.0
    %v2639 = vsel %vm2633, 1.0, 0.0
    %v2640 = vpack.c.bf16 %v2639, %v2638
    %2641 = vmatprep.subr.bf16.mxu0 0
    %2642 = vmatpush1.bf16.msra.mxu0 0
    %2643 = vmatprep.subr.bf16.mxu0 0
    %2644 = vmatpush1.bf16.msra.mxu0 0
    %2645 = vmatprep.subr.bf16.mxu0 0
    %2646 = vmatpush1.bf16.msra.mxu0 0
    %2647 = vmatprep.subr.bf16.mxu0 0
    %2648 = vmatpush1.bf16.msra.mxu0 0
    %2649 = vmatprep.subr.bf16.mxu0 0
    %2650 = vmatpush1.bf16.msra.mxu0 0
    %2651 = vmatprep.subr.bf16.mxu0 0
    %2652 = vmatpush1.bf16.msra.mxu0 0
    %2653 = vmatprep.subr.bf16.mxu0 0
    %2654 = vmatpush1.bf16.msra.mxu0 0
    %2655 = vmatprep.subr.bf16.mxu0 0
    %2656 = vmatpush1.bf16.msra.mxu0 %v2640
    %2657 = vmatprep.subr.bf16.mxu0 0
    %2658 = vmatpush2.bf16.msra.mxu0 0
    %2659 = vmatprep.subr.bf16.mxu0 0
    %2660 = vmatpush2.bf16.msra.mxu0 0
    %2661 = vmatprep.subr.bf16.mxu0 0
    %2662 = vmatpush2.bf16.msra.mxu0 0
    %2663 = vmatprep.subr.bf16.mxu0 0
    %2664 = vmatpush2.bf16.msra.mxu0 0
    %2665 = vmatprep.subr.bf16.mxu0 0
    %2666 = vmatpush2.bf16.msra.mxu0 0
    %2667 = vmatprep.subr.bf16.mxu0 0
    %2668 = vmatpush2.bf16.msra.mxu0 0
    %2669 = vmatprep.subr.bf16.mxu0 0
    %2670 = vmatpush2.bf16.msra.mxu0 0
    %2671 = vmatprep.subr.bf16.mxu0 0
    %2672 = vmatpush2.bf16.msra.mxu0 0
    %2673 = vmatprep.mubr.bf16.mxu0 0
    %2674 = vmatmul.mubr.bf16.gmra.mxu0 %v163
    %v2675 = vpop.f32.mrf.mxu0
    %v2676 = vadd.f32 0.0, %v2675
    %v2677 = vpop.f32.mrf.mxu0
    %v2678 = vpop.f32.mrf.mxu0
    %v2679 = vadd.f32 0.0, %v2678
    %v2680 = vpop.f32.mrf.mxu0
    %2681 = vmatprep.mubr.bf16.mxu0 0
    %2682 = vmatmul.mubr.bf16.gmra.mxu0 %v166
    %v2683 = vpop.f32.mrf.mxu0
    %v2684 = vadd.f32 0.0, %v2683
    %v2685 = vpop.f32.mrf.mxu0
    %v2686 = vpop.f32.mrf.mxu0
    %v2687 = vadd.f32 0.0, %v2686
    %v2688 = vpop.f32.mrf.mxu0
    %2689 = vdwg.mxu0
    %v2690 = vld [vmem:[#allocation3] sm:$0xff]
    %v2691 = vld [vmem:[#allocation3 + $0x8] sm:$0xff]
    %v2692 = vld [vmem:[#allocation3 + $0x10] sm:$0xff]
    %v2693 = vld [vmem:[#allocation3 + $0x18] sm:$0xff]
    %v2694 = vadd.f32 %v2690, %v2676
    %v2695 = vadd.f32 %v2691, %v2679
    %v2696 = vadd.f32 %v2692, %v2684
    %v2697 = vadd.f32 %v2693, %v2687
    %vm2698 = vcmp.ge.f32.partialorder %v2694, 1.0
    %vm2699 = vcmp.ge.f32.partialorder %v2695, 1.0
    %vm2700 = vcmp.ge.f32.partialorder %v2696, 1.0
    %vm2701 = vcmp.ge.f32.partialorder %v2697, 1.0
    %v2702 = vsel %vm2698, 0.0, %v2694
    %v2703 = vsel %vm2699, 0.0, %v2695
    %v2704 = vsel %vm2700, 0.0, %v2696
    %v2705 = vsel %vm2701, 0.0, %v2697
    %2706 = vst [vmem:[#allocation3] sm:$0xff] %v2702
    %2707 = vst [vmem:[#allocation3 + $0x8] sm:$0xff] %v2703
    %2708 = vst [vmem:[#allocation3 + $0x10] sm:$0xff] %v2704
    %2709 = vst [vmem:[#allocation3 + $0x18] sm:$0xff] %v2705
    %v2710 = vsel %vm2698, 1.0, 0.0
    %v2711 = vsel %vm2699, 1.0, 0.0
    %v2712 = vsel %vm2700, 1.0, 0.0
    %v2713 = vsel %vm2701, 1.0, 0.0
    %v2714 = vpack.c.bf16 %v2711, %v2710
    %v2715 = vpack.c.bf16 %v2713, %v2712
    %2716 = vmatprep.subr.bf16.mxu0 0
    %2717 = vmatpush1.bf16.msra.mxu0 0
    %2718 = vmatprep.subr.bf16.mxu0 0
    %2719 = vmatpush1.bf16.msra.mxu0 0
    %2720 = vmatprep.subr.bf16.mxu0 0
    %2721 = vmatpush1.bf16.msra.mxu0 0
    %2722 = vmatprep.subr.bf16.mxu0 0
    %2723 = vmatpush1.bf16.msra.mxu0 0
    %2724 = vmatprep.subr.bf16.mxu0 0
    %2725 = vmatpush1.bf16.msra.mxu0 0
    %2726 = vmatprep.subr.bf16.mxu0 0
    %2727 = vmatpush1.bf16.msra.mxu0 0
    %2728 = vmatprep.subr.bf16.mxu0 0
    %2729 = vmatpush1.bf16.msra.mxu0 %v2715
    %2730 = vmatprep.subr.bf16.mxu0 0
    %2731 = vmatpush1.bf16.msra.mxu0 %v2714
    %2732 = vmatprep.subr.bf16.mxu0 0
    %2733 = vmatpush2.bf16.msra.mxu0 0
    %2734 = vmatprep.subr.bf16.mxu0 0
    %2735 = vmatpush2.bf16.msra.mxu0 0
    %2736 = vmatprep.subr.bf16.mxu0 0
    %2737 = vmatpush2.bf16.msra.mxu0 0
    %2738 = vmatprep.subr.bf16.mxu0 0
    %2739 = vmatpush2.bf16.msra.mxu0 0
    %2740 = vmatprep.subr.bf16.mxu0 0
    %2741 = vmatpush2.bf16.msra.mxu0 0
    %2742 = vmatprep.subr.bf16.mxu0 0
    %2743 = vmatpush2.bf16.msra.mxu0 0
    %2744 = vmatprep.subr.bf16.mxu0 0
    %2745 = vmatpush2.bf16.msra.mxu0 0
    %2746 = vmatprep.subr.bf16.mxu0 0
    %2747 = vmatpush2.bf16.msra.mxu0 0
    %2748 = vmatprep.mubr.bf16.mxu0 0
    %2749 = vmatmul.mubr.bf16.gmra.mxu0 %v250
    %v2750 = vpop.f32.mrf.mxu0
    %v2751 = vadd.f32 0.0, %v2750
    %v2752 = vpop.f32.mrf.mxu0
    %v2753 = vpop.f32.mrf.mxu0
    %v2754 = vadd.f32 0.0, %v2753
    %v2755 = vpop.f32.mrf.mxu0
    %2756 = vdwg.mxu0
    %v2757 = vld [vmem:[#allocation4] sm:$0xff]
    %v2758 = vld [vmem:[#allocation4 + $0x8] sm:$0xff]
    %v2759 = vadd.f32 %v2757, %v2751
    %v2760 = vadd.f32 %v2758, %v2754
    %vm2761 = vcmp.ge.f32.partialorder %v2759, 1.0
    %vm2762 = vcmp.ge.f32.partialorder %v2760, 1.0
    %v2763 = vsel %vm2761, 0.0, %v2759
    %v2764 = vsel %vm2762, 0.0, %v2760
    %2765 = vst [vmem:[#allocation4] sm:$0xff] %v2763
    %2766 = vst [vmem:[#allocation4 + $0x8] sm:$0xff] %v2764
    %v2767 = vsel %vm2761, 1.0, 0.0
    %v2768 = vsel %vm2762, 1.0, 0.0
    %v2769 = vld [vmem:[#allocation8] sm:$0xff]
    %v2770 = vld [vmem:[#allocation8 + $0x8] sm:$0xff]
    %v2771 = vadd.f32 %v2769, %v2767
    %v2772 = vadd.f32 %v2770, %v2768
    %2773 = vst [vmem:[#allocation8] sm:$0xff] %v2771
    %2774 = vst [vmem:[#allocation8 + $0x8] sm:$0xff] %v2772
    %s2775 = scalar_lea.vmem [#allocation5], 96
    %v2776 = vld [vmem:[%s2775] sm:$0xff]
    %2777 = vmatprep.subr.mxu0 0.0
    %2778 = vmatpush1.msra.mxu0 0.0
    %2779 = vmatprep.subr.mxu0 0.0
    %2780 = vmatpush1.msra.mxu0 0.0
    %2781 = vmatprep.subr.mxu0 0.0
    %2782 = vmatpush1.msra.mxu0 0.0
    %2783 = vmatprep.subr.mxu0 0.0
    %2784 = vmatpush1.msra.mxu0 0.0
    %2785 = vmatprep.subr.mxu0 0.0
    %2786 = vmatpush1.msra.mxu0 0.0
    %2787 = vmatprep.subr.mxu0 0.0
    %2788 = vmatpush1.msra.mxu0 0.0
    %2789 = vmatprep.subr.mxu0 0.0
    %2790 = vmatpush1.msra.mxu0 0.0
    %2791 = vmatprep.subr.mxu0 0.0
    %2792 = vmatpush1.msra.mxu0 0.0
    %2793 = vmatprep.subr.mxu0 0.0
    %2794 = vmatpush1.msra.mxu0 0.0
    %2795 = vmatprep.subr.mxu0 0.0
    %2796 = vmatpush1.msra.mxu0 0.0
    %2797 = vmatprep.subr.mxu0 0.0
    %2798 = vmatpush1.msra.mxu0 0.0
    %2799 = vmatprep.subr.mxu0 0.0
    %2800 = vmatpush1.msra.mxu0 0.0
    %2801 = vmatprep.subr.mxu0 0.0
    %2802 = vmatpush1.msra.mxu0 0.0
    %2803 = vmatprep.subr.mxu0 0.0
    %2804 = vmatpush1.msra.mxu0 0.0
    %2805 = vmatprep.subr.mxu0 0.0
    %2806 = vmatpush1.msra.mxu0 0.0
    %2807 = vmatprep.subr.mxu0 0.0
    %2808 = vmatpush1.msra.mxu0 %v2776
    %2809 = vmatprep.subr.mxu0 0.0
    %2810 = vmatpush2.msra.mxu0 0.0
    %2811 = vmatprep.subr.mxu0 0.0
    %2812 = vmatpush2.msra.mxu0 0.0
    %2813 = vmatprep.subr.mxu0 0.0
    %2814 = vmatpush2.msra.mxu0 0.0
    %2815 = vmatprep.subr.mxu0 0.0
    %2816 = vmatpush2.msra.mxu0 0.0
    %2817 = vmatprep.subr.mxu0 0.0
    %2818 = vmatpush2.msra.mxu0 0.0
    %2819 = vmatprep.subr.mxu0 0.0
    %2820 = vmatpush2.msra.mxu0 0.0
    %2821 = vmatprep.subr.mxu0 0.0
    %2822 = vmatpush2.msra.mxu0 0.0
    %2823 = vmatprep.subr.mxu0 0.0
    %2824 = vmatpush2.msra.mxu0 0.0
    %2825 = vmatprep.subr.mxu0 0.0
    %2826 = vmatpush2.msra.mxu0 0.0
    %2827 = vmatprep.subr.mxu0 0.0
    %2828 = vmatpush2.msra.mxu0 0.0
    %2829 = vmatprep.subr.mxu0 0.0
    %2830 = vmatpush2.msra.mxu0 0.0
    %2831 = vmatprep.subr.mxu0 0.0
    %2832 = vmatpush2.msra.mxu0 0.0
    %2833 = vmatprep.subr.mxu0 0.0
    %2834 = vmatpush2.msra.mxu0 0.0
    %2835 = vmatprep.subr.mxu0 0.0
    %2836 = vmatpush2.msra.mxu0 0.0
    %2837 = vmatprep.subr.mxu0 0.0
    %2838 = vmatpush2.msra.mxu0 0.0
    %2839 = vmatprep.subr.mxu0 0.0
    %2840 = vmatpush2.msra.mxu0 0.0
    %2841 = vmatprep.mubr.f32.mxu0 0.0
    %2842 = vmatmul.mubr.f32.gmra.mxu0 %v58
    %v2843 = vpop.f32.mrf.mxu0
    %v2844 = vadd.f32 0.0, %v2843
    %v2845 = vpop.f32.mrf.mxu0
    %2846 = vmatprep.mubr.f32.mxu0 0.0
    %2847 = vmatmul.mubr.f32.gmra.mxu0 %v61
    %v2848 = vpop.f32.mrf.mxu0
    %v2849 = vadd.f32 0.0, %v2848
    %v2850 = vpop.f32.mrf.mxu0
    %2851 = vdwg.mxu0
    %v2852 = vld [vmem:[#allocation2] sm:$0xff]
    %v2853 = vld [vmem:[#allocation2 + $0x8] sm:$0xff]
    %v2854 = vadd.f32 %v2852, %v2844
    %v2855 = vadd.f32 %v2853, %v2849
    %vm2856 = vcmp.ge.f32.partialorder %v2854, 1.0
    %vm2857 = vcmp.ge.f32.partialorder %v2855, 1.0
    %v2858 = vsel %vm2856, 0.0, %v2854
    %v2859 = vsel %vm2857, 0.0, %v2855
    %2860 = vst [vmem:[#allocation2] sm:$0xff] %v2858
    %2861 = vst [vmem:[#allocation2 + $0x8] sm:$0xff] %v2859
    %v2862 = vsel %vm2856, 1.0, 0.0
    %v2863 = vsel %vm2857, 1.0, 0.0
    %v2864 = vpack.c.bf16 %v2863, %v2862
    %2865 = vmatprep.subr.bf16.mxu0 0
    %2866 = vmatpush1.bf16.msra.mxu0 0
    %2867 = vmatprep.subr.bf16.mxu0 0
    %2868 = vmatpush1.bf16.msra.mxu0 0
    %2869 = vmatprep.subr.bf16.mxu0 0
    %2870 = vmatpush1.bf16.msra.mxu0 0
    %2871 = vmatprep.subr.bf16.mxu0 0
    %2872 = vmatpush1.bf16.msra.mxu0 0
    %2873 = vmatprep.subr.bf16.mxu0 0
    %2874 = vmatpush1.bf16.msra.mxu0 0
    %2875 = vmatprep.subr.bf16.mxu0 0
    %2876 = vmatpush1.bf16.msra.mxu0 0
    %2877 = vmatprep.subr.bf16.mxu0 0
    %2878 = vmatpush1.bf16.msra.mxu0 0
    %2879 = vmatprep.subr.bf16.mxu0 0
    %2880 = vmatpush1.bf16.msra.mxu0 %v2864
    %2881 = vmatprep.subr.bf16.mxu0 0
    %2882 = vmatpush2.bf16.msra.mxu0 0
    %2883 = vmatprep.subr.bf16.mxu0 0
    %2884 = vmatpush2.bf16.msra.mxu0 0
    %2885 = vmatprep.subr.bf16.mxu0 0
    %2886 = vmatpush2.bf16.msra.mxu0 0
    %2887 = vmatprep.subr.bf16.mxu0 0
    %2888 = vmatpush2.bf16.msra.mxu0 0
    %2889 = vmatprep.subr.bf16.mxu0 0
    %2890 = vmatpush2.bf16.msra.mxu0 0
    %2891 = vmatprep.subr.bf16.mxu0 0
    %2892 = vmatpush2.bf16.msra.mxu0 0
    %2893 = vmatprep.subr.bf16.mxu0 0
    %2894 = vmatpush2.bf16.msra.mxu0 0
    %2895 = vmatprep.subr.bf16.mxu0 0
    %2896 = vmatpush2.bf16.msra.mxu0 0
    %2897 = vmatprep.mubr.bf16.mxu0 0
    %2898 = vmatmul.mubr.bf16.gmra.mxu0 %v163
    %v2899 = vpop.f32.mrf.mxu0
    %v2900 = vadd.f32 0.0, %v2899
    %v2901 = vpop.f32.mrf.mxu0
    %v2902 = vpop.f32.mrf.mxu0
    %v2903 = vadd.f32 0.0, %v2902
    %v2904 = vpop.f32.mrf.mxu0
    %2905 = vmatprep.mubr.bf16.mxu0 0
    %2906 = vmatmul.mubr.bf16.gmra.mxu0 %v166
    %v2907 = vpop.f32.mrf.mxu0
    %v2908 = vadd.f32 0.0, %v2907
    %v2909 = vpop.f32.mrf.mxu0
    %v2910 = vpop.f32.mrf.mxu0
    %v2911 = vadd.f32 0.0, %v2910
    %v2912 = vpop.f32.mrf.mxu0
    %2913 = vdwg.mxu0
    %v2914 = vld [vmem:[#allocation3] sm:$0xff]
    %v2915 = vld [vmem:[#allocation3 + $0x8] sm:$0xff]
    %v2916 = vld [vmem:[#allocation3 + $0x10] sm:$0xff]
    %v2917 = vld [vmem:[#allocation3 + $0x18] sm:$0xff]
    %v2918 = vadd.f32 %v2914, %v2900
    %v2919 = vadd.f32 %v2915, %v2903
    %v2920 = vadd.f32 %v2916, %v2908
    %v2921 = vadd.f32 %v2917, %v2911
    %vm2922 = vcmp.ge.f32.partialorder %v2918, 1.0
    %vm2923 = vcmp.ge.f32.partialorder %v2919, 1.0
    %vm2924 = vcmp.ge.f32.partialorder %v2920, 1.0
    %vm2925 = vcmp.ge.f32.partialorder %v2921, 1.0
    %v2926 = vsel %vm2922, 0.0, %v2918
    %v2927 = vsel %vm2923, 0.0, %v2919
    %v2928 = vsel %vm2924, 0.0, %v2920
    %v2929 = vsel %vm2925, 0.0, %v2921
    %2930 = vst [vmem:[#allocation3] sm:$0xff] %v2926
    %2931 = vst [vmem:[#allocation3 + $0x8] sm:$0xff] %v2927
    %2932 = vst [vmem:[#allocation3 + $0x10] sm:$0xff] %v2928
    %2933 = vst [vmem:[#allocation3 + $0x18] sm:$0xff] %v2929
    %v2934 = vsel %vm2922, 1.0, 0.0
    %v2935 = vsel %vm2923, 1.0, 0.0
    %v2936 = vsel %vm2924, 1.0, 0.0
    %v2937 = vsel %vm2925, 1.0, 0.0
    %v2938 = vpack.c.bf16 %v2935, %v2934
    %v2939 = vpack.c.bf16 %v2937, %v2936
    %2940 = vmatprep.subr.bf16.mxu0 0
    %2941 = vmatpush1.bf16.msra.mxu0 0
    %2942 = vmatprep.subr.bf16.mxu0 0
    %2943 = vmatpush1.bf16.msra.mxu0 0
    %2944 = vmatprep.subr.bf16.mxu0 0
    %2945 = vmatpush1.bf16.msra.mxu0 0
    %2946 = vmatprep.subr.bf16.mxu0 0
    %2947 = vmatpush1.bf16.msra.mxu0 0
    %2948 = vmatprep.subr.bf16.mxu0 0
    %2949 = vmatpush1.bf16.msra.mxu0 0
    %2950 = vmatprep.subr.bf16.mxu0 0
    %2951 = vmatpush1.bf16.msra.mxu0 0
    %2952 = vmatprep.subr.bf16.mxu0 0
    %2953 = vmatpush1.bf16.msra.mxu0 %v2939
    %2954 = vmatprep.subr.bf16.mxu0 0
    %2955 = vmatpush1.bf16.msra.mxu0 %v2938
    %2956 = vmatprep.subr.bf16.mxu0 0
    %2957 = vmatpush2.bf16.msra.mxu0 0
    %2958 = vmatprep.subr.bf16.mxu0 0
    %2959 = vmatpush2.bf16.msra.mxu0 0
    %2960 = vmatprep.subr.bf16.mxu0 0
    %2961 = vmatpush2.bf16.msra.mxu0 0
    %2962 = vmatprep.subr.bf16.mxu0 0
    %2963 = vmatpush2.bf16.msra.mxu0 0
    %2964 = vmatprep.subr.bf16.mxu0 0
    %2965 = vmatpush2.bf16.msra.mxu0 0
    %2966 = vmatprep.subr.bf16.mxu0 0
    %2967 = vmatpush2.bf16.msra.mxu0 0
    %2968 = vmatprep.subr.bf16.mxu0 0
    %2969 = vmatpush2.bf16.msra.mxu0 0
    %2970 = vmatprep.subr.bf16.mxu0 0
    %2971 = vmatpush2.bf16.msra.mxu0 0
    %2972 = vmatprep.mubr.bf16.mxu0 0
    %2973 = vmatmul.mubr.bf16.gmra.mxu0 %v250
    %v2974 = vpop.f32.mrf.mxu0
    %v2975 = vadd.f32 0.0, %v2974
    %v2976 = vpop.f32.mrf.mxu0
    %v2977 = vpop.f32.mrf.mxu0
    %v2978 = vadd.f32 0.0, %v2977
    %v2979 = vpop.f32.mrf.mxu0
    %2980 = vdwg.mxu0
    %v2981 = vld [vmem:[#allocation4] sm:$0xff]
    %v2982 = vld [vmem:[#allocation4 + $0x8] sm:$0xff]
    %v2983 = vadd.f32 %v2981, %v2975
    %v2984 = vadd.f32 %v2982, %v2978
    %vm2985 = vcmp.ge.f32.partialorder %v2983, 1.0
    %vm2986 = vcmp.ge.f32.partialorder %v2984, 1.0
    %v2987 = vsel %vm2985, 0.0, %v2983
    %v2988 = vsel %vm2986, 0.0, %v2984
    %2989 = vst [vmem:[#allocation4] sm:$0xff] %v2987
    %2990 = vst [vmem:[#allocation4 + $0x8] sm:$0xff] %v2988
    %v2991 = vsel %vm2985, 1.0, 0.0
    %v2992 = vsel %vm2986, 1.0, 0.0
    %v2993 = vld [vmem:[#allocation8] sm:$0xff]
    %v2994 = vld [vmem:[#allocation8 + $0x8] sm:$0xff]
    %v2995 = vadd.f32 %v2993, %v2991
    %v2996 = vadd.f32 %v2994, %v2992
    %2997 = vst [vmem:[#allocation8] sm:$0xff] %v2995
    %2998 = vst [vmem:[#allocation8 + $0x8] sm:$0xff] %v2996
    %s2999 = scalar_lea.vmem [#allocation5], 104
    %v3000 = vld [vmem:[%s2999] sm:$0xff]
    %3001 = vmatprep.subr.mxu0 0.0
    %3002 = vmatpush1.msra.mxu0 0.0
    %3003 = vmatprep.subr.mxu0 0.0
    %3004 = vmatpush1.msra.mxu0 0.0
    %3005 = vmatprep.subr.mxu0 0.0
    %3006 = vmatpush1.msra.mxu0 0.0
    %3007 = vmatprep.subr.mxu0 0.0
    %3008 = vmatpush1.msra.mxu0 0.0
    %3009 = vmatprep.subr.mxu0 0.0
    %3010 = vmatpush1.msra.mxu0 0.0
    %3011 = vmatprep.subr.mxu0 0.0
    %3012 = vmatpush1.msra.mxu0 0.0
    %3013 = vmatprep.subr.mxu0 0.0
    %3014 = vmatpush1.msra.mxu0 0.0
    %3015 = vmatprep.subr.mxu0 0.0
    %3016 = vmatpush1.msra.mxu0 0.0
    %3017 = vmatprep.subr.mxu0 0.0
    %3018 = vmatpush1.msra.mxu0 0.0
    %3019 = vmatprep.subr.mxu0 0.0
    %3020 = vmatpush1.msra.mxu0 0.0
    %3021 = vmatprep.subr.mxu0 0.0
    %3022 = vmatpush1.msra.mxu0 0.0
    %3023 = vmatprep.subr.mxu0 0.0
    %3024 = vmatpush1.msra.mxu0 0.0
    %3025 = vmatprep.subr.mxu0 0.0
    %3026 = vmatpush1.msra.mxu0 0.0
    %3027 = vmatprep.subr.mxu0 0.0
    %3028 = vmatpush1.msra.mxu0 0.0
    %3029 = vmatprep.subr.mxu0 0.0
    %3030 = vmatpush1.msra.mxu0 0.0
    %3031 = vmatprep.subr.mxu0 0.0
    %3032 = vmatpush1.msra.mxu0 %v3000
    %3033 = vmatprep.subr.mxu0 0.0
    %3034 = vmatpush2.msra.mxu0 0.0
    %3035 = vmatprep.subr.mxu0 0.0
    %3036 = vmatpush2.msra.mxu0 0.0
    %3037 = vmatprep.subr.mxu0 0.0
    %3038 = vmatpush2.msra.mxu0 0.0
    %3039 = vmatprep.subr.mxu0 0.0
    %3040 = vmatpush2.msra.mxu0 0.0
    %3041 = vmatprep.subr.mxu0 0.0
    %3042 = vmatpush2.msra.mxu0 0.0
    %3043 = vmatprep.subr.mxu0 0.0
    %3044 = vmatpush2.msra.mxu0 0.0
    %3045 = vmatprep.subr.mxu0 0.0
    %3046 = vmatpush2.msra.mxu0 0.0
    %3047 = vmatprep.subr.mxu0 0.0
    %3048 = vmatpush2.msra.mxu0 0.0
    %3049 = vmatprep.subr.mxu0 0.0
    %3050 = vmatpush2.msra.mxu0 0.0
    %3051 = vmatprep.subr.mxu0 0.0
    %3052 = vmatpush2.msra.mxu0 0.0
    %3053 = vmatprep.subr.mxu0 0.0
    %3054 = vmatpush2.msra.mxu0 0.0
    %3055 = vmatprep.subr.mxu0 0.0
    %3056 = vmatpush2.msra.mxu0 0.0
    %3057 = vmatprep.subr.mxu0 0.0
    %3058 = vmatpush2.msra.mxu0 0.0
    %3059 = vmatprep.subr.mxu0 0.0
    %3060 = vmatpush2.msra.mxu0 0.0
    %3061 = vmatprep.subr.mxu0 0.0
    %3062 = vmatpush2.msra.mxu0 0.0
    %3063 = vmatprep.subr.mxu0 0.0
    %3064 = vmatpush2.msra.mxu0 0.0
    %3065 = vmatprep.mubr.f32.mxu0 0.0
    %3066 = vmatmul.mubr.f32.gmra.mxu0 %v58
    %v3067 = vpop.f32.mrf.mxu0
    %v3068 = vadd.f32 0.0, %v3067
    %v3069 = vpop.f32.mrf.mxu0
    %3070 = vmatprep.mubr.f32.mxu0 0.0
    %3071 = vmatmul.mubr.f32.gmra.mxu0 %v61
    %v3072 = vpop.f32.mrf.mxu0
    %v3073 = vadd.f32 0.0, %v3072
    %v3074 = vpop.f32.mrf.mxu0
    %3075 = vdwg.mxu0
    %v3076 = vld [vmem:[#allocation2] sm:$0xff]
    %v3077 = vld [vmem:[#allocation2 + $0x8] sm:$0xff]
    %v3078 = vadd.f32 %v3076, %v3068
    %v3079 = vadd.f32 %v3077, %v3073
    %vm3080 = vcmp.ge.f32.partialorder %v3078, 1.0
    %vm3081 = vcmp.ge.f32.partialorder %v3079, 1.0
    %v3082 = vsel %vm3080, 0.0, %v3078
    %v3083 = vsel %vm3081, 0.0, %v3079
    %3084 = vst [vmem:[#allocation2] sm:$0xff] %v3082
    %3085 = vst [vmem:[#allocation2 + $0x8] sm:$0xff] %v3083
    %v3086 = vsel %vm3080, 1.0, 0.0
    %v3087 = vsel %vm3081, 1.0, 0.0
    %v3088 = vpack.c.bf16 %v3087, %v3086
    %3089 = vmatprep.subr.bf16.mxu0 0
    %3090 = vmatpush1.bf16.msra.mxu0 0
    %3091 = vmatprep.subr.bf16.mxu0 0
    %3092 = vmatpush1.bf16.msra.mxu0 0
    %3093 = vmatprep.subr.bf16.mxu0 0
    %3094 = vmatpush1.bf16.msra.mxu0 0
    %3095 = vmatprep.subr.bf16.mxu0 0
    %3096 = vmatpush1.bf16.msra.mxu0 0
    %3097 = vmatprep.subr.bf16.mxu0 0
    %3098 = vmatpush1.bf16.msra.mxu0 0
    %3099 = vmatprep.subr.bf16.mxu0 0
    %3100 = vmatpush1.bf16.msra.mxu0 0
    %3101 = vmatprep.subr.bf16.mxu0 0
    %3102 = vmatpush1.bf16.msra.mxu0 0
    %3103 = vmatprep.subr.bf16.mxu0 0
    %3104 = vmatpush1.bf16.msra.mxu0 %v3088
    %3105 = vmatprep.subr.bf16.mxu0 0
    %3106 = vmatpush2.bf16.msra.mxu0 0
    %3107 = vmatprep.subr.bf16.mxu0 0
    %3108 = vmatpush2.bf16.msra.mxu0 0
    %3109 = vmatprep.subr.bf16.mxu0 0
    %3110 = vmatpush2.bf16.msra.mxu0 0
    %3111 = vmatprep.subr.bf16.mxu0 0
    %3112 = vmatpush2.bf16.msra.mxu0 0
    %3113 = vmatprep.subr.bf16.mxu0 0
    %3114 = vmatpush2.bf16.msra.mxu0 0
    %3115 = vmatprep.subr.bf16.mxu0 0
    %3116 = vmatpush2.bf16.msra.mxu0 0
    %3117 = vmatprep.subr.bf16.mxu0 0
    %3118 = vmatpush2.bf16.msra.mxu0 0
    %3119 = vmatprep.subr.bf16.mxu0 0
    %3120 = vmatpush2.bf16.msra.mxu0 0
    %3121 = vmatprep.mubr.bf16.mxu0 0
    %3122 = vmatmul.mubr.bf16.gmra.mxu0 %v163
    %v3123 = vpop.f32.mrf.mxu0
    %v3124 = vadd.f32 0.0, %v3123
    %v3125 = vpop.f32.mrf.mxu0
    %v3126 = vpop.f32.mrf.mxu0
    %v3127 = vadd.f32 0.0, %v3126
    %v3128 = vpop.f32.mrf.mxu0
    %3129 = vmatprep.mubr.bf16.mxu0 0
    %3130 = vmatmul.mubr.bf16.gmra.mxu0 %v166
    %v3131 = vpop.f32.mrf.mxu0
    %v3132 = vadd.f32 0.0, %v3131
    %v3133 = vpop.f32.mrf.mxu0
    %v3134 = vpop.f32.mrf.mxu0
    %v3135 = vadd.f32 0.0, %v3134
    %v3136 = vpop.f32.mrf.mxu0
    %3137 = vdwg.mxu0
    %v3138 = vld [vmem:[#allocation3] sm:$0xff]
    %v3139 = vld [vmem:[#allocation3 + $0x8] sm:$0xff]
    %v3140 = vld [vmem:[#allocation3 + $0x10] sm:$0xff]
    %v3141 = vld [vmem:[#allocation3 + $0x18] sm:$0xff]
    %v3142 = vadd.f32 %v3138, %v3124
    %v3143 = vadd.f32 %v3139, %v3127
    %v3144 = vadd.f32 %v3140, %v3132
    %v3145 = vadd.f32 %v3141, %v3135
    %vm3146 = vcmp.ge.f32.partialorder %v3142, 1.0
    %vm3147 = vcmp.ge.f32.partialorder %v3143, 1.0
    %vm3148 = vcmp.ge.f32.partialorder %v3144, 1.0
    %vm3149 = vcmp.ge.f32.partialorder %v3145, 1.0
    %v3150 = vsel %vm3146, 0.0, %v3142
    %v3151 = vsel %vm3147, 0.0, %v3143
    %v3152 = vsel %vm3148, 0.0, %v3144
    %v3153 = vsel %vm3149, 0.0, %v3145
    %3154 = vst [vmem:[#allocation3] sm:$0xff] %v3150
    %3155 = vst [vmem:[#allocation3 + $0x8] sm:$0xff] %v3151
    %3156 = vst [vmem:[#allocation3 + $0x10] sm:$0xff] %v3152
    %3157 = vst [vmem:[#allocation3 + $0x18] sm:$0xff] %v3153
    %v3158 = vsel %vm3146, 1.0, 0.0
    %v3159 = vsel %vm3147, 1.0, 0.0
    %v3160 = vsel %vm3148, 1.0, 0.0
    %v3161 = vsel %vm3149, 1.0, 0.0
    %v3162 = vpack.c.bf16 %v3159, %v3158
    %v3163 = vpack.c.bf16 %v3161, %v3160
    %3164 = vmatprep.subr.bf16.mxu0 0
    %3165 = vmatpush1.bf16.msra.mxu0 0
    %3166 = vmatprep.subr.bf16.mxu0 0
    %3167 = vmatpush1.bf16.msra.mxu0 0
    %3168 = vmatprep.subr.bf16.mxu0 0
    %3169 = vmatpush1.bf16.msra.mxu0 0
    %3170 = vmatprep.subr.bf16.mxu0 0
    %3171 = vmatpush1.bf16.msra.mxu0 0
    %3172 = vmatprep.subr.bf16.mxu0 0
    %3173 = vmatpush1.bf16.msra.mxu0 0
    %3174 = vmatprep.subr.bf16.mxu0 0
    %3175 = vmatpush1.bf16.msra.mxu0 0
    %3176 = vmatprep.subr.bf16.mxu0 0
    %3177 = vmatpush1.bf16.msra.mxu0 %v3163
    %3178 = vmatprep.subr.bf16.mxu0 0
    %3179 = vmatpush1.bf16.msra.mxu0 %v3162
    %3180 = vmatprep.subr.bf16.mxu0 0
    %3181 = vmatpush2.bf16.msra.mxu0 0
    %3182 = vmatprep.subr.bf16.mxu0 0
    %3183 = vmatpush2.bf16.msra.mxu0 0
    %3184 = vmatprep.subr.bf16.mxu0 0
    %3185 = vmatpush2.bf16.msra.mxu0 0
    %3186 = vmatprep.subr.bf16.mxu0 0
    %3187 = vmatpush2.bf16.msra.mxu0 0
    %3188 = vmatprep.subr.bf16.mxu0 0
    %3189 = vmatpush2.bf16.msra.mxu0 0
    %3190 = vmatprep.subr.bf16.mxu0 0
    %3191 = vmatpush2.bf16.msra.mxu0 0
    %3192 = vmatprep.subr.bf16.mxu0 0
    %3193 = vmatpush2.bf16.msra.mxu0 0
    %3194 = vmatprep.subr.bf16.mxu0 0
    %3195 = vmatpush2.bf16.msra.mxu0 0
    %3196 = vmatprep.mubr.bf16.mxu0 0
    %3197 = vmatmul.mubr.bf16.gmra.mxu0 %v250
    %v3198 = vpop.f32.mrf.mxu0
    %v3199 = vadd.f32 0.0, %v3198
    %v3200 = vpop.f32.mrf.mxu0
    %v3201 = vpop.f32.mrf.mxu0
    %v3202 = vadd.f32 0.0, %v3201
    %v3203 = vpop.f32.mrf.mxu0
    %3204 = vdwg.mxu0
    %v3205 = vld [vmem:[#allocation4] sm:$0xff]
    %v3206 = vld [vmem:[#allocation4 + $0x8] sm:$0xff]
    %v3207 = vadd.f32 %v3205, %v3199
    %v3208 = vadd.f32 %v3206, %v3202
    %vm3209 = vcmp.ge.f32.partialorder %v3207, 1.0
    %vm3210 = vcmp.ge.f32.partialorder %v3208, 1.0
    %v3211 = vsel %vm3209, 0.0, %v3207
    %v3212 = vsel %vm3210, 0.0, %v3208
    %3213 = vst [vmem:[#allocation4] sm:$0xff] %v3211
    %3214 = vst [vmem:[#allocation4 + $0x8] sm:$0xff] %v3212
    %v3215 = vsel %vm3209, 1.0, 0.0
    %v3216 = vsel %vm3210, 1.0, 0.0
    %v3217 = vld [vmem:[#allocation8] sm:$0xff]
    %v3218 = vld [vmem:[#allocation8 + $0x8] sm:$0xff]
    %v3219 = vadd.f32 %v3217, %v3215
    %v3220 = vadd.f32 %v3218, %v3216
    %3221 = vst [vmem:[#allocation8] sm:$0xff] %v3219
    %3222 = vst [vmem:[#allocation8 + $0x8] sm:$0xff] %v3220
    %s3223 = scalar_lea.vmem [#allocation5], 112
    %v3224 = vld [vmem:[%s3223] sm:$0xff]
    %3225 = vmatprep.subr.mxu0 0.0
    %3226 = vmatpush1.msra.mxu0 0.0
    %3227 = vmatprep.subr.mxu0 0.0
    %3228 = vmatpush1.msra.mxu0 0.0
    %3229 = vmatprep.subr.mxu0 0.0
    %3230 = vmatpush1.msra.mxu0 0.0
    %3231 = vmatprep.subr.mxu0 0.0
    %3232 = vmatpush1.msra.mxu0 0.0
    %3233 = vmatprep.subr.mxu0 0.0
    %3234 = vmatpush1.msra.mxu0 0.0
    %3235 = vmatprep.subr.mxu0 0.0
    %3236 = vmatpush1.msra.mxu0 0.0
    %3237 = vmatprep.subr.mxu0 0.0
    %3238 = vmatpush1.msra.mxu0 0.0
    %3239 = vmatprep.subr.mxu0 0.0
    %3240 = vmatpush1.msra.mxu0 0.0
    %3241 = vmatprep.subr.mxu0 0.0
    %3242 = vmatpush1.msra.mxu0 0.0
    %3243 = vmatprep.subr.mxu0 0.0
    %3244 = vmatpush1.msra.mxu0 0.0
    %3245 = vmatprep.subr.mxu0 0.0
    %3246 = vmatpush1.msra.mxu0 0.0
    %3247 = vmatprep.subr.mxu0 0.0
    %3248 = vmatpush1.msra.mxu0 0.0
    %3249 = vmatprep.subr.mxu0 0.0
    %3250 = vmatpush1.msra.mxu0 0.0
    %3251 = vmatprep.subr.mxu0 0.0
    %3252 = vmatpush1.msra.mxu0 0.0
    %3253 = vmatprep.subr.mxu0 0.0
    %3254 = vmatpush1.msra.mxu0 0.0
    %3255 = vmatprep.subr.mxu0 0.0
    %3256 = vmatpush1.msra.mxu0 %v3224
    %3257 = vmatprep.subr.mxu0 0.0
    %3258 = vmatpush2.msra.mxu0 0.0
    %3259 = vmatprep.subr.mxu0 0.0
    %3260 = vmatpush2.msra.mxu0 0.0
    %3261 = vmatprep.subr.mxu0 0.0
    %3262 = vmatpush2.msra.mxu0 0.0
    %3263 = vmatprep.subr.mxu0 0.0
    %3264 = vmatpush2.msra.mxu0 0.0
    %3265 = vmatprep.subr.mxu0 0.0
    %3266 = vmatpush2.msra.mxu0 0.0
    %3267 = vmatprep.subr.mxu0 0.0
    %3268 = vmatpush2.msra.mxu0 0.0
    %3269 = vmatprep.subr.mxu0 0.0
    %3270 = vmatpush2.msra.mxu0 0.0
    %3271 = vmatprep.subr.mxu0 0.0
    %3272 = vmatpush2.msra.mxu0 0.0
    %3273 = vmatprep.subr.mxu0 0.0
    %3274 = vmatpush2.msra.mxu0 0.0
    %3275 = vmatprep.subr.mxu0 0.0
    %3276 = vmatpush2.msra.mxu0 0.0
    %3277 = vmatprep.subr.mxu0 0.0
    %3278 = vmatpush2.msra.mxu0 0.0
    %3279 = vmatprep.subr.mxu0 0.0
    %3280 = vmatpush2.msra.mxu0 0.0
    %3281 = vmatprep.subr.mxu0 0.0
    %3282 = vmatpush2.msra.mxu0 0.0
    %3283 = vmatprep.subr.mxu0 0.0
    %3284 = vmatpush2.msra.mxu0 0.0
    %3285 = vmatprep.subr.mxu0 0.0
    %3286 = vmatpush2.msra.mxu0 0.0
    %3287 = vmatprep.subr.mxu0 0.0
    %3288 = vmatpush2.msra.mxu0 0.0
    %3289 = vmatprep.mubr.f32.mxu0 0.0
    %3290 = vmatmul.mubr.f32.gmra.mxu0 %v58
    %v3291 = vpop.f32.mrf.mxu0
    %v3292 = vadd.f32 0.0, %v3291
    %v3293 = vpop.f32.mrf.mxu0
    %3294 = vmatprep.mubr.f32.mxu0 0.0
    %3295 = vmatmul.mubr.f32.gmra.mxu0 %v61
    %v3296 = vpop.f32.mrf.mxu0
    %v3297 = vadd.f32 0.0, %v3296
    %v3298 = vpop.f32.mrf.mxu0
    %3299 = vdwg.mxu0
    %v3300 = vld [vmem:[#allocation2] sm:$0xff]
    %v3301 = vld [vmem:[#allocation2 + $0x8] sm:$0xff]
    %v3302 = vadd.f32 %v3300, %v3292
    %v3303 = vadd.f32 %v3301, %v3297
    %vm3304 = vcmp.ge.f32.partialorder %v3302, 1.0
    %vm3305 = vcmp.ge.f32.partialorder %v3303, 1.0
    %v3306 = vsel %vm3304, 0.0, %v3302
    %v3307 = vsel %vm3305, 0.0, %v3303
    %3308 = vst [vmem:[#allocation2] sm:$0xff] %v3306
    %3309 = vst [vmem:[#allocation2 + $0x8] sm:$0xff] %v3307
    %v3310 = vsel %vm3304, 1.0, 0.0
    %v3311 = vsel %vm3305, 1.0, 0.0
    %v3312 = vpack.c.bf16 %v3311, %v3310
    %3313 = vmatprep.subr.bf16.mxu0 0
    %3314 = vmatpush1.bf16.msra.mxu0 0
    %3315 = vmatprep.subr.bf16.mxu0 0
    %3316 = vmatpush1.bf16.msra.mxu0 0
    %3317 = vmatprep.subr.bf16.mxu0 0
    %3318 = vmatpush1.bf16.msra.mxu0 0
    %3319 = vmatprep.subr.bf16.mxu0 0
    %3320 = vmatpush1.bf16.msra.mxu0 0
    %3321 = vmatprep.subr.bf16.mxu0 0
    %3322 = vmatpush1.bf16.msra.mxu0 0
    %3323 = vmatprep.subr.bf16.mxu0 0
    %3324 = vmatpush1.bf16.msra.mxu0 0
    %3325 = vmatprep.subr.bf16.mxu0 0
    %3326 = vmatpush1.bf16.msra.mxu0 0
    %3327 = vmatprep.subr.bf16.mxu0 0
    %3328 = vmatpush1.bf16.msra.mxu0 %v3312
    %3329 = vmatprep.subr.bf16.mxu0 0
    %3330 = vmatpush2.bf16.msra.mxu0 0
    %3331 = vmatprep.subr.bf16.mxu0 0
    %3332 = vmatpush2.bf16.msra.mxu0 0
    %3333 = vmatprep.subr.bf16.mxu0 0
    %3334 = vmatpush2.bf16.msra.mxu0 0
    %3335 = vmatprep.subr.bf16.mxu0 0
    %3336 = vmatpush2.bf16.msra.mxu0 0
    %3337 = vmatprep.subr.bf16.mxu0 0
    %3338 = vmatpush2.bf16.msra.mxu0 0
    %3339 = vmatprep.subr.bf16.mxu0 0
    %3340 = vmatpush2.bf16.msra.mxu0 0
    %3341 = vmatprep.subr.bf16.mxu0 0
    %3342 = vmatpush2.bf16.msra.mxu0 0
    %3343 = vmatprep.subr.bf16.mxu0 0
    %3344 = vmatpush2.bf16.msra.mxu0 0
    %3345 = vmatprep.mubr.bf16.mxu0 0
    %3346 = vmatmul.mubr.bf16.gmra.mxu0 %v163
    %v3347 = vpop.f32.mrf.mxu0
    %v3348 = vadd.f32 0.0, %v3347
    %v3349 = vpop.f32.mrf.mxu0
    %v3350 = vpop.f32.mrf.mxu0
    %v3351 = vadd.f32 0.0, %v3350
    %v3352 = vpop.f32.mrf.mxu0
    %3353 = vmatprep.mubr.bf16.mxu0 0
    %3354 = vmatmul.mubr.bf16.gmra.mxu0 %v166
    %v3355 = vpop.f32.mrf.mxu0
    %v3356 = vadd.f32 0.0, %v3355
    %v3357 = vpop.f32.mrf.mxu0
    %v3358 = vpop.f32.mrf.mxu0
    %v3359 = vadd.f32 0.0, %v3358
    %v3360 = vpop.f32.mrf.mxu0
    %3361 = vdwg.mxu0
    %v3362 = vld [vmem:[#allocation3] sm:$0xff]
    %v3363 = vld [vmem:[#allocation3 + $0x8] sm:$0xff]
    %v3364 = vld [vmem:[#allocation3 + $0x10] sm:$0xff]
    %v3365 = vld [vmem:[#allocation3 + $0x18] sm:$0xff]
    %v3366 = vadd.f32 %v3362, %v3348
    %v3367 = vadd.f32 %v3363, %v3351
    %v3368 = vadd.f32 %v3364, %v3356
    %v3369 = vadd.f32 %v3365, %v3359
    %vm3370 = vcmp.ge.f32.partialorder %v3366, 1.0
    %vm3371 = vcmp.ge.f32.partialorder %v3367, 1.0
    %vm3372 = vcmp.ge.f32.partialorder %v3368, 1.0
    %vm3373 = vcmp.ge.f32.partialorder %v3369, 1.0
    %v3374 = vsel %vm3370, 0.0, %v3366
    %v3375 = vsel %vm3371, 0.0, %v3367
    %v3376 = vsel %vm3372, 0.0, %v3368
    %v3377 = vsel %vm3373, 0.0, %v3369
    %3378 = vst [vmem:[#allocation3] sm:$0xff] %v3374
    %3379 = vst [vmem:[#allocation3 + $0x8] sm:$0xff] %v3375
    %3380 = vst [vmem:[#allocation3 + $0x10] sm:$0xff] %v3376
    %3381 = vst [vmem:[#allocation3 + $0x18] sm:$0xff] %v3377
    %v3382 = vsel %vm3370, 1.0, 0.0
    %v3383 = vsel %vm3371, 1.0, 0.0
    %v3384 = vsel %vm3372, 1.0, 0.0
    %v3385 = vsel %vm3373, 1.0, 0.0
    %v3386 = vpack.c.bf16 %v3383, %v3382
    %v3387 = vpack.c.bf16 %v3385, %v3384
    %3388 = vmatprep.subr.bf16.mxu0 0
    %3389 = vmatpush1.bf16.msra.mxu0 0
    %3390 = vmatprep.subr.bf16.mxu0 0
    %3391 = vmatpush1.bf16.msra.mxu0 0
    %3392 = vmatprep.subr.bf16.mxu0 0
    %3393 = vmatpush1.bf16.msra.mxu0 0
    %3394 = vmatprep.subr.bf16.mxu0 0
    %3395 = vmatpush1.bf16.msra.mxu0 0
    %3396 = vmatprep.subr.bf16.mxu0 0
    %3397 = vmatpush1.bf16.msra.mxu0 0
    %3398 = vmatprep.subr.bf16.mxu0 0
    %3399 = vmatpush1.bf16.msra.mxu0 0
    %3400 = vmatprep.subr.bf16.mxu0 0
    %3401 = vmatpush1.bf16.msra.mxu0 %v3387
    %3402 = vmatprep.subr.bf16.mxu0 0
    %3403 = vmatpush1.bf16.msra.mxu0 %v3386
    %3404 = vmatprep.subr.bf16.mxu0 0
    %3405 = vmatpush2.bf16.msra.mxu0 0
    %3406 = vmatprep.subr.bf16.mxu0 0
    %3407 = vmatpush2.bf16.msra.mxu0 0
    %3408 = vmatprep.subr.bf16.mxu0 0
    %3409 = vmatpush2.bf16.msra.mxu0 0
    %3410 = vmatprep.subr.bf16.mxu0 0
    %3411 = vmatpush2.bf16.msra.mxu0 0
    %3412 = vmatprep.subr.bf16.mxu0 0
    %3413 = vmatpush2.bf16.msra.mxu0 0
    %3414 = vmatprep.subr.bf16.mxu0 0
    %3415 = vmatpush2.bf16.msra.mxu0 0
    %3416 = vmatprep.subr.bf16.mxu0 0
    %3417 = vmatpush2.bf16.msra.mxu0 0
    %3418 = vmatprep.subr.bf16.mxu0 0
    %3419 = vmatpush2.bf16.msra.mxu0 0
    %3420 = vmatprep.mubr.bf16.mxu0 0
    %3421 = vmatmul.mubr.bf16.gmra.mxu0 %v250
    %v3422 = vpop.f32.mrf.mxu0
    %v3423 = vadd.f32 0.0, %v3422
    %v3424 = vpop.f32.mrf.mxu0
    %v3425 = vpop.f32.mrf.mxu0
    %v3426 = vadd.f32 0.0, %v3425
    %v3427 = vpop.f32.mrf.mxu0
    %3428 = vdwg.mxu0
    %v3429 = vld [vmem:[#allocation4] sm:$0xff]
    %v3430 = vld [vmem:[#allocation4 + $0x8] sm:$0xff]
    %v3431 = vadd.f32 %v3429, %v3423
    %v3432 = vadd.f32 %v3430, %v3426
    %vm3433 = vcmp.ge.f32.partialorder %v3431, 1.0
    %vm3434 = vcmp.ge.f32.partialorder %v3432, 1.0
    %v3435 = vsel %vm3433, 0.0, %v3431
    %v3436 = vsel %vm3434, 0.0, %v3432
    %3437 = vst [vmem:[#allocation4] sm:$0xff] %v3435
    %3438 = vst [vmem:[#allocation4 + $0x8] sm:$0xff] %v3436
    %v3439 = vsel %vm3433, 1.0, 0.0
    %v3440 = vsel %vm3434, 1.0, 0.0
    %v3441 = vld [vmem:[#allocation8] sm:$0xff]
    %v3442 = vld [vmem:[#allocation8 + $0x8] sm:$0xff]
    %v3443 = vadd.f32 %v3441, %v3439
    %v3444 = vadd.f32 %v3442, %v3440
    %3445 = vst [vmem:[#allocation8] sm:$0xff] %v3443
    %3446 = vst [vmem:[#allocation8 + $0x8] sm:$0xff] %v3444
    %s3447 = scalar_lea.vmem [#allocation5], 120
    %v3448 = vld [vmem:[%s3447] sm:$0xff]
    %3449 = vmatprep.subr.mxu0 0.0
    %3450 = vmatpush1.msra.mxu0 0.0
    %3451 = vmatprep.subr.mxu0 0.0
    %3452 = vmatpush1.msra.mxu0 0.0
    %3453 = vmatprep.subr.mxu0 0.0
    %3454 = vmatpush1.msra.mxu0 0.0
    %3455 = vmatprep.subr.mxu0 0.0
    %3456 = vmatpush1.msra.mxu0 0.0
    %3457 = vmatprep.subr.mxu0 0.0
    %3458 = vmatpush1.msra.mxu0 0.0
    %3459 = vmatprep.subr.mxu0 0.0
    %3460 = vmatpush1.msra.mxu0 0.0
    %3461 = vmatprep.subr.mxu0 0.0
    %3462 = vmatpush1.msra.mxu0 0.0
    %3463 = vmatprep.subr.mxu0 0.0
    %3464 = vmatpush1.msra.mxu0 0.0
    %3465 = vmatprep.subr.mxu0 0.0
    %3466 = vmatpush1.msra.mxu0 0.0
    %3467 = vmatprep.subr.mxu0 0.0
    %3468 = vmatpush1.msra.mxu0 0.0
    %3469 = vmatprep.subr.mxu0 0.0
    %3470 = vmatpush1.msra.mxu0 0.0
    %3471 = vmatprep.subr.mxu0 0.0
    %3472 = vmatpush1.msra.mxu0 0.0
    %3473 = vmatprep.subr.mxu0 0.0
    %3474 = vmatpush1.msra.mxu0 0.0
    %3475 = vmatprep.subr.mxu0 0.0
    %3476 = vmatpush1.msra.mxu0 0.0
    %3477 = vmatprep.subr.mxu0 0.0
    %3478 = vmatpush1.msra.mxu0 0.0
    %3479 = vmatprep.subr.mxu0 0.0
    %3480 = vmatpush1.msra.mxu0 %v3448
    %3481 = vmatprep.subr.mxu0 0.0
    %3482 = vmatpush2.msra.mxu0 0.0
    %3483 = vmatprep.subr.mxu0 0.0
    %3484 = vmatpush2.msra.mxu0 0.0
    %3485 = vmatprep.subr.mxu0 0.0
    %3486 = vmatpush2.msra.mxu0 0.0
    %3487 = vmatprep.subr.mxu0 0.0
    %3488 = vmatpush2.msra.mxu0 0.0
    %3489 = vmatprep.subr.mxu0 0.0
    %3490 = vmatpush2.msra.mxu0 0.0
    %3491 = vmatprep.subr.mxu0 0.0
    %3492 = vmatpush2.msra.mxu0 0.0
    %3493 = vmatprep.subr.mxu0 0.0
    %3494 = vmatpush2.msra.mxu0 0.0
    %3495 = vmatprep.subr.mxu0 0.0
    %3496 = vmatpush2.msra.mxu0 0.0
    %3497 = vmatprep.subr.mxu0 0.0
    %3498 = vmatpush2.msra.mxu0 0.0
    %3499 = vmatprep.subr.mxu0 0.0
    %3500 = vmatpush2.msra.mxu0 0.0
    %3501 = vmatprep.subr.mxu0 0.0
    %3502 = vmatpush2.msra.mxu0 0.0
    %3503 = vmatprep.subr.mxu0 0.0
    %3504 = vmatpush2.msra.mxu0 0.0
    %3505 = vmatprep.subr.mxu0 0.0
    %3506 = vmatpush2.msra.mxu0 0.0
    %3507 = vmatprep.subr.mxu0 0.0
    %3508 = vmatpush2.msra.mxu0 0.0
    %3509 = vmatprep.subr.mxu0 0.0
    %3510 = vmatpush2.msra.mxu0 0.0
    %3511 = vmatprep.subr.mxu0 0.0
    %3512 = vmatpush2.msra.mxu0 0.0
    %3513 = vmatprep.mubr.f32.mxu0 0.0
    %3514 = vmatmul.mubr.f32.gmra.mxu0 %v58
    %v3515 = vpop.f32.mrf.mxu0
    %v3516 = vadd.f32 0.0, %v3515
    %v3517 = vpop.f32.mrf.mxu0
    %3518 = vmatprep.mubr.f32.mxu0 0.0
    %3519 = vmatmul.mubr.f32.gmra.mxu0 %v61
    %v3520 = vpop.f32.mrf.mxu0
    %v3521 = vadd.f32 0.0, %v3520
    %v3522 = vpop.f32.mrf.mxu0
    %3523 = vdwg.mxu0
    %v3524 = vld [vmem:[#allocation2] sm:$0xff]
    %v3525 = vld [vmem:[#allocation2 + $0x8] sm:$0xff]
    %v3526 = vadd.f32 %v3524, %v3516
    %v3527 = vadd.f32 %v3525, %v3521
    %vm3528 = vcmp.ge.f32.partialorder %v3526, 1.0
    %vm3529 = vcmp.ge.f32.partialorder %v3527, 1.0
    %v3530 = vsel %vm3528, 0.0, %v3526
    %v3531 = vsel %vm3529, 0.0, %v3527
    %3532 = vst [vmem:[#allocation2] sm:$0xff] %v3530
    %3533 = vst [vmem:[#allocation2 + $0x8] sm:$0xff] %v3531
    %v3534 = vsel %vm3528, 1.0, 0.0
    %v3535 = vsel %vm3529, 1.0, 0.0
    %v3536 = vpack.c.bf16 %v3535, %v3534
    %3537 = vmatprep.subr.bf16.mxu0 0
    %3538 = vmatpush1.bf16.msra.mxu0 0
    %3539 = vmatprep.subr.bf16.mxu0 0
    %3540 = vmatpush1.bf16.msra.mxu0 0
    %3541 = vmatprep.subr.bf16.mxu0 0
    %3542 = vmatpush1.bf16.msra.mxu0 0
    %3543 = vmatprep.subr.bf16.mxu0 0
    %3544 = vmatpush1.bf16.msra.mxu0 0
    %3545 = vmatprep.subr.bf16.mxu0 0
    %3546 = vmatpush1.bf16.msra.mxu0 0
    %3547 = vmatprep.subr.bf16.mxu0 0
    %3548 = vmatpush1.bf16.msra.mxu0 0
    %3549 = vmatprep.subr.bf16.mxu0 0
    %3550 = vmatpush1.bf16.msra.mxu0 0
    %3551 = vmatprep.subr.bf16.mxu0 0
    %3552 = vmatpush1.bf16.msra.mxu0 %v3536
    %3553 = vmatprep.subr.bf16.mxu0 0
    %3554 = vmatpush2.bf16.msra.mxu0 0
    %3555 = vmatprep.subr.bf16.mxu0 0
    %3556 = vmatpush2.bf16.msra.mxu0 0
    %3557 = vmatprep.subr.bf16.mxu0 0
    %3558 = vmatpush2.bf16.msra.mxu0 0
    %3559 = vmatprep.subr.bf16.mxu0 0
    %3560 = vmatpush2.bf16.msra.mxu0 0
    %3561 = vmatprep.subr.bf16.mxu0 0
    %3562 = vmatpush2.bf16.msra.mxu0 0
    %3563 = vmatprep.subr.bf16.mxu0 0
    %3564 = vmatpush2.bf16.msra.mxu0 0
    %3565 = vmatprep.subr.bf16.mxu0 0
    %3566 = vmatpush2.bf16.msra.mxu0 0
    %3567 = vmatprep.subr.bf16.mxu0 0
    %3568 = vmatpush2.bf16.msra.mxu0 0
    %3569 = vmatprep.mubr.bf16.mxu0 0
    %3570 = vmatmul.mubr.bf16.gmra.mxu0 %v163
    %v3571 = vpop.f32.mrf.mxu0
    %v3572 = vadd.f32 0.0, %v3571
    %v3573 = vpop.f32.mrf.mxu0
    %v3574 = vpop.f32.mrf.mxu0
    %v3575 = vadd.f32 0.0, %v3574
    %v3576 = vpop.f32.mrf.mxu0
    %3577 = vmatprep.mubr.bf16.mxu0 0
    %3578 = vmatmul.mubr.bf16.gmra.mxu0 %v166
    %v3579 = vpop.f32.mrf.mxu0
    %v3580 = vadd.f32 0.0, %v3579
    %v3581 = vpop.f32.mrf.mxu0
    %v3582 = vpop.f32.mrf.mxu0
    %v3583 = vadd.f32 0.0, %v3582
    %v3584 = vpop.f32.mrf.mxu0
    %3585 = vdwg.mxu0
    %v3586 = vld [vmem:[#allocation3] sm:$0xff]
    %v3587 = vld [vmem:[#allocation3 + $0x8] sm:$0xff]
    %v3588 = vld [vmem:[#allocation3 + $0x10] sm:$0xff]
    %v3589 = vld [vmem:[#allocation3 + $0x18] sm:$0xff]
    %v3590 = vadd.f32 %v3586, %v3572
    %v3591 = vadd.f32 %v3587, %v3575
    %v3592 = vadd.f32 %v3588, %v3580
    %v3593 = vadd.f32 %v3589, %v3583
    %vm3594 = vcmp.ge.f32.partialorder %v3590, 1.0
    %vm3595 = vcmp.ge.f32.partialorder %v3591, 1.0
    %vm3596 = vcmp.ge.f32.partialorder %v3592, 1.0
    %vm3597 = vcmp.ge.f32.partialorder %v3593, 1.0
    %v3598 = vsel %vm3594, 0.0, %v3590
    %v3599 = vsel %vm3595, 0.0, %v3591
    %v3600 = vsel %vm3596, 0.0, %v3592
    %v3601 = vsel %vm3597, 0.0, %v3593
    %3602 = vst [vmem:[#allocation3] sm:$0xff] %v3598
    %3603 = vst [vmem:[#allocation3 + $0x8] sm:$0xff] %v3599
    %3604 = vst [vmem:[#allocation3 + $0x10] sm:$0xff] %v3600
    %3605 = vst [vmem:[#allocation3 + $0x18] sm:$0xff] %v3601
    %v3606 = vsel %vm3594, 1.0, 0.0
    %v3607 = vsel %vm3595, 1.0, 0.0
    %v3608 = vsel %vm3596, 1.0, 0.0
    %v3609 = vsel %vm3597, 1.0, 0.0
    %v3610 = vpack.c.bf16 %v3607, %v3606
    %v3611 = vpack.c.bf16 %v3609, %v3608
    %3612 = vmatprep.subr.bf16.mxu0 0
    %3613 = vmatpush1.bf16.msra.mxu0 0
    %3614 = vmatprep.subr.bf16.mxu0 0
    %3615 = vmatpush1.bf16.msra.mxu0 0
    %3616 = vmatprep.subr.bf16.mxu0 0
    %3617 = vmatpush1.bf16.msra.mxu0 0
    %3618 = vmatprep.subr.bf16.mxu0 0
    %3619 = vmatpush1.bf16.msra.mxu0 0
    %3620 = vmatprep.subr.bf16.mxu0 0
    %3621 = vmatpush1.bf16.msra.mxu0 0
    %3622 = vmatprep.subr.bf16.mxu0 0
    %3623 = vmatpush1.bf16.msra.mxu0 0
    %3624 = vmatprep.subr.bf16.mxu0 0
    %3625 = vmatpush1.bf16.msra.mxu0 %v3611
    %3626 = vmatprep.subr.bf16.mxu0 0
    %3627 = vmatpush1.bf16.msra.mxu0 %v3610
    %3628 = vmatprep.subr.bf16.mxu0 0
    %3629 = vmatpush2.bf16.msra.mxu0 0
    %3630 = vmatprep.subr.bf16.mxu0 0
    %3631 = vmatpush2.bf16.msra.mxu0 0
    %3632 = vmatprep.subr.bf16.mxu0 0
    %3633 = vmatpush2.bf16.msra.mxu0 0
    %3634 = vmatprep.subr.bf16.mxu0 0
    %3635 = vmatpush2.bf16.msra.mxu0 0
    %3636 = vmatprep.subr.bf16.mxu0 0
    %3637 = vmatpush2.bf16.msra.mxu0 0
    %3638 = vmatprep.subr.bf16.mxu0 0
    %3639 = vmatpush2.bf16.msra.mxu0 0
    %3640 = vmatprep.subr.bf16.mxu0 0
    %3641 = vmatpush2.bf16.msra.mxu0 0
    %3642 = vmatprep.subr.bf16.mxu0 0
    %3643 = vmatpush2.bf16.msra.mxu0 0
    %3644 = vmatprep.mubr.bf16.mxu0 0
    %3645 = vmatmul.mubr.bf16.gmra.mxu0 %v250
    %v3646 = vpop.f32.mrf.mxu0
    %v3647 = vadd.f32 0.0, %v3646
    %v3648 = vpop.f32.mrf.mxu0
    %v3649 = vpop.f32.mrf.mxu0
    %v3650 = vadd.f32 0.0, %v3649
    %v3651 = vpop.f32.mrf.mxu0
    %3652 = vdwg.mxu0
    %v3653 = vld [vmem:[#allocation4] sm:$0xff]
    %v3654 = vld [vmem:[#allocation4 + $0x8] sm:$0xff]
    %v3655 = vadd.f32 %v3653, %v3647
    %v3656 = vadd.f32 %v3654, %v3650
    %vm3657 = vcmp.ge.f32.partialorder %v3655, 1.0
    %vm3658 = vcmp.ge.f32.partialorder %v3656, 1.0
    %v3659 = vsel %vm3657, 0.0, %v3655
    %v3660 = vsel %vm3658, 0.0, %v3656
    %3661 = vst [vmem:[#allocation4] sm:$0xff] %v3659
    %3662 = vst [vmem:[#allocation4 + $0x8] sm:$0xff] %v3660
    %v3663 = vsel %vm3657, 1.0, 0.0
    %v3664 = vsel %vm3658, 1.0, 0.0
    %v3665 = vld [vmem:[#allocation8] sm:$0xff]
    %v3666 = vld [vmem:[#allocation8 + $0x8] sm:$0xff]
    %v3667 = vadd.f32 %v3665, %v3663
    %v3668 = vadd.f32 %v3666, %v3664
    %3669 = vst [vmem:[#allocation8] sm:$0xff] %v3667
    %3670 = vst [vmem:[#allocation8 + $0x8] sm:$0xff] %v3668
    // Predicated region
    $region26: #{tpu_custom_call.1} parent=1 // pred_check
      %p3671 = pneg %p33
    $region27: #{tpu_custom_call.1} parent=1 // pred_check_branch
      %3673 = sbr.rel (%p3671) target = $region29
    $region28: #{tpu_custom_call.1} parent=1 // pred_region
      %v3674 = vld [vmem:[#allocation8] sm:$0xff]
      %v3675 = vld [vmem:[#allocation8 + $0x8] sm:$0xff]
      %v3676 = vmul.f32 %v3674, 0.0625
      %v3677 = vmul.f32 %v3675, 0.0625
      %3678 = vst [vmem:[#allocation8] sm:$0xff] %v3676
      %3679 = vst [vmem:[#allocation8 + $0x8] sm:$0xff] %v3677
    $region29: #{tpu_custom_call.1} parent=1 // pred_fallthru
      _
    // Predicated region
    $region30: #{tpu_custom_call.1} parent=1 // pred_check
      _
    $region31: #{tpu_custom_call.1} parent=1 // pred_check_branch
      %3681 = sbr.rel (0) target = $region33
    $region32: #{tpu_custom_call.1} parent=1 // pred_region
      %s3683 = ssub.s32 256, 256
      %3684 = vsyncadd [#allocation7], %s3683
      %s3685 = sshll.u32 [#allocation8], 4
      %s3686 = int_to_ptr.vmem [resolvable:$true] %s3685
      %3691 = dma.vmem_to_hbm [thread:$0]  %s3686, 256, %s4, [#allocation7], 128, 128, 8
    $region33: #{tpu_custom_call.1} parent=1 // pred_fallthru
      _
    // Predicated region
    $region34: #{tpu_custom_call.1} parent=1 // pred_check
      _
    $region35: #{tpu_custom_call.1} parent=1 // pred_check_branch
      %3693 = sbr.rel (0) target = $region37
    $region36: #{tpu_custom_call.1} parent=1 // pred_region
      %3694 = dma.done [#allocation7], 256
    $region37: #{tpu_custom_call.1} parent=1 // pred_fallthru
      _
    %3695 = vsyncpa [#allocation6], 1
    %3696 = vsyncpa [#allocation7], 1

</llo_original>
